<compile_context>
chip_gen: v7x
topology: tpu7x:2x2x1
jax: 0.10.0
libtpu: 0.0.40
codegen_flags: <defaults>
</compile_context>

<pallas_src>
import jax
import jax.numpy as jnp
from jax.experimental import pallas as pl
from jax.experimental.pallas import tpu as pltpu


# ----------------------------- Pallas kernel ------------------------------ #
def q_network_rnn_kernel(
    x_ref,       # (T_blk, B_blk, D)   streamed input tile
    h0_ref,      # (B_blk, Hp)         initial hidden (read only at t_blk == 0)
    w1_ref,      # (D, Hp)             fc1 weight (transposed, H-padded), mm dtype
    b1_ref,      # (1, Hp)             fc1 bias, f32
    wih_ref,     # (Hp, 3*Hp)          fused GRU W_ih^T, gate order r|z|n, mm dtype
    whh_ref,     # (Hp, 3*Hp)          fused GRU W_hh^T, gate order r|z|n, mm dtype
    bih_ref,     # (1, 3*Hp)           b_ih, f32
    bhh_ref,     # (1, 3*Hp)           b_hh, f32
    w2_ref,      # (Hp, Ap)            fc2 weight (transposed, lane-padded)
    b2_ref,      # (1, Ap)             fc2 bias, f32
    q_ref,       # out (T_blk, B_blk, Ap) streamed Q tile
    h_out_ref,   # out (B_blk, Hp)     resident hidden-state carry / final hidden
):
    t_blk_idx = pl.program_id(1)          # time is the LAST (sequential) grid axis

    @pl.when(t_blk_idx == 0)
    def _():
        h_out_ref[...] = h0_ref[...]

    T_blk = x_ref.shape[0]
    Hp = h_out_ref.shape[1]
    mm = w1_ref.dtype                     # bf16 (or f32) matmul operand dtype

    # Hoist all resident operands (and their broadcasts) out of the inner loop.
    w1 = w1_ref[...]
    b1 = b1_ref[...]
    wih = wih_ref[...]
    whh = whh_ref[...]
    bih = bih_ref[...]
    bhh = bhh_ref[...]
    w2 = w2_ref[...]
    b2 = b2_ref[...]

    h = h_out_ref[...]                    # f32 carry, resident in VMEM

    # Fully-unrolled recurrence over the time block (T_blk is a static int).
    for t in range(T_blk):
        x = x_ref[t]                      # (B_blk, D)

        # fc1 + ReLU (f32 accumulate)
        a = jnp.dot(x.astype(mm), w1, preferred_element_type=jnp.float32) + b1
        a = jnp.maximum(a, 0.0)

        # GRUCell: two fused gate matmuls, PyTorch gate order (r, z, n).
        gi = jnp.dot(a.astype(mm), wih, preferred_element_type=jnp.float32) + bih
        gh = jnp.dot(h.astype(mm), whh, preferred_element_type=jnp.float32) + bhh

        r = jax.nn.sigmoid(gi[:, 0:Hp] + gh[:, 0:Hp])
        z = jax.nn.sigmoid(gi[:, Hp:2 * Hp] + gh[:, Hp:2 * Hp])
        n = jnp.tanh(gi[:, 2 * Hp:3 * Hp] + r * gh[:, 2 * Hp:3 * Hp])
        h = (1.0 - z) * n + z * h

        # fc2 into the lane-dense padded Q slab.
        q_ref[t] = (
            jnp.dot(h.astype(mm), w2, preferred_element_type=jnp.float32) + b2
        )

    h_out_ref[...] = h                    # carry stays in VMEM across time blocks


# --------------------------- Parameter handling ---------------------------- #
def _pad128(n):
    return ((n + 127) // 128) * 128


def prepare_params(params, matmul_dtype=jnp.bfloat16):
    """One-time prep: transpose, fuse GRU gates into (Hp, 3*Hp), lane-pad H and
    the action dim, cast matmul operands.  Biases / gate math stay f32."""
    H = params["b1"].shape[0]
    D = params["w1"].shape[1]
    A = params["w2"].shape[0]
    Hp = _pad128(H)
    Ap = _pad128(A)

    cast = lambda w: w.astype(matmul_dtype)

    # fc1: PyTorch (H, D) -> (D, Hp)
    w1 = jnp.zeros((D, Hp), jnp.float32).at[:, :H].set(params["w1"].T)
    b1 = jnp.zeros((1, Hp), jnp.float32).at[:, :H].set(params["b1"][None, :])

    # GRUCell: PyTorch weight_{ih,hh} are (3H, H), row blocks in order r, z, n.
    # Fuse into (Hp, 3*Hp) with gate g occupying columns [g*Hp : g*Hp + H].
    def fuse_w(w):
        out = jnp.zeros((Hp, 3 * Hp), jnp.float32)
        for g in range(3):
            out = out.at[:H, g * Hp:g * Hp + H].set(w[g * H:(g + 1) * H, :].T)
        return out

    def fuse_b(b):
        out = jnp.zeros((1, 3 * Hp), jnp.float32)
        for g in range(3):
            out = out.at[:, g * Hp:g * Hp + H].set(b[g * H:(g + 1) * H][None, :])
        return out

    # fc2: PyTorch (A, H) -> (Hp, Ap)
    w2 = jnp.zeros((Hp, Ap), jnp.float32).at[:H, :A].set(params["w2"].T)
    b2 = jnp.zeros((1, Ap), jnp.float32).at[:, :A].set(params["b2"][None, :])

    return {
        "H": H, "Hp": Hp, "A": A, "Ap": Ap, "D": D,
        "w1": cast(w1), "b1": b1,
        "w_ih": cast(fuse_w(params["w_ih"])),
        "w_hh": cast(fuse_w(params["w_hh"])),
        "b_ih": fuse_b(params["b_ih"]),
        "b_hh": fuse_b(params["b_hh"]),
        "w2": cast(w2), "b2": b2,
    }


# ------------------------------- Wrapper ----------------------------------- #
def _pick_t_blk(T, cap=8):
    for c in range(min(T, cap), 0, -1):
        if T % c == 0:
            return c
    return 1


def q_network_rnn_rollout(x_seq, h0, prep, *, t_blk=None, b_blk=None):
    """Run T recurrent steps in one fused pallas_call.

    x_seq: (T, B, D) f32.  h0: (B, H) f32.
    Returns (Q: (T, B, A) f32, h_T: (B, H) f32).
    """
    T, B, D = x_seq.shape
    H, Hp, A, Ap = prep["H"], prep["Hp"], prep["A"], prep["Ap"]

    if T == 0:                                  # empty rollout guard
        return jnp.zeros((0, B, A), jnp.float32), h0

    t_blk = _pick_t_blk(T) if t_blk is None else t_blk
    b_blk = B if b_blk is None else b_blk       # v7x: choose B//2 etc. to shard cores
    assert T % t_blk == 0 and B % b_blk == 0

    # Pad the hidden state to Hp lanes (padded lanes stay exactly zero through
    # the recurrence because all padded weight/bias entries are zero).
    h0p = jnp.zeros((B, Hp), jnp.float32).at[:, :H].set(h0)

    args = (
        x_seq, h0p,
        prep["w1"], prep["b1"],
        prep["w_ih"], prep["w_hh"], prep["b_ih"], prep["b_hh"],
        prep["w2"], prep["b2"],
    )

    const = lambda b, t: (0, 0)                 # resident weight/bias blocks

    in_specs = [
        pl.BlockSpec((t_blk, b_blk, D), lambda b, t: (t, b, 0)),   # x: streamed
        pl.BlockSpec((b_blk, Hp), lambda b, t: (b, 0)),            # h0 per batch block
    ] + [pl.BlockSpec(a.shape, const) for a in args[2:]]           # params: resident

    q_pad, h_T = pl.pallas_call(
        q_network_rnn_kernel,
        out_shape=(
            jax.ShapeDtypeStruct((T, B, Ap), jnp.float32),
            jax.ShapeDtypeStruct((B, Hp), jnp.float32),
        ),
        grid_spec=pltpu.PrefetchScalarGridSpec(
            num_scalar_prefetch=0,
            grid=(B // b_blk, T // t_blk),       # (parallel batch, sequential time)
            in_specs=in_specs,
            out_specs=(
                pl.BlockSpec((t_blk, b_blk, Ap), lambda b, t: (t, b, 0)),  # Q
                pl.BlockSpec((b_blk, Hp), lambda b, t: (b, 0)),            # h carry
            ),
        ),
        compiler_params=pltpu.CompilerParams(
            # Time carry is sequential and MUST stay the last, "arbitrary" axis;
            # the batch axis is independent and can shard across v7x TensorCores.
            dimension_semantics=("parallel", "arbitrary"),
        ),
    )(*args)

    return q_pad[:, :, :A], h_T[:, :H]


# ---------------------- Pure-JAX reference (same prep) ---------------------- #
def q_network_rnn_reference(x_seq, h0, prep, precision=None):
    mm = prep["w1"].dtype
    H, Hp, A = prep["H"], prep["Hp"], prep["A"]

    def dot(a, b):
        return jnp.dot(a.astype(mm), b, preferred_element_type=jnp.float32,
                       precision=precision)

    h0p = jnp.zeros((h0.shape[0], Hp), jnp.float32).at[:, :H].set(h0)

    def step(h, x):
        a = jnp.maximum(dot(x, prep["w1"]) + prep["b1"], 0.0)
        gi = dot(a, prep["w_ih"]) + prep["b_ih"]
        gh = dot(h, prep["w_hh"]) + prep["b_hh"]
        r = jax.nn.sigmoid(gi[:, 0:Hp] + gh[:, 0:Hp])
        z = jax.nn.sigmoid(gi[:, Hp:2 * Hp] + gh[:, Hp:2 * Hp])
        n = jnp.tanh(gi[:, 2 * Hp:3 * Hp] + r * gh[:, 2 * Hp:3 * Hp])
        h_new = (1.0 - z) * n + z * h
        q = dot(h_new, prep["w2"]) + prep["b2"]
        return h_new, q[:, :A]

    h_T, q_seq = jax.lax.scan(step, h0p, x_seq)
    return q_seq, h_T[:, :H]


# --------------------------- Parameter creation ----------------------------- #
def orthogonal(key, shape, gain=1.0):
    """Deterministic orthogonal init (same semantics as nn.init.orthogonal_)."""
    rows, cols = shape
    flat = jax.random.normal(key, (max(rows, cols), min(rows, cols)), jnp.float32)
    q, r = jnp.linalg.qr(flat)
    q = q * jnp.sign(jnp.diag(r))[None, :]
    if rows < cols:
        q = q.T
    return gain * q[:rows, :cols].astype(jnp.float32)


def init_params(key, input_dim, hidden_dim, action_dim):
    k1, k2, k3, k4 = jax.random.split(key, 4)
    return {
        # fc1: Linear(input_dim, hidden_dim)
        "w1": orthogonal(k1, (hidden_dim, input_dim)),
        "b1": jnp.zeros((hidden_dim,), jnp.float32),
        # GRUCell(hidden_dim, hidden_dim): weight_ih (3H, H), weight_hh (3H, H)
        "w_ih": orthogonal(k2, (3 * hidden_dim, hidden_dim)),
        "b_ih": jnp.zeros((3 * hidden_dim,), jnp.float32),
        "w_hh": orthogonal(k3, (3 * hidden_dim, hidden_dim)),
        "b_hh": jnp.zeros((3 * hidden_dim,), jnp.float32),
        # fc2: Linear(hidden_dim, action_dim)
        "w2": orthogonal(k4, (action_dim, hidden_dim)),
        "b2": jnp.zeros((action_dim,), jnp.float32),
    }


# --------------------------------- Main ------------------------------------ #
if __name__ == "__main__":
    # Small demo shapes.  In production batch agents/envs so B >= 128 (v5e) /
    # 256 (v6e, v7x); on v7x pick b_blk = B // 2 to shard both TensorCores.
    T = 8            # rollout length (whole rollout = one grid time block here)
    B = 8            # batch (e.g. n_agents * episodes)
    INPUT_DIM = 32   # obs_dim + n_actions + n_agents
    HIDDEN = 32      # args.rnn_hidden_dim
    ACTIONS = 16     # args.action_dim

    key = jax.random.PRNGKey(0)
    k_x, k_p = jax.random.split(key)

    x_seq = jax.random.normal(k_x, (T, B, INPUT_DIM), jnp.float32)
    h0 = jnp.zeros((B, HIDDEN), jnp.float32)     # self.rnn_hidden starts as zeros
    params = init_params(k_p, INPUT_DIM, HIDDEN, ACTIONS)

    # --- f32-matmul path: validates exact GRUCell semantics (fused gates,
    #     lane padding, time blocking, hidden carry) without bf16 drift. ---
    prep32 = prepare_params(params, matmul_dtype=jnp.float32)
    q32, h32 = q_network_rnn_rollout(x_seq, h0, prep32)
    jax.block_until_ready((q32, h32))
    q32_r, h32_r = q_network_rnn_reference(x_seq, h0, prep32,
                                           precision=jax.lax.Precision.HIGHEST)
    assert jnp.allclose(q32, q32_r, atol=2e-3, rtol=2e-3)
    assert jnp.allclose(h32, h32_r, atol=2e-3, rtol=2e-3)

    # --- bf16-matmul perf path (same prepared params for the reference). ---
    prep16 = prepare_params(params, matmul_dtype=jnp.bfloat16)
    q16, h16 = q_network_rnn_rollout(x_seq, h0, prep16)
    jax.block_until_ready((q16, h16))
    q16_r, h16_r = q_network_rnn_reference(x_seq, h0, prep16)
    assert q16.shape == (T, B, ACTIONS) and h16.shape == (B, HIDDEN)
    assert jnp.allclose(q16, q16_r, atol=2e-2, rtol=2e-2)
    assert jnp.allclose(h16, h16_r, atol=2e-2, rtol=2e-2)

    print("KERNEL_OK")
</pallas_src>

<mosaic_0001>
module attributes {stable_mosaic.version = 11 : i64} {
  func.func @q_network_rnn_kernel(%arg0: i32, %arg1: i32, %arg2: memref<8x8x32xf32, #tpu.memory_space<vmem>>, %arg3: memref<8x128xf32, #tpu.memory_space<vmem>>, %arg4: memref<32x128xf32, #tpu.memory_space<vmem>>, %arg5: memref<1x128xf32, #tpu.memory_space<vmem>>, %arg6: memref<128x384xf32, #tpu.memory_space<vmem>>, %arg7: memref<128x384xf32, #tpu.memory_space<vmem>>, %arg8: memref<1x384xf32, #tpu.memory_space<vmem>>, %arg9: memref<1x384xf32, #tpu.memory_space<vmem>>, %arg10: memref<128x128xf32, #tpu.memory_space<vmem>>, %arg11: memref<1x128xf32, #tpu.memory_space<vmem>>, %arg12: memref<8x8x128xf32, #tpu.memory_space<vmem>>, %arg13: memref<8x128xf32, #tpu.memory_space<vmem>>) attributes {dimension_semantics = [#tpu.dimension_semantics<parallel>, #tpu.dimension_semantics<arbitrary>], iteration_bounds = array<i64: 1, 1>, scalar_prefetch = 0 : i64, scratch_operands = 0 : i64, tpu.core_type = #tpu.core_type<tc>, window_params = [{transform_indices = @transform_0, window_bounds = array<i64: 8, 8, 32>}, {transform_indices = @transform_1, window_bounds = array<i64: 8, 128>}, {pipeline_mode = #tpu.pipeline_mode<synchronous>, transform_indices = @transform_2, window_bounds = array<i64: 32, 128>}, {pipeline_mode = #tpu.pipeline_mode<synchronous>, transform_indices = @transform_3, window_bounds = array<i64: 1, 128>}, {pipeline_mode = #tpu.pipeline_mode<synchronous>, transform_indices = @transform_4, window_bounds = array<i64: 128, 384>}, {pipeline_mode = #tpu.pipeline_mode<synchronous>, transform_indices = @transform_5, window_bounds = array<i64: 128, 384>}, {pipeline_mode = #tpu.pipeline_mode<synchronous>, transform_indices = @transform_6, window_bounds = array<i64: 1, 384>}, {pipeline_mode = #tpu.pipeline_mode<synchronous>, transform_indices = @transform_7, window_bounds = array<i64: 1, 384>}, {pipeline_mode = #tpu.pipeline_mode<synchronous>, transform_indices = @transform_8, window_bounds = array<i64: 128, 128>}, {pipeline_mode = #tpu.pipeline_mode<synchronous>, transform_indices = @transform_9, window_bounds = array<i64: 1, 128>}, {transform_indices = @transform_10, window_bounds = array<i64: 8, 8, 128>}, {transform_indices = @transform_11, window_bounds = array<i64: 8, 128>}]} {
    %c0_i32 = arith.constant 0 : i32
    %0 = arith.cmpi eq, %arg1, %c0_i32 : i32
    %1 = arith.extui %0 : i1 to i32
    %c0_i32_0 = arith.constant 0 : i32
    %2 = arith.cmpi ne, %1, %c0_i32_0 : i32
    scf.if %2 {
      %c0_124 = arith.constant 0 : index
      %c0_125 = arith.constant 0 : index
      %373 = vector.load %arg3[%c0_124, %c0_125] : memref<8x128xf32, #tpu.memory_space<vmem>>, vector<8x128xf32>
      %c0_126 = arith.constant 0 : index
      %c0_127 = arith.constant 0 : index
      %374 = vector.load %arg13[%c0_126, %c0_127] : memref<8x128xf32, #tpu.memory_space<vmem>>, vector<8x128xf32>
      tpu.vector_store %arg13[%c0_126, %c0_127], %373 {strides = array<i32>} : memref<8x128xf32, #tpu.memory_space<vmem>>, vector<8x128xf32>,
    } else {
    }
    %c0 = arith.constant 0 : index
    %c0_1 = arith.constant 0 : index
    %3 = vector.load %arg4[%c0, %c0_1] : memref<32x128xf32, #tpu.memory_space<vmem>>, vector<32x128xf32>
    %c0_2 = arith.constant 0 : index
    %c0_3 = arith.constant 0 : index
    %4 = vector.load %arg5[%c0_2, %c0_3] : memref<1x128xf32, #tpu.memory_space<vmem>>, vector<1x128xf32>
    %c0_4 = arith.constant 0 : index
    %c0_5 = arith.constant 0 : index
    %5 = vector.load %arg6[%c0_4, %c0_5] : memref<128x384xf32, #tpu.memory_space<vmem>>, vector<128x384xf32>
    %c0_6 = arith.constant 0 : index
    %c0_7 = arith.constant 0 : index
    %6 = vector.load %arg7[%c0_6, %c0_7] : memref<128x384xf32, #tpu.memory_space<vmem>>, vector<128x384xf32>
    %c0_8 = arith.constant 0 : index
    %c0_9 = arith.constant 0 : index
    %7 = vector.load %arg8[%c0_8, %c0_9] : memref<1x384xf32, #tpu.memory_space<vmem>>, vector<1x384xf32>
    %c0_10 = arith.constant 0 : index
    %c0_11 = arith.constant 0 : index
    %8 = vector.load %arg9[%c0_10, %c0_11] : memref<1x384xf32, #tpu.memory_space<vmem>>, vector<1x384xf32>
    %c0_12 = arith.constant 0 : index
    %c0_13 = arith.constant 0 : index
    %9 = vector.load %arg10[%c0_12, %c0_13] : memref<128x128xf32, #tpu.memory_space<vmem>>, vector<128x128xf32>
    %c0_14 = arith.constant 0 : index
    %c0_15 = arith.constant 0 : index
    %10 = vector.load %arg11[%c0_14, %c0_15] : memref<1x128xf32, #tpu.memory_space<vmem>>, vector<1x128xf32>
    %c0_16 = arith.constant 0 : index
    %c0_17 = arith.constant 0 : index
    %11 = vector.load %arg13[%c0_16, %c0_17] : memref<8x128xf32, #tpu.memory_space<vmem>>, vector<8x128xf32>
    %c0_18 = arith.constant 0 : index
    %c0_19 = arith.constant 0 : index
    %c0_20 = arith.constant 0 : index
    %12 = vector.load %arg2[%c0_18, %c0_19, %c0_20] : memref<8x8x32xf32, #tpu.memory_space<vmem>>, vector<1x8x32xf32>
    %13 = vector.shape_cast %12 : vector<1x8x32xf32> to vector<8x32xf32>
    %cst = arith.constant dense<0.000000e+00> : vector<8x128xf32>
    %14 = tpu.matmul %13, %3, %cst {dimension_numbers = #tpu.dot_dimension_numbers<[1], [0], [0], [1], [0, 0, 1, 1], [], []>} : vector<8x32xf32>, vector<32x128xf32>, vector<8x128xf32> -> vector<8x128xf32>
    %15 = vector.broadcast %4 : vector<1x128xf32> to vector<8x128xf32>
    %16 = arith.addf %14, %15 : vector<8x128xf32>
    %cst_21 = arith.constant 0.000000e+00 : f32
    %17 = vector.broadcast %cst_21 : f32 to vector<8x128xf32>
    %18 = arith.maximumf %16, %17 : vector<8x128xf32>
    %cst_22 = arith.constant dense<0.000000e+00> : vector<8x384xf32>
    %19 = tpu.matmul %18, %5, %cst_22 {dimension_numbers = #tpu.dot_dimension_numbers<[1], [0], [0], [1], [0, 0, 1, 1], [], []>} : vector<8x128xf32>, vector<128x384xf32>, vector<8x384xf32> -> vector<8x384xf32>
    %20 = vector.broadcast %7 : vector<1x384xf32> to vector<8x384xf32>
    %21 = arith.addf %19, %20 : vector<8x384xf32>
    %cst_23 = arith.constant dense<0.000000e+00> : vector<8x384xf32>
    %22 = tpu.matmul %11, %6, %cst_23 {dimension_numbers = #tpu.dot_dimension_numbers<[1], [0], [0], [1], [0, 0, 1, 1], [], []>} : vector<8x128xf32>, vector<128x384xf32>, vector<8x384xf32> -> vector<8x384xf32>
    %23 = vector.broadcast %8 : vector<1x384xf32> to vector<8x384xf32>
    %24 = arith.addf %22, %23 : vector<8x384xf32>
    %25 = vector.extract_strided_slice %21 {offsets = [0, 0], sizes = [8, 128], strides = [1, 1]} : vector<8x384xf32> to vector<8x128xf32>
    %26 = vector.extract_strided_slice %24 {offsets = [0, 0], sizes = [8, 128], strides = [1, 1]} : vector<8x384xf32> to vector<8x128xf32>
    %27 = arith.addf %25, %26 : vector<8x128xf32>
    %28 = arith.negf %27 : vector<8x128xf32>
    %29 = math.exp %28 : vector<8x128xf32>
    %cst_24 = arith.constant 1.000000e+00 : f32
    %30 = vector.broadcast %cst_24 : f32 to vector<8x128xf32>
    %31 = arith.addf %30, %29 : vector<8x128xf32>
    %32 = arith.divf %30, %31 : vector<8x128xf32>
    %33 = vector.extract_strided_slice %21 {offsets = [0, 128], sizes = [8, 128], strides = [1, 1]} : vector<8x384xf32> to vector<8x128xf32>
    %34 = vector.extract_strided_slice %24 {offsets = [0, 128], sizes = [8, 128], strides = [1, 1]} : vector<8x384xf32> to vector<8x128xf32>
    %35 = arith.addf %33, %34 : vector<8x128xf32>
    %36 = arith.negf %35 : vector<8x128xf32>
    %37 = math.exp %36 : vector<8x128xf32>
    %cst_25 = arith.constant 1.000000e+00 : f32
    %38 = vector.broadcast %cst_25 : f32 to vector<8x128xf32>
    %39 = arith.addf %38, %37 : vector<8x128xf32>
    %40 = arith.divf %38, %39 : vector<8x128xf32>
    %41 = vector.extract_strided_slice %21 {offsets = [0, 256], sizes = [8, 128], strides = [1, 1]} : vector<8x384xf32> to vector<8x128xf32>
    %42 = vector.extract_strided_slice %24 {offsets = [0, 256], sizes = [8, 128], strides = [1, 1]} : vector<8x384xf32> to vector<8x128xf32>
    %43 = arith.mulf %32, %42 : vector<8x128xf32>
    %44 = arith.addf %41, %43 : vector<8x128xf32>
    %45 = math.tanh %44 : vector<8x128xf32>
    %cst_26 = arith.constant 1.000000e+00 : f32
    %46 = vector.broadcast %cst_26 : f32 to vector<8x128xf32>
    %47 = arith.subf %46, %40 : vector<8x128xf32>
    %48 = arith.mulf %47, %45 : vector<8x128xf32>
    %49 = arith.mulf %40, %11 : vector<8x128xf32>
    %50 = arith.addf %48, %49 : vector<8x128xf32>
    %cst_27 = arith.constant dense<0.000000e+00> : vector<8x128xf32>
    %51 = tpu.matmul %50, %9, %cst_27 {dimension_numbers = #tpu.dot_dimension_numbers<[1], [0], [0], [1], [0, 0, 1, 1], [], []>} : vector<8x128xf32>, vector<128x128xf32>, vector<8x128xf32> -> vector<8x128xf32>
    %52 = vector.broadcast %10 : vector<1x128xf32> to vector<8x128xf32>
    %53 = arith.addf %51, %52 : vector<8x128xf32>
    %c0_28 = arith.constant 0 : index
    %c0_29 = arith.constant 0 : index
    %c0_30 = arith.constant 0 : index
    %54 = vector.load %arg12[%c0_28, %c0_29, %c0_30] : memref<8x8x128xf32, #tpu.memory_space<vmem>>, vector<1x8x128xf32>
    %55 = vector.shape_cast %54 : vector<1x8x128xf32> to vector<8x128xf32>
    %56 = vector.shape_cast %53 : vector<8x128xf32> to vector<1x8x128xf32>
    tpu.vector_store %arg12[%c0_28, %c0_29, %c0_30], %56 {strides = array<i32>} : memref<8x8x128xf32, #tpu.memory_space<vmem>>, vector<1x8x128xf32>,
    %c1 = arith.constant 1 : index
    %c0_31 = arith.constant 0 : index
    %c0_32 = arith.constant 0 : index
    %57 = vector.load %arg2[%c1, %c0_31, %c0_32] : memref<8x8x32xf32, #tpu.memory_space<vmem>>, vector<1x8x32xf32>
    %58 = vector.shape_cast %57 : vector<1x8x32xf32> to vector<8x32xf32>
    %cst_33 = arith.constant dense<0.000000e+00> : vector<8x128xf32>
    %59 = tpu.matmul %58, %3, %cst_33 {dimension_numbers = #tpu.dot_dimension_numbers<[1], [0], [0], [1], [0, 0, 1, 1], [], []>} : vector<8x32xf32>, vector<32x128xf32>, vector<8x128xf32> -> vector<8x128xf32>
    %60 = vector.broadcast %4 : vector<1x128xf32> to vector<8x128xf32>
    %61 = arith.addf %59, %60 : vector<8x128xf32>
    %cst_34 = arith.constant 0.000000e+00 : f32
    %62 = vector.broadcast %cst_34 : f32 to vector<8x128xf32>
    %63 = arith.maximumf %61, %62 : vector<8x128xf32>
    %cst_35 = arith.constant dense<0.000000e+00> : vector<8x384xf32>
    %64 = tpu.matmul %63, %5, %cst_35 {dimension_numbers = #tpu.dot_dimension_numbers<[1], [0], [0], [1], [0, 0, 1, 1], [], []>} : vector<8x128xf32>, vector<128x384xf32>, vector<8x384xf32> -> vector<8x384xf32>
    %65 = vector.broadcast %7 : vector<1x384xf32> to vector<8x384xf32>
    %66 = arith.addf %64, %65 : vector<8x384xf32>
    %cst_36 = arith.constant dense<0.000000e+00> : vector<8x384xf32>
    %67 = tpu.matmul %50, %6, %cst_36 {dimension_numbers = #tpu.dot_dimension_numbers<[1], [0], [0], [1], [0, 0, 1, 1], [], []>} : vector<8x128xf32>, vector<128x384xf32>, vector<8x384xf32> -> vector<8x384xf32>
    %68 = vector.broadcast %8 : vector<1x384xf32> to vector<8x384xf32>
    %69 = arith.addf %67, %68 : vector<8x384xf32>
    %70 = vector.extract_strided_slice %66 {offsets = [0, 0], sizes = [8, 128], strides = [1, 1]} : vector<8x384xf32> to vector<8x128xf32>
    %71 = vector.extract_strided_slice %69 {offsets = [0, 0], sizes = [8, 128], strides = [1, 1]} : vector<8x384xf32> to vector<8x128xf32>
    %72 = arith.addf %70, %71 : vector<8x128xf32>
    %73 = arith.negf %72 : vector<8x128xf32>
    %74 = math.exp %73 : vector<8x128xf32>
    %cst_37 = arith.constant 1.000000e+00 : f32
    %75 = vector.broadcast %cst_37 : f32 to vector<8x128xf32>
    %76 = arith.addf %75, %74 : vector<8x128xf32>
    %77 = arith.divf %75, %76 : vector<8x128xf32>
    %78 = vector.extract_strided_slice %66 {offsets = [0, 128], sizes = [8, 128], strides = [1, 1]} : vector<8x384xf32> to vector<8x128xf32>
    %79 = vector.extract_strided_slice %69 {offsets = [0, 128], sizes = [8, 128], strides = [1, 1]} : vector<8x384xf32> to vector<8x128xf32>
    %80 = arith.addf %78, %79 : vector<8x128xf32>
    %81 = arith.negf %80 : vector<8x128xf32>
    %82 = math.exp %81 : vector<8x128xf32>
    %cst_38 = arith.constant 1.000000e+00 : f32
    %83 = vector.broadcast %cst_38 : f32 to vector<8x128xf32>
    %84 = arith.addf %83, %82 : vector<8x128xf32>
    %85 = arith.divf %83, %84 : vector<8x128xf32>
    %86 = vector.extract_strided_slice %66 {offsets = [0, 256], sizes = [8, 128], strides = [1, 1]} : vector<8x384xf32> to vector<8x128xf32>
    %87 = vector.extract_strided_slice %69 {offsets = [0, 256], sizes = [8, 128], strides = [1, 1]} : vector<8x384xf32> to vector<8x128xf32>
    %88 = arith.mulf %77, %87 : vector<8x128xf32>
    %89 = arith.addf %86, %88 : vector<8x128xf32>
    %90 = math.tanh %89 : vector<8x128xf32>
    %cst_39 = arith.constant 1.000000e+00 : f32
    %91 = vector.broadcast %cst_39 : f32 to vector<8x128xf32>
    %92 = arith.subf %91, %85 : vector<8x128xf32>
    %93 = arith.mulf %92, %90 : vector<8x128xf32>
    %94 = arith.mulf %85, %50 : vector<8x128xf32>
    %95 = arith.addf %93, %94 : vector<8x128xf32>
    %cst_40 = arith.constant dense<0.000000e+00> : vector<8x128xf32>
    %96 = tpu.matmul %95, %9, %cst_40 {dimension_numbers = #tpu.dot_dimension_numbers<[1], [0], [0], [1], [0, 0, 1, 1], [], []>} : vector<8x128xf32>, vector<128x128xf32>, vector<8x128xf32> -> vector<8x128xf32>
    %97 = vector.broadcast %10 : vector<1x128xf32> to vector<8x128xf32>
    %98 = arith.addf %96, %97 : vector<8x128xf32>
    %c1_41 = arith.constant 1 : index
    %c0_42 = arith.constant 0 : index
    %c0_43 = arith.constant 0 : index
    %99 = vector.load %arg12[%c1_41, %c0_42, %c0_43] : memref<8x8x128xf32, #tpu.memory_space<vmem>>, vector<1x8x128xf32>
    %100 = vector.shape_cast %99 : vector<1x8x128xf32> to vector<8x128xf32>
    %101 = vector.shape_cast %98 : vector<8x128xf32> to vector<1x8x128xf32>
    tpu.vector_store %arg12[%c1_41, %c0_42, %c0_43], %101 {strides = array<i32>} : memref<8x8x128xf32, #tpu.memory_space<vmem>>, vector<1x8x128xf32>,
    %c2 = arith.constant 2 : index
    %c0_44 = arith.constant 0 : index
    %c0_45 = arith.constant 0 : index
    %102 = vector.load %arg2[%c2, %c0_44, %c0_45] : memref<8x8x32xf32, #tpu.memory_space<vmem>>, vector<1x8x32xf32>
    %103 = vector.shape_cast %102 : vector<1x8x32xf32> to vector<8x32xf32>
    %cst_46 = arith.constant dense<0.000000e+00> : vector<8x128xf32>
    %104 = tpu.matmul %103, %3, %cst_46 {dimension_numbers = #tpu.dot_dimension_numbers<[1], [0], [0], [1], [0, 0, 1, 1], [], []>} : vector<8x32xf32>, vector<32x128xf32>, vector<8x128xf32> -> vector<8x128xf32>
    %105 = vector.broadcast %4 : vector<1x128xf32> to vector<8x128xf32>
    %106 = arith.addf %104, %105 : vector<8x128xf32>
    %cst_47 = arith.constant 0.000000e+00 : f32
    %107 = vector.broadcast %cst_47 : f32 to vector<8x128xf32>
    %108 = arith.maximumf %106, %107 : vector<8x128xf32>
    %cst_48 = arith.constant dense<0.000000e+00> : vector<8x384xf32>
    %109 = tpu.matmul %108, %5, %cst_48 {dimension_numbers = #tpu.dot_dimension_numbers<[1], [0], [0], [1], [0, 0, 1, 1], [], []>} : vector<8x128xf32>, vector<128x384xf32>, vector<8x384xf32> -> vector<8x384xf32>
    %110 = vector.broadcast %7 : vector<1x384xf32> to vector<8x384xf32>
    %111 = arith.addf %109, %110 : vector<8x384xf32>
    %cst_49 = arith.constant dense<0.000000e+00> : vector<8x384xf32>
    %112 = tpu.matmul %95, %6, %cst_49 {dimension_numbers = #tpu.dot_dimension_numbers<[1], [0], [0], [1], [0, 0, 1, 1], [], []>} : vector<8x128xf32>, vector<128x384xf32>, vector<8x384xf32> -> vector<8x384xf32>
    %113 = vector.broadcast %8 : vector<1x384xf32> to vector<8x384xf32>
    %114 = arith.addf %112, %113 : vector<8x384xf32>
    %115 = vector.extract_strided_slice %111 {offsets = [0, 0], sizes = [8, 128], strides = [1, 1]} : vector<8x384xf32> to vector<8x128xf32>
    %116 = vector.extract_strided_slice %114 {offsets = [0, 0], sizes = [8, 128], strides = [1, 1]} : vector<8x384xf32> to vector<8x128xf32>
    %117 = arith.addf %115, %116 : vector<8x128xf32>
    %118 = arith.negf %117 : vector<8x128xf32>
    %119 = math.exp %118 : vector<8x128xf32>
    %cst_50 = arith.constant 1.000000e+00 : f32
    %120 = vector.broadcast %cst_50 : f32 to vector<8x128xf32>
    %121 = arith.addf %120, %119 : vector<8x128xf32>
    %122 = arith.divf %120, %121 : vector<8x128xf32>
    %123 = vector.extract_strided_slice %111 {offsets = [0, 128], sizes = [8, 128], strides = [1, 1]} : vector<8x384xf32> to vector<8x128xf32>
    %124 = vector.extract_strided_slice %114 {offsets = [0, 128], sizes = [8, 128], strides = [1, 1]} : vector<8x384xf32> to vector<8x128xf32>
    %125 = arith.addf %123, %124 : vector<8x128xf32>
    %126 = arith.negf %125 : vector<8x128xf32>
    %127 = math.exp %126 : vector<8x128xf32>
    %cst_51 = arith.constant 1.000000e+00 : f32
    %128 = vector.broadcast %cst_51 : f32 to vector<8x128xf32>
    %129 = arith.addf %128, %127 : vector<8x128xf32>
    %130 = arith.divf %128, %129 : vector<8x128xf32>
    %131 = vector.extract_strided_slice %111 {offsets = [0, 256], sizes = [8, 128], strides = [1, 1]} : vector<8x384xf32> to vector<8x128xf32>
    %132 = vector.extract_strided_slice %114 {offsets = [0, 256], sizes = [8, 128], strides = [1, 1]} : vector<8x384xf32> to vector<8x128xf32>
    %133 = arith.mulf %122, %132 : vector<8x128xf32>
    %134 = arith.addf %131, %133 : vector<8x128xf32>
    %135 = math.tanh %134 : vector<8x128xf32>
    %cst_52 = arith.constant 1.000000e+00 : f32
    %136 = vector.broadcast %cst_52 : f32 to vector<8x128xf32>
    %137 = arith.subf %136, %130 : vector<8x128xf32>
    %138 = arith.mulf %137, %135 : vector<8x128xf32>
    %139 = arith.mulf %130, %95 : vector<8x128xf32>
    %140 = arith.addf %138, %139 : vector<8x128xf32>
    %cst_53 = arith.constant dense<0.000000e+00> : vector<8x128xf32>
    %141 = tpu.matmul %140, %9, %cst_53 {dimension_numbers = #tpu.dot_dimension_numbers<[1], [0], [0], [1], [0, 0, 1, 1], [], []>} : vector<8x128xf32>, vector<128x128xf32>, vector<8x128xf32> -> vector<8x128xf32>
    %142 = vector.broadcast %10 : vector<1x128xf32> to vector<8x128xf32>
    %143 = arith.addf %141, %142 : vector<8x128xf32>
    %c2_54 = arith.constant 2 : index
    %c0_55 = arith.constant 0 : index
    %c0_56 = arith.constant 0 : index
    %144 = vector.load %arg12[%c2_54, %c0_55, %c0_56] : memref<8x8x128xf32, #tpu.memory_space<vmem>>, vector<1x8x128xf32>
    %145 = vector.shape_cast %144 : vector<1x8x128xf32> to vector<8x128xf32>
    %146 = vector.shape_cast %143 : vector<8x128xf32> to vector<1x8x128xf32>
    tpu.vector_store %arg12[%c2_54, %c0_55, %c0_56], %146 {strides = array<i32>} : memref<8x8x128xf32, #tpu.memory_space<vmem>>, vector<1x8x128xf32>,
    %c3 = arith.constant 3 : index
    %c0_57 = arith.constant 0 : index
    %c0_58 = arith.constant 0 : index
    %147 = vector.load %arg2[%c3, %c0_57, %c0_58] : memref<8x8x32xf32, #tpu.memory_space<vmem>>, vector<1x8x32xf32>
    %148 = vector.shape_cast %147 : vector<1x8x32xf32> to vector<8x32xf32>
    %cst_59 = arith.constant dense<0.000000e+00> : vector<8x128xf32>
    %149 = tpu.matmul %148, %3, %cst_59 {dimension_numbers = #tpu.dot_dimension_numbers<[1], [0], [0], [1], [0, 0, 1, 1], [], []>} : vector<8x32xf32>, vector<32x128xf32>, vector<8x128xf32> -> vector<8x128xf32>
    %150 = vector.broadcast %4 : vector<1x128xf32> to vector<8x128xf32>
    %151 = arith.addf %149, %150 : vector<8x128xf32>
    %cst_60 = arith.constant 0.000000e+00 : f32
    %152 = vector.broadcast %cst_60 : f32 to vector<8x128xf32>
    %153 = arith.maximumf %151, %152 : vector<8x128xf32>
    %cst_61 = arith.constant dense<0.000000e+00> : vector<8x384xf32>
    %154 = tpu.matmul %153, %5, %cst_61 {dimension_numbers = #tpu.dot_dimension_numbers<[1], [0], [0], [1], [0, 0, 1, 1], [], []>} : vector<8x128xf32>, vector<128x384xf32>, vector<8x384xf32> -> vector<8x384xf32>
    %155 = vector.broadcast %7 : vector<1x384xf32> to vector<8x384xf32>
    %156 = arith.addf %154, %155 : vector<8x384xf32>
    %cst_62 = arith.constant dense<0.000000e+00> : vector<8x384xf32>
    %157 = tpu.matmul %140, %6, %cst_62 {dimension_numbers = #tpu.dot_dimension_numbers<[1], [0], [0], [1], [0, 0, 1, 1], [], []>} : vector<8x128xf32>, vector<128x384xf32>, vector<8x384xf32> -> vector<8x384xf32>
    %158 = vector.broadcast %8 : vector<1x384xf32> to vector<8x384xf32>
    %159 = arith.addf %157, %158 : vector<8x384xf32>
    %160 = vector.extract_strided_slice %156 {offsets = [0, 0], sizes = [8, 128], strides = [1, 1]} : vector<8x384xf32> to vector<8x128xf32>
    %161 = vector.extract_strided_slice %159 {offsets = [0, 0], sizes = [8, 128], strides = [1, 1]} : vector<8x384xf32> to vector<8x128xf32>
    %162 = arith.addf %160, %161 : vector<8x128xf32>
    %163 = arith.negf %162 : vector<8x128xf32>
    %164 = math.exp %163 : vector<8x128xf32>
    %cst_63 = arith.constant 1.000000e+00 : f32
    %165 = vector.broadcast %cst_63 : f32 to vector<8x128xf32>
    %166 = arith.addf %165, %164 : vector<8x128xf32>
    %167 = arith.divf %165, %166 : vector<8x128xf32>
    %168 = vector.extract_strided_slice %156 {offsets = [0, 128], sizes = [8, 128], strides = [1, 1]} : vector<8x384xf32> to vector<8x128xf32>
    %169 = vector.extract_strided_slice %159 {offsets = [0, 128], sizes = [8, 128], strides = [1, 1]} : vector<8x384xf32> to vector<8x128xf32>
    %170 = arith.addf %168, %169 : vector<8x128xf32>
    %171 = arith.negf %170 : vector<8x128xf32>
    %172 = math.exp %171 : vector<8x128xf32>
    %cst_64 = arith.constant 1.000000e+00 : f32
    %173 = vector.broadcast %cst_64 : f32 to vector<8x128xf32>
    %174 = arith.addf %173, %172 : vector<8x128xf32>
    %175 = arith.divf %173, %174 : vector<8x128xf32>
    %176 = vector.extract_strided_slice %156 {offsets = [0, 256], sizes = [8, 128], strides = [1, 1]} : vector<8x384xf32> to vector<8x128xf32>
    %177 = vector.extract_strided_slice %159 {offsets = [0, 256], sizes = [8, 128], strides = [1, 1]} : vector<8x384xf32> to vector<8x128xf32>
    %178 = arith.mulf %167, %177 : vector<8x128xf32>
    %179 = arith.addf %176, %178 : vector<8x128xf32>
    %180 = math.tanh %179 : vector<8x128xf32>
    %cst_65 = arith.constant 1.000000e+00 : f32
    %181 = vector.broadcast %cst_65 : f32 to vector<8x128xf32>
    %182 = arith.subf %181, %175 : vector<8x128xf32>
    %183 = arith.mulf %182, %180 : vector<8x128xf32>
    %184 = arith.mulf %175, %140 : vector<8x128xf32>
    %185 = arith.addf %183, %184 : vector<8x128xf32>
    %cst_66 = arith.constant dense<0.000000e+00> : vector<8x128xf32>
    %186 = tpu.matmul %185, %9, %cst_66 {dimension_numbers = #tpu.dot_dimension_numbers<[1], [0], [0], [1], [0, 0, 1, 1], [], []>} : vector<8x128xf32>, vector<128x128xf32>, vector<8x128xf32> -> vector<8x128xf32>
    %187 = vector.broadcast %10 : vector<1x128xf32> to vector<8x128xf32>
    %188 = arith.addf %186, %187 : vector<8x128xf32>
    %c3_67 = arith.constant 3 : index
    %c0_68 = arith.constant 0 : index
    %c0_69 = arith.constant 0 : index
    %189 = vector.load %arg12[%c3_67, %c0_68, %c0_69] : memref<8x8x128xf32, #tpu.memory_space<vmem>>, vector<1x8x128xf32>
    %190 = vector.shape_cast %189 : vector<1x8x128xf32> to vector<8x128xf32>
    %191 = vector.shape_cast %188 : vector<8x128xf32> to vector<1x8x128xf32>
    tpu.vector_store %arg12[%c3_67, %c0_68, %c0_69], %191 {strides = array<i32>} : memref<8x8x128xf32, #tpu.memory_space<vmem>>, vector<1x8x128xf32>,
    %c4 = arith.constant 4 : index
    %c0_70 = arith.constant 0 : index
    %c0_71 = arith.constant 0 : index
    %192 = vector.load %arg2[%c4, %c0_70, %c0_71] : memref<8x8x32xf32, #tpu.memory_space<vmem>>, vector<1x8x32xf32>
    %193 = vector.shape_cast %192 : vector<1x8x32xf32> to vector<8x32xf32>
    %cst_72 = arith.constant dense<0.000000e+00> : vector<8x128xf32>
    %194 = tpu.matmul %193, %3, %cst_72 {dimension_numbers = #tpu.dot_dimension_numbers<[1], [0], [0], [1], [0, 0, 1, 1], [], []>} : vector<8x32xf32>, vector<32x128xf32>, vector<8x128xf32> -> vector<8x128xf32>
    %195 = vector.broadcast %4 : vector<1x128xf32> to vector<8x128xf32>
    %196 = arith.addf %194, %195 : vector<8x128xf32>
    %cst_73 = arith.constant 0.000000e+00 : f32
    %197 = vector.broadcast %cst_73 : f32 to vector<8x128xf32>
    %198 = arith.maximumf %196, %197 : vector<8x128xf32>
    %cst_74 = arith.constant dense<0.000000e+00> : vector<8x384xf32>
    %199 = tpu.matmul %198, %5, %cst_74 {dimension_numbers = #tpu.dot_dimension_numbers<[1], [0], [0], [1], [0, 0, 1, 1], [], []>} : vector<8x128xf32>, vector<128x384xf32>, vector<8x384xf32> -> vector<8x384xf32>
    %200 = vector.broadcast %7 : vector<1x384xf32> to vector<8x384xf32>
    %201 = arith.addf %199, %200 : vector<8x384xf32>
    %cst_75 = arith.constant dense<0.000000e+00> : vector<8x384xf32>
    %202 = tpu.matmul %185, %6, %cst_75 {dimension_numbers = #tpu.dot_dimension_numbers<[1], [0], [0], [1], [0, 0, 1, 1], [], []>} : vector<8x128xf32>, vector<128x384xf32>, vector<8x384xf32> -> vector<8x384xf32>
    %203 = vector.broadcast %8 : vector<1x384xf32> to vector<8x384xf32>
    %204 = arith.addf %202, %203 : vector<8x384xf32>
    %205 = vector.extract_strided_slice %201 {offsets = [0, 0], sizes = [8, 128], strides = [1, 1]} : vector<8x384xf32> to vector<8x128xf32>
    %206 = vector.extract_strided_slice %204 {offsets = [0, 0], sizes = [8, 128], strides = [1, 1]} : vector<8x384xf32> to vector<8x128xf32>
    %207 = arith.addf %205, %206 : vector<8x128xf32>
    %208 = arith.negf %207 : vector<8x128xf32>
    %209 = math.exp %208 : vector<8x128xf32>
    %cst_76 = arith.constant 1.000000e+00 : f32
    %210 = vector.broadcast %cst_76 : f32 to vector<8x128xf32>
    %211 = arith.addf %210, %209 : vector<8x128xf32>
    %212 = arith.divf %210, %211 : vector<8x128xf32>
    %213 = vector.extract_strided_slice %201 {offsets = [0, 128], sizes = [8, 128], strides = [1, 1]} : vector<8x384xf32> to vector<8x128xf32>
    %214 = vector.extract_strided_slice %204 {offsets = [0, 128], sizes = [8, 128], strides = [1, 1]} : vector<8x384xf32> to vector<8x128xf32>
    %215 = arith.addf %213, %214 : vector<8x128xf32>
    %216 = arith.negf %215 : vector<8x128xf32>
    %217 = math.exp %216 : vector<8x128xf32>
    %cst_77 = arith.constant 1.000000e+00 : f32
    %218 = vector.broadcast %cst_77 : f32 to vector<8x128xf32>
    %219 = arith.addf %218, %217 : vector<8x128xf32>
    %220 = arith.divf %218, %219 : vector<8x128xf32>
    %221 = vector.extract_strided_slice %201 {offsets = [0, 256], sizes = [8, 128], strides = [1, 1]} : vector<8x384xf32> to vector<8x128xf32>
    %222 = vector.extract_strided_slice %204 {offsets = [0, 256], sizes = [8, 128], strides = [1, 1]} : vector<8x384xf32> to vector<8x128xf32>
    %223 = arith.mulf %212, %222 : vector<8x128xf32>
    %224 = arith.addf %221, %223 : vector<8x128xf32>
    %225 = math.tanh %224 : vector<8x128xf32>
    %cst_78 = arith.constant 1.000000e+00 : f32
    %226 = vector.broadcast %cst_78 : f32 to vector<8x128xf32>
    %227 = arith.subf %226, %220 : vector<8x128xf32>
    %228 = arith.mulf %227, %225 : vector<8x128xf32>
    %229 = arith.mulf %220, %185 : vector<8x128xf32>
    %230 = arith.addf %228, %229 : vector<8x128xf32>
    %cst_79 = arith.constant dense<0.000000e+00> : vector<8x128xf32>
    %231 = tpu.matmul %230, %9, %cst_79 {dimension_numbers = #tpu.dot_dimension_numbers<[1], [0], [0], [1], [0, 0, 1, 1], [], []>} : vector<8x128xf32>, vector<128x128xf32>, vector<8x128xf32> -> vector<8x128xf32>
    %232 = vector.broadcast %10 : vector<1x128xf32> to vector<8x128xf32>
    %233 = arith.addf %231, %232 : vector<8x128xf32>
    %c4_80 = arith.constant 4 : index
    %c0_81 = arith.constant 0 : index
    %c0_82 = arith.constant 0 : index
    %234 = vector.load %arg12[%c4_80, %c0_81, %c0_82] : memref<8x8x128xf32, #tpu.memory_space<vmem>>, vector<1x8x128xf32>
    %235 = vector.shape_cast %234 : vector<1x8x128xf32> to vector<8x128xf32>
    %236 = vector.shape_cast %233 : vector<8x128xf32> to vector<1x8x128xf32>
    tpu.vector_store %arg12[%c4_80, %c0_81, %c0_82], %236 {strides = array<i32>} : memref<8x8x128xf32, #tpu.memory_space<vmem>>, vector<1x8x128xf32>,
    %c5 = arith.constant 5 : index
    %c0_83 = arith.constant 0 : index
    %c0_84 = arith.constant 0 : index
    %237 = vector.load %arg2[%c5, %c0_83, %c0_84] : memref<8x8x32xf32, #tpu.memory_space<vmem>>, vector<1x8x32xf32>
    %238 = vector.shape_cast %237 : vector<1x8x32xf32> to vector<8x32xf32>
    %cst_85 = arith.constant dense<0.000000e+00> : vector<8x128xf32>
    %239 = tpu.matmul %238, %3, %cst_85 {dimension_numbers = #tpu.dot_dimension_numbers<[1], [0], [0], [1], [0, 0, 1, 1], [], []>} : vector<8x32xf32>, vector<32x128xf32>, vector<8x128xf32> -> vector<8x128xf32>
    %240 = vector.broadcast %4 : vector<1x128xf32> to vector<8x128xf32>
    %241 = arith.addf %239, %240 : vector<8x128xf32>
    %cst_86 = arith.constant 0.000000e+00 : f32
    %242 = vector.broadcast %cst_86 : f32 to vector<8x128xf32>
    %243 = arith.maximumf %241, %242 : vector<8x128xf32>
    %cst_87 = arith.constant dense<0.000000e+00> : vector<8x384xf32>
    %244 = tpu.matmul %243, %5, %cst_87 {dimension_numbers = #tpu.dot_dimension_numbers<[1], [0], [0], [1], [0, 0, 1, 1], [], []>} : vector<8x128xf32>, vector<128x384xf32>, vector<8x384xf32> -> vector<8x384xf32>
    %245 = vector.broadcast %7 : vector<1x384xf32> to vector<8x384xf32>
    %246 = arith.addf %244, %245 : vector<8x384xf32>
    %cst_88 = arith.constant dense<0.000000e+00> : vector<8x384xf32>
    %247 = tpu.matmul %230, %6, %cst_88 {dimension_numbers = #tpu.dot_dimension_numbers<[1], [0], [0], [1], [0, 0, 1, 1], [], []>} : vector<8x128xf32>, vector<128x384xf32>, vector<8x384xf32> -> vector<8x384xf32>
    %248 = vector.broadcast %8 : vector<1x384xf32> to vector<8x384xf32>
    %249 = arith.addf %247, %248 : vector<8x384xf32>
    %250 = vector.extract_strided_slice %246 {offsets = [0, 0], sizes = [8, 128], strides = [1, 1]} : vector<8x384xf32> to vector<8x128xf32>
    %251 = vector.extract_strided_slice %249 {offsets = [0, 0], sizes = [8, 128], strides = [1, 1]} : vector<8x384xf32> to vector<8x128xf32>
    %252 = arith.addf %250, %251 : vector<8x128xf32>
    %253 = arith.negf %252 : vector<8x128xf32>
    %254 = math.exp %253 : vector<8x128xf32>
    %cst_89 = arith.constant 1.000000e+00 : f32
    %255 = vector.broadcast %cst_89 : f32 to vector<8x128xf32>
    %256 = arith.addf %255, %254 : vector<8x128xf32>
    %257 = arith.divf %255, %256 : vector<8x128xf32>
    %258 = vector.extract_strided_slice %246 {offsets = [0, 128], sizes = [8, 128], strides = [1, 1]} : vector<8x384xf32> to vector<8x128xf32>
    %259 = vector.extract_strided_slice %249 {offsets = [0, 128], sizes = [8, 128], strides = [1, 1]} : vector<8x384xf32> to vector<8x128xf32>
    %260 = arith.addf %258, %259 : vector<8x128xf32>
    %261 = arith.negf %260 : vector<8x128xf32>
    %262 = math.exp %261 : vector<8x128xf32>
    %cst_90 = arith.constant 1.000000e+00 : f32
    %263 = vector.broadcast %cst_90 : f32 to vector<8x128xf32>
    %264 = arith.addf %263, %262 : vector<8x128xf32>
    %265 = arith.divf %263, %264 : vector<8x128xf32>
    %266 = vector.extract_strided_slice %246 {offsets = [0, 256], sizes = [8, 128], strides = [1, 1]} : vector<8x384xf32> to vector<8x128xf32>
    %267 = vector.extract_strided_slice %249 {offsets = [0, 256], sizes = [8, 128], strides = [1, 1]} : vector<8x384xf32> to vector<8x128xf32>
    %268 = arith.mulf %257, %267 : vector<8x128xf32>
    %269 = arith.addf %266, %268 : vector<8x128xf32>
    %270 = math.tanh %269 : vector<8x128xf32>
    %cst_91 = arith.constant 1.000000e+00 : f32
    %271 = vector.broadcast %cst_91 : f32 to vector<8x128xf32>
    %272 = arith.subf %271, %265 : vector<8x128xf32>
    %273 = arith.mulf %272, %270 : vector<8x128xf32>
    %274 = arith.mulf %265, %230 : vector<8x128xf32>
    %275 = arith.addf %273, %274 : vector<8x128xf32>
    %cst_92 = arith.constant dense<0.000000e+00> : vector<8x128xf32>
    %276 = tpu.matmul %275, %9, %cst_92 {dimension_numbers = #tpu.dot_dimension_numbers<[1], [0], [0], [1], [0, 0, 1, 1], [], []>} : vector<8x128xf32>, vector<128x128xf32>, vector<8x128xf32> -> vector<8x128xf32>
    %277 = vector.broadcast %10 : vector<1x128xf32> to vector<8x128xf32>
    %278 = arith.addf %276, %277 : vector<8x128xf32>
    %c5_93 = arith.constant 5 : index
    %c0_94 = arith.constant 0 : index
    %c0_95 = arith.constant 0 : index
    %279 = vector.load %arg12[%c5_93, %c0_94, %c0_95] : memref<8x8x128xf32, #tpu.memory_space<vmem>>, vector<1x8x128xf32>
    %280 = vector.shape_cast %279 : vector<1x8x128xf32> to vector<8x128xf32>
    %281 = vector.shape_cast %278 : vector<8x128xf32> to vector<1x8x128xf32>
    tpu.vector_store %arg12[%c5_93, %c0_94, %c0_95], %281 {strides = array<i32>} : memref<8x8x128xf32, #tpu.memory_space<vmem>>, vector<1x8x128xf32>,
    %c6 = arith.constant 6 : index
    %c0_96 = arith.constant 0 : index
    %c0_97 = arith.constant 0 : index
    %282 = vector.load %arg2[%c6, %c0_96, %c0_97] : memref<8x8x32xf32, #tpu.memory_space<vmem>>, vector<1x8x32xf32>
    %283 = vector.shape_cast %282 : vector<1x8x32xf32> to vector<8x32xf32>
    %cst_98 = arith.constant dense<0.000000e+00> : vector<8x128xf32>
    %284 = tpu.matmul %283, %3, %cst_98 {dimension_numbers = #tpu.dot_dimension_numbers<[1], [0], [0], [1], [0, 0, 1, 1], [], []>} : vector<8x32xf32>, vector<32x128xf32>, vector<8x128xf32> -> vector<8x128xf32>
    %285 = vector.broadcast %4 : vector<1x128xf32> to vector<8x128xf32>
    %286 = arith.addf %284, %285 : vector<8x128xf32>
    %cst_99 = arith.constant 0.000000e+00 : f32
    %287 = vector.broadcast %cst_99 : f32 to vector<8x128xf32>
    %288 = arith.maximumf %286, %287 : vector<8x128xf32>
    %cst_100 = arith.constant dense<0.000000e+00> : vector<8x384xf32>
    %289 = tpu.matmul %288, %5, %cst_100 {dimension_numbers = #tpu.dot_dimension_numbers<[1], [0], [0], [1], [0, 0, 1, 1], [], []>} : vector<8x128xf32>, vector<128x384xf32>, vector<8x384xf32> -> vector<8x384xf32>
    %290 = vector.broadcast %7 : vector<1x384xf32> to vector<8x384xf32>
    %291 = arith.addf %289, %290 : vector<8x384xf32>
    %cst_101 = arith.constant dense<0.000000e+00> : vector<8x384xf32>
    %292 = tpu.matmul %275, %6, %cst_101 {dimension_numbers = #tpu.dot_dimension_numbers<[1], [0], [0], [1], [0, 0, 1, 1], [], []>} : vector<8x128xf32>, vector<128x384xf32>, vector<8x384xf32> -> vector<8x384xf32>
    %293 = vector.broadcast %8 : vector<1x384xf32> to vector<8x384xf32>
    %294 = arith.addf %292, %293 : vector<8x384xf32>
    %295 = vector.extract_strided_slice %291 {offsets = [0, 0], sizes = [8, 128], strides = [1, 1]} : vector<8x384xf32> to vector<8x128xf32>
    %296 = vector.extract_strided_slice %294 {offsets = [0, 0], sizes = [8, 128], strides = [1, 1]} : vector<8x384xf32> to vector<8x128xf32>
    %297 = arith.addf %295, %296 : vector<8x128xf32>
    %298 = arith.negf %297 : vector<8x128xf32>
    %299 = math.exp %298 : vector<8x128xf32>
    %cst_102 = arith.constant 1.000000e+00 : f32
    %300 = vector.broadcast %cst_102 : f32 to vector<8x128xf32>
    %301 = arith.addf %300, %299 : vector<8x128xf32>
    %302 = arith.divf %300, %301 : vector<8x128xf32>
    %303 = vector.extract_strided_slice %291 {offsets = [0, 128], sizes = [8, 128], strides = [1, 1]} : vector<8x384xf32> to vector<8x128xf32>
    %304 = vector.extract_strided_slice %294 {offsets = [0, 128], sizes = [8, 128], strides = [1, 1]} : vector<8x384xf32> to vector<8x128xf32>
    %305 = arith.addf %303, %304 : vector<8x128xf32>
    %306 = arith.negf %305 : vector<8x128xf32>
    %307 = math.exp %306 : vector<8x128xf32>
    %cst_103 = arith.constant 1.000000e+00 : f32
    %308 = vector.broadcast %cst_103 : f32 to vector<8x128xf32>
    %309 = arith.addf %308, %307 : vector<8x128xf32>
    %310 = arith.divf %308, %309 : vector<8x128xf32>
    %311 = vector.extract_strided_slice %291 {offsets = [0, 256], sizes = [8, 128], strides = [1, 1]} : vector<8x384xf32> to vector<8x128xf32>
    %312 = vector.extract_strided_slice %294 {offsets = [0, 256], sizes = [8, 128], strides = [1, 1]} : vector<8x384xf32> to vector<8x128xf32>
    %313 = arith.mulf %302, %312 : vector<8x128xf32>
    %314 = arith.addf %311, %313 : vector<8x128xf32>
    %315 = math.tanh %314 : vector<8x128xf32>
    %cst_104 = arith.constant 1.000000e+00 : f32
    %316 = vector.broadcast %cst_104 : f32 to vector<8x128xf32>
    %317 = arith.subf %316, %310 : vector<8x128xf32>
    %318 = arith.mulf %317, %315 : vector<8x128xf32>
    %319 = arith.mulf %310, %275 : vector<8x128xf32>
    %320 = arith.addf %318, %319 : vector<8x128xf32>
    %cst_105 = arith.constant dense<0.000000e+00> : vector<8x128xf32>
    %321 = tpu.matmul %320, %9, %cst_105 {dimension_numbers = #tpu.dot_dimension_numbers<[1], [0], [0], [1], [0, 0, 1, 1], [], []>} : vector<8x128xf32>, vector<128x128xf32>, vector<8x128xf32> -> vector<8x128xf32>
    %322 = vector.broadcast %10 : vector<1x128xf32> to vector<8x128xf32>
    %323 = arith.addf %321, %322 : vector<8x128xf32>
    %c6_106 = arith.constant 6 : index
    %c0_107 = arith.constant 0 : index
    %c0_108 = arith.constant 0 : index
    %324 = vector.load %arg12[%c6_106, %c0_107, %c0_108] : memref<8x8x128xf32, #tpu.memory_space<vmem>>, vector<1x8x128xf32>
    %325 = vector.shape_cast %324 : vector<1x8x128xf32> to vector<8x128xf32>
    %326 = vector.shape_cast %323 : vector<8x128xf32> to vector<1x8x128xf32>
    tpu.vector_store %arg12[%c6_106, %c0_107, %c0_108], %326 {strides = array<i32>} : memref<8x8x128xf32, #tpu.memory_space<vmem>>, vector<1x8x128xf32>,
    %c7 = arith.constant 7 : index
    %c0_109 = arith.constant 0 : index
    %c0_110 = arith.constant 0 : index
    %327 = vector.load %arg2[%c7, %c0_109, %c0_110] : memref<8x8x32xf32, #tpu.memory_space<vmem>>, vector<1x8x32xf32>
    %328 = vector.shape_cast %327 : vector<1x8x32xf32> to vector<8x32xf32>
    %cst_111 = arith.constant dense<0.000000e+00> : vector<8x128xf32>
    %329 = tpu.matmul %328, %3, %cst_111 {dimension_numbers = #tpu.dot_dimension_numbers<[1], [0], [0], [1], [0, 0, 1, 1], [], []>} : vector<8x32xf32>, vector<32x128xf32>, vector<8x128xf32> -> vector<8x128xf32>
    %330 = vector.broadcast %4 : vector<1x128xf32> to vector<8x128xf32>
    %331 = arith.addf %329, %330 : vector<8x128xf32>
    %cst_112 = arith.constant 0.000000e+00 : f32
    %332 = vector.broadcast %cst_112 : f32 to vector<8x128xf32>
    %333 = arith.maximumf %331, %332 : vector<8x128xf32>
    %cst_113 = arith.constant dense<0.000000e+00> : vector<8x384xf32>
    %334 = tpu.matmul %333, %5, %cst_113 {dimension_numbers = #tpu.dot_dimension_numbers<[1], [0], [0], [1], [0, 0, 1, 1], [], []>} : vector<8x128xf32>, vector<128x384xf32>, vector<8x384xf32> -> vector<8x384xf32>
    %335 = vector.broadcast %7 : vector<1x384xf32> to vector<8x384xf32>
    %336 = arith.addf %334, %335 : vector<8x384xf32>
    %cst_114 = arith.constant dense<0.000000e+00> : vector<8x384xf32>
    %337 = tpu.matmul %320, %6, %cst_114 {dimension_numbers = #tpu.dot_dimension_numbers<[1], [0], [0], [1], [0, 0, 1, 1], [], []>} : vector<8x128xf32>, vector<128x384xf32>, vector<8x384xf32> -> vector<8x384xf32>
    %338 = vector.broadcast %8 : vector<1x384xf32> to vector<8x384xf32>
    %339 = arith.addf %337, %338 : vector<8x384xf32>
    %340 = vector.extract_strided_slice %336 {offsets = [0, 0], sizes = [8, 128], strides = [1, 1]} : vector<8x384xf32> to vector<8x128xf32>
    %341 = vector.extract_strided_slice %339 {offsets = [0, 0], sizes = [8, 128], strides = [1, 1]} : vector<8x384xf32> to vector<8x128xf32>
    %342 = arith.addf %340, %341 : vector<8x128xf32>
    %343 = arith.negf %342 : vector<8x128xf32>
    %344 = math.exp %343 : vector<8x128xf32>
    %cst_115 = arith.constant 1.000000e+00 : f32
    %345 = vector.broadcast %cst_115 : f32 to vector<8x128xf32>
    %346 = arith.addf %345, %344 : vector<8x128xf32>
    %347 = arith.divf %345, %346 : vector<8x128xf32>
    %348 = vector.extract_strided_slice %336 {offsets = [0, 128], sizes = [8, 128], strides = [1, 1]} : vector<8x384xf32> to vector<8x128xf32>
    %349 = vector.extract_strided_slice %339 {offsets = [0, 128], sizes = [8, 128], strides = [1, 1]} : vector<8x384xf32> to vector<8x128xf32>
    %350 = arith.addf %348, %349 : vector<8x128xf32>
    %351 = arith.negf %350 : vector<8x128xf32>
    %352 = math.exp %351 : vector<8x128xf32>
    %cst_116 = arith.constant 1.000000e+00 : f32
    %353 = vector.broadcast %cst_116 : f32 to vector<8x128xf32>
    %354 = arith.addf %353, %352 : vector<8x128xf32>
    %355 = arith.divf %353, %354 : vector<8x128xf32>
    %356 = vector.extract_strided_slice %336 {offsets = [0, 256], sizes = [8, 128], strides = [1, 1]} : vector<8x384xf32> to vector<8x128xf32>
    %357 = vector.extract_strided_slice %339 {offsets = [0, 256], sizes = [8, 128], strides = [1, 1]} : vector<8x384xf32> to vector<8x128xf32>
    %358 = arith.mulf %347, %357 : vector<8x128xf32>
    %359 = arith.addf %356, %358 : vector<8x128xf32>
    %360 = math.tanh %359 : vector<8x128xf32>
    %cst_117 = arith.constant 1.000000e+00 : f32
    %361 = vector.broadcast %cst_117 : f32 to vector<8x128xf32>
    %362 = arith.subf %361, %355 : vector<8x128xf32>
    %363 = arith.mulf %362, %360 : vector<8x128xf32>
    %364 = arith.mulf %355, %320 : vector<8x128xf32>
    %365 = arith.addf %363, %364 : vector<8x128xf32>
    %cst_118 = arith.constant dense<0.000000e+00> : vector<8x128xf32>
    %366 = tpu.matmul %365, %9, %cst_118 {dimension_numbers = #tpu.dot_dimension_numbers<[1], [0], [0], [1], [0, 0, 1, 1], [], []>} : vector<8x128xf32>, vector<128x128xf32>, vector<8x128xf32> -> vector<8x128xf32>
    %367 = vector.broadcast %10 : vector<1x128xf32> to vector<8x128xf32>
    %368 = arith.addf %366, %367 : vector<8x128xf32>
    %c7_119 = arith.constant 7 : index
    %c0_120 = arith.constant 0 : index
    %c0_121 = arith.constant 0 : index
    %369 = vector.load %arg12[%c7_119, %c0_120, %c0_121] : memref<8x8x128xf32, #tpu.memory_space<vmem>>, vector<1x8x128xf32>
    %370 = vector.shape_cast %369 : vector<1x8x128xf32> to vector<8x128xf32>
    %371 = vector.shape_cast %368 : vector<8x128xf32> to vector<1x8x128xf32>
    tpu.vector_store %arg12[%c7_119, %c0_120, %c0_121], %371 {strides = array<i32>} : memref<8x8x128xf32, #tpu.memory_space<vmem>>, vector<1x8x128xf32>,
    %c0_122 = arith.constant 0 : index
    %c0_123 = arith.constant 0 : index
    %372 = vector.load %arg13[%c0_122, %c0_123] : memref<8x128xf32, #tpu.memory_space<vmem>>, vector<8x128xf32>
    tpu.vector_store %arg13[%c0_122, %c0_123], %365 {strides = array<i32>} : memref<8x128xf32, #tpu.memory_space<vmem>>, vector<8x128xf32>,
    return
  }
  func.func @transform_0(%arg0: i32, %arg1: i32) -> (i32, i32, i32) {
    %c0_i32 = arith.constant 0 : i32
    %c0_i32_0 = arith.constant 0 : i32
    return %arg1, %arg0, %c0_i32 : i32, i32, i32
  }
  func.func @transform_1(%arg0: i32, %arg1: i32) -> (i32, i32) {
    %c0_i32 = arith.constant 0 : i32
    %c0_i32_0 = arith.constant 0 : i32
    return %arg0, %c0_i32 : i32, i32
  }
  func.func @transform_2(%arg0: i32, %arg1: i32) -> (i32, i32) {
    %c0_i32 = arith.constant 0 : i32
    %c0_i32_0 = arith.constant 0 : i32
    %c0_i32_1 = arith.constant 0 : i32
    return %c0_i32, %c0_i32_0 : i32, i32
  }
  func.func @transform_3(%arg0: i32, %arg1: i32) -> (i32, i32) {
    %c0_i32 = arith.constant 0 : i32
    %c0_i32_0 = arith.constant 0 : i32
    %c0_i32_1 = arith.constant 0 : i32
    return %c0_i32, %c0_i32_0 : i32, i32
  }
  func.func @transform_4(%arg0: i32, %arg1: i32) -> (i32, i32) {
    %c0_i32 = arith.constant 0 : i32
    %c0_i32_0 = arith.constant 0 : i32
    %c0_i32_1 = arith.constant 0 : i32
    return %c0_i32, %c0_i32_0 : i32, i32
  }
  func.func @transform_5(%arg0: i32, %arg1: i32) -> (i32, i32) {
    %c0_i32 = arith.constant 0 : i32
    %c0_i32_0 = arith.constant 0 : i32
    %c0_i32_1 = arith.constant 0 : i32
    return %c0_i32, %c0_i32_0 : i32, i32
  }
  func.func @transform_6(%arg0: i32, %arg1: i32) -> (i32, i32) {
    %c0_i32 = arith.constant 0 : i32
    %c0_i32_0 = arith.constant 0 : i32
    %c0_i32_1 = arith.constant 0 : i32
    return %c0_i32, %c0_i32_0 : i32, i32
  }
  func.func @transform_7(%arg0: i32, %arg1: i32) -> (i32, i32) {
    %c0_i32 = arith.constant 0 : i32
    %c0_i32_0 = arith.constant 0 : i32
    %c0_i32_1 = arith.constant 0 : i32
    return %c0_i32, %c0_i32_0 : i32, i32
  }
  func.func @transform_8(%arg0: i32, %arg1: i32) -> (i32, i32) {
    %c0_i32 = arith.constant 0 : i32
    %c0_i32_0 = arith.constant 0 : i32
    %c0_i32_1 = arith.constant 0 : i32
    return %c0_i32, %c0_i32_0 : i32, i32
  }
  func.func @transform_9(%arg0: i32, %arg1: i32) -> (i32, i32) {
    %c0_i32 = arith.constant 0 : i32
    %c0_i32_0 = arith.constant 0 : i32
    %c0_i32_1 = arith.constant 0 : i32
    return %c0_i32, %c0_i32_0 : i32, i32
  }
  func.func @transform_10(%arg0: i32, %arg1: i32) -> (i32, i32, i32) {
    %c0_i32 = arith.constant 0 : i32
    %c0_i32_0 = arith.constant 0 : i32
    return %arg1, %arg0, %c0_i32 : i32, i32, i32
  }
  func.func @transform_11(%arg0: i32, %arg1: i32) -> (i32, i32) {
    %c0_i32 = arith.constant 0 : i32
    %c0_i32_0 = arith.constant 0 : i32
    return %arg0, %c0_i32 : i32, i32
  }
}

</mosaic_0001>

<llo_original>
// kernel: tpu_custom_call.1
$region0: #{tpu_custom_call.1}
  #allocation0 [shape = 'u32[]', space=smem, size = 0x4, offset = 0x4, fixed_abs, tag = 'smem constant byte address 0x4 - core index']
  #allocation1 [shape = 'u32[144,128]{1,0:T(1,128)}', space=vmem, size = 0x12000, scoped, tag = 'internal scratch']
  %s0 = inlined_call_operand.hbm [shape: f32[8,8,32], index: 0, kind: input, shape index: {}]
  %s1 = inlined_call_operand.hbm [shape: f32[8,128], index: 1, kind: input, shape index: {}]
  %s2 = inlined_call_operand.hbm [shape: f32[32,128], index: 2, kind: input, shape index: {}]
  %s3 = inlined_call_operand.vmem [shape: f32[1,128], index: 3, kind: input, shape index: {}]
  %s4 = inlined_call_operand.hbm [shape: f32[128,384], index: 4, kind: input, shape index: {}]
  %s5 = inlined_call_operand.hbm [shape: f32[128,384], index: 5, kind: input, shape index: {}]
  %s6 = inlined_call_operand.vmem [shape: f32[1,384], index: 6, kind: input, shape index: {}]
  %s7 = inlined_call_operand.vmem [shape: f32[1,384], index: 7, kind: input, shape index: {}]
  %s8 = inlined_call_operand.hbm [shape: f32[128,128], index: 8, kind: input, shape index: {}]
  %s9 = inlined_call_operand.vmem [shape: f32[1,128], index: 9, kind: input, shape index: {}]
  %s10 = inlined_call_operand.hbm [shape: f32[8,8,128], index: 10, kind: output, shape index: {0}]
  %s11 = inlined_call_operand.hbm [shape: f32[8,128], index: 11, kind: output, shape index: {1}]
  %12 = xla_tuple %s10, %s11
  %s13 = sld [smem:[#allocation0]]
  $region86: #{tpu_custom_call.1} parent=0
    _
  %s15 = ssub.s32 1, %s13
  %s16 = scalar_select 0, %s15, %s13
  $region1: #{tpu_custom_call.1} parent=0
    #allocation2 [shape = 'u8[32768]{0}', space=vmem, size = 0x8000, scoped, tag = 'input window, operand 0, single buffered']
    #allocation3 [shape = 's32[1]{0}', space=sflag, size = 0x4, scoped, tag = 'scoped memory for tpu_custom_call.1']
    #allocation4 [shape = 's32[1]{0}', space=sflag, size = 0x4, scoped, tag = 'scoped memory for tpu_custom_call.1']
    #allocation5 [shape = 'u8[4096]{0}', space=vmem, size = 0x1000, scoped, tag = 'input window, operand 1, single buffered']
    #allocation6 [shape = 's32[1]{0}', space=sflag, size = 0x4, scoped, tag = 'scoped memory for tpu_custom_call.1']
    #allocation7 [shape = 'u8[16384]{0}', space=vmem, size = 0x4000, scoped, tag = 'input window, operand 2, single buffered']
    #allocation8 [shape = 'u8[196608]{0}', space=vmem, size = 0x30000, scoped, tag = 'input window, operand 4, single buffered']
    #allocation9 [shape = 's32[1]{0}', space=sflag, size = 0x4, scoped, tag = 'scoped memory for tpu_custom_call.1']
    #allocation10 [shape = 'u8[196608]{0}', space=vmem, size = 0x30000, scoped, tag = 'input window, operand 5, single buffered']
    #allocation11 [shape = 'u8[65536]{0}', space=vmem, size = 0x10000, scoped, tag = 'input window, operand 8, single buffered']
    #allocation12 [shape = 's32[1]{0}', space=sflag, size = 0x4, scoped, tag = 'scoped memory for tpu_custom_call.1']
    #allocation13 [shape = 'u8[32768]{0}', space=vmem, size = 0x8000, scoped, tag = 'output window, operand 0, single buffered']
    #allocation14 [shape = 'u8[4096]{0}', space=vmem, size = 0x1000, scoped, tag = 'output window, operand 1, single buffered']
    #allocation15 [shape = 's32[1]{0}', space=sflag, size = 0x4, scoped, tag = 'scoped memory for tpu_custom_call.1']
    %17 = vsyncpa [#allocation3], 0
    %18 = vsyncpa [#allocation6], 0
    %19 = vsyncpa [#allocation9], 0
    %20 = vsyncpa [#allocation12], 0
    %21 = vsyncpa [#allocation4], 0
    %22 = vsyncpa [#allocation15], 0
    // Predicated region
    $region2: #{tpu_custom_call.1} parent=1 // pred_check
      _
    $region3: #{tpu_custom_call.1} parent=1 // pred_check_branch
      %24 = sbr.rel (0) target = $region5
    $region4: #{tpu_custom_call.1} parent=1 // pred_region
      %s26 = ssub.s32 1024, 1024
      %27 = vsyncadd [#allocation3], %s26
      %s28 = sshll.u32 [#allocation2], 4
      %s29 = int_to_ptr.vmem [resolvable:$true] %s28
      %34 = dma.hbm_to_vmem [thread:$0]  %s0, 1024, %s29, [#allocation3], 128, 128, 8
    $region5: #{tpu_custom_call.1} parent=1 // pred_fallthru
      _
    // Predicated region
    $region6: #{tpu_custom_call.1} parent=1 // pred_check
      _
    $region7: #{tpu_custom_call.1} parent=1 // pred_check_branch
      %36 = sbr.rel (0) target = $region9
    $region8: #{tpu_custom_call.1} parent=1 // pred_region
      %s38 = ssub.s32 128, 128
      %39 = vsyncadd [#allocation6], %s38
      %s41 = sshll.u32 [#allocation5], 4
      %s42 = int_to_ptr.vmem [resolvable:$true] %s41
      %44 = dma.hbm_to_vmem [thread:$0]  %s1, 128, %s42, [#allocation6]
    $region9: #{tpu_custom_call.1} parent=1 // pred_fallthru
      _
    // Predicated region
    $region10: #{tpu_custom_call.1} parent=1 // pred_check
      _
    $region11: #{tpu_custom_call.1} parent=1 // pred_check_branch
      %46 = sbr.rel (0) target = $region13
    $region12: #{tpu_custom_call.1} parent=1 // pred_region
      %s48 = ssub.s32 512, 512
      %49 = vsyncadd [#allocation6], %s48
      %s50 = sshll.u32 [#allocation7], 4
      %s51 = int_to_ptr.vmem [resolvable:$true] %s50
      %56 = dma.hbm_to_vmem [thread:$0]  %s2, 512, %s51, [#allocation6], 128, 128, 8
    $region13: #{tpu_custom_call.1} parent=1 // pred_fallthru
      _
    // Predicated region
    $region14: #{tpu_custom_call.1} parent=1 // pred_check
      _
    $region15: #{tpu_custom_call.1} parent=1 // pred_check_branch
      %58 = sbr.rel (0) target = $region17
    $region16: #{tpu_custom_call.1} parent=1 // pred_region
      _
    $region17: #{tpu_custom_call.1} parent=1 // pred_fallthru
      _
    // Predicated region
    $region18: #{tpu_custom_call.1} parent=1 // pred_check
      _
    $region19: #{tpu_custom_call.1} parent=1 // pred_check_branch
      %60 = sbr.rel (0) target = $region21
    $region20: #{tpu_custom_call.1} parent=1 // pred_region
      %s62 = ssub.s32 6144, 6144
      %63 = vsyncadd [#allocation9], %s62
      %s64 = sshll.u32 [#allocation8], 4
      %s65 = int_to_ptr.vmem [resolvable:$true] %s64
      %70 = dma.hbm_to_vmem [thread:$0]  %s4, 6144, %s65, [#allocation9], 384, 384, 24
    $region21: #{tpu_custom_call.1} parent=1 // pred_fallthru
      _
    // Predicated region
    $region22: #{tpu_custom_call.1} parent=1 // pred_check
      _
    $region23: #{tpu_custom_call.1} parent=1 // pred_check_branch
      %72 = sbr.rel (0) target = $region25
    $region24: #{tpu_custom_call.1} parent=1 // pred_region
      %s74 = ssub.s32 6144, 6144
      %75 = vsyncadd [#allocation9], %s74
      %s76 = sshll.u32 [#allocation10], 4
      %s77 = int_to_ptr.vmem [resolvable:$true] %s76
      %82 = dma.hbm_to_vmem [thread:$0]  %s5, 6144, %s77, [#allocation9], 384, 384, 24
    $region25: #{tpu_custom_call.1} parent=1 // pred_fallthru
      _
    // Predicated region
    $region26: #{tpu_custom_call.1} parent=1 // pred_check
      _
    $region27: #{tpu_custom_call.1} parent=1 // pred_check_branch
      %84 = sbr.rel (0) target = $region29
    $region28: #{tpu_custom_call.1} parent=1 // pred_region
      _
    $region29: #{tpu_custom_call.1} parent=1 // pred_fallthru
      _
    // Predicated region
    $region30: #{tpu_custom_call.1} parent=1 // pred_check
      _
    $region31: #{tpu_custom_call.1} parent=1 // pred_check_branch
      %86 = sbr.rel (0) target = $region33
    $region32: #{tpu_custom_call.1} parent=1 // pred_region
      _
    $region33: #{tpu_custom_call.1} parent=1 // pred_fallthru
      _
    // Predicated region
    $region34: #{tpu_custom_call.1} parent=1 // pred_check
      _
    $region35: #{tpu_custom_call.1} parent=1 // pred_check_branch
      %88 = sbr.rel (0) target = $region37
    $region36: #{tpu_custom_call.1} parent=1 // pred_region
      %s90 = ssub.s32 2048, 2048
      %91 = vsyncadd [#allocation12], %s90
      %s92 = sshll.u32 [#allocation11], 4
      %s93 = int_to_ptr.vmem [resolvable:$true] %s92
      %98 = dma.hbm_to_vmem [thread:$0]  %s8, 2048, %s93, [#allocation12], 128, 128, 8
    $region37: #{tpu_custom_call.1} parent=1 // pred_fallthru
      _
    // Predicated region
    $region38: #{tpu_custom_call.1} parent=1 // pred_check
      _
    $region39: #{tpu_custom_call.1} parent=1 // pred_check_branch
      %100 = sbr.rel (0) target = $region41
    $region40: #{tpu_custom_call.1} parent=1 // pred_region
      _
    $region41: #{tpu_custom_call.1} parent=1 // pred_fallthru
      _
    // Predicated region
    $region42: #{tpu_custom_call.1} parent=1 // pred_check
      _
    $region43: #{tpu_custom_call.1} parent=1 // pred_check_branch
      %102 = sbr.rel (0) target = $region45
    $region44: #{tpu_custom_call.1} parent=1 // pred_region
      %103 = dma.done [#allocation3], 1024
    $region45: #{tpu_custom_call.1} parent=1 // pred_fallthru
      _
    // Predicated region
    $region46: #{tpu_custom_call.1} parent=1 // pred_check
      _
    $region47: #{tpu_custom_call.1} parent=1 // pred_check_branch
      %105 = sbr.rel (0) target = $region49
    $region48: #{tpu_custom_call.1} parent=1 // pred_region
      %106 = dma.done [#allocation6], 128
    $region49: #{tpu_custom_call.1} parent=1 // pred_fallthru
      _
    // Predicated region
    $region50: #{tpu_custom_call.1} parent=1 // pred_check
      _
    $region51: #{tpu_custom_call.1} parent=1 // pred_check_branch
      %108 = sbr.rel (0) target = $region53
    $region52: #{tpu_custom_call.1} parent=1 // pred_region
      %109 = dma.done [#allocation6], 512
    $region53: #{tpu_custom_call.1} parent=1 // pred_fallthru
      _
    // Predicated region
    $region54: #{tpu_custom_call.1} parent=1 // pred_check
      _
    $region55: #{tpu_custom_call.1} parent=1 // pred_check_branch
      %111 = sbr.rel (0) target = $region57
    $region56: #{tpu_custom_call.1} parent=1 // pred_region
      %112 = dma.done [#allocation9], 6144
    $region57: #{tpu_custom_call.1} parent=1 // pred_fallthru
      _
    // Predicated region
    $region58: #{tpu_custom_call.1} parent=1 // pred_check
      _
    $region59: #{tpu_custom_call.1} parent=1 // pred_check_branch
      %114 = sbr.rel (0) target = $region61
    $region60: #{tpu_custom_call.1} parent=1 // pred_region
      %115 = dma.done [#allocation9], 6144
    $region61: #{tpu_custom_call.1} parent=1 // pred_fallthru
      _
    // Predicated region
    $region62: #{tpu_custom_call.1} parent=1 // pred_check
      _
    $region63: #{tpu_custom_call.1} parent=1 // pred_check_branch
      %117 = sbr.rel (0) target = $region65
    $region64: #{tpu_custom_call.1} parent=1 // pred_region
      %118 = dma.done [#allocation12], 2048
    $region65: #{tpu_custom_call.1} parent=1 // pred_fallthru
      _
    %p119 = scmp.eq.s32.totalorder 0, 0
    // Predicated region
    $region66: #{tpu_custom_call.1} parent=1 // pred_check
      %p120 = pneg %p119
    $region67: #{tpu_custom_call.1} parent=1 // pred_check_branch
      %122 = sbr.rel (%p120) target = $region69
    $region68: #{tpu_custom_call.1} parent=1 // pred_region
      %v123 = vld [vmem:[#allocation5] sm:$0xff]
      %124 = vst [vmem:[#allocation14] sm:$0xff] %v123
    $region69: #{tpu_custom_call.1} parent=1 // pred_fallthru
      _
    %v125 = vld [vmem:[#allocation7] sm:$0xff]
    %v126 = vld [vmem:[#allocation7 + $0x8] sm:$0xff]
    %v127 = vld [vmem:[#allocation7 + $0x10] sm:$0xff]
    %v128 = vld [vmem:[#allocation7 + $0x18] sm:$0xff]
    %v129 = vld [vmem:[%s3] sm:$0x1]
    %v130 = vld [vmem:[#allocation8] sm:$0xff]
    %v131 = vld [vmem:[#allocation8 + $0x8] sm:$0xff]
    %v132 = vld [vmem:[#allocation8 + $0x10] sm:$0xff]
    %v133 = vld [vmem:[#allocation8 + $0x18] sm:$0xff]
    %v134 = vld [vmem:[#allocation8 + $0x20] sm:$0xff]
    %v135 = vld [vmem:[#allocation8 + $0x28] sm:$0xff]
    %v136 = vld [vmem:[#allocation8 + $0x30] sm:$0xff]
    %v137 = vld [vmem:[#allocation8 + $0x38] sm:$0xff]
    %v138 = vld [vmem:[#allocation8 + $0x40] sm:$0xff]
    %v139 = vld [vmem:[#allocation8 + $0x48] sm:$0xff]
    %v140 = vld [vmem:[#allocation8 + $0x50] sm:$0xff]
    %v141 = vld [vmem:[#allocation8 + $0x58] sm:$0xff]
    %v142 = vld [vmem:[#allocation8 + $0x60] sm:$0xff]
    %v143 = vld [vmem:[#allocation8 + $0x68] sm:$0xff]
    %v144 = vld [vmem:[#allocation8 + $0x70] sm:$0xff]
    %v145 = vld [vmem:[#allocation8 + $0x78] sm:$0xff]
    %v146 = vld [vmem:[#allocation8 + $0x80] sm:$0xff]
    %v147 = vld [vmem:[#allocation8 + $0x88] sm:$0xff]
    %v148 = vld [vmem:[#allocation8 + $0x90] sm:$0xff]
    %v149 = vld [vmem:[#allocation8 + $0x98] sm:$0xff]
    %v150 = vld [vmem:[#allocation8 + $0xa0] sm:$0xff]
    %v151 = vld [vmem:[#allocation8 + $0xa8] sm:$0xff]
    %v152 = vld [vmem:[#allocation8 + $0xb0] sm:$0xff]
    %v153 = vld [vmem:[#allocation8 + $0xb8] sm:$0xff]
    %v154 = vld [vmem:[#allocation8 + $0xc0] sm:$0xff]
    %v155 = vld [vmem:[#allocation8 + $0xc8] sm:$0xff]
    %v156 = vld [vmem:[#allocation8 + $0xd0] sm:$0xff]
    %v157 = vld [vmem:[#allocation8 + $0xd8] sm:$0xff]
    %v158 = vld [vmem:[#allocation8 + $0xe0] sm:$0xff]
    %v159 = vld [vmem:[#allocation8 + $0xe8] sm:$0xff]
    %v160 = vld [vmem:[#allocation8 + $0xf0] sm:$0xff]
    %v161 = vld [vmem:[#allocation8 + $0xf8] sm:$0xff]
    %v162 = vld [vmem:[#allocation8 + $0x100] sm:$0xff]
    %v163 = vld [vmem:[#allocation8 + $0x108] sm:$0xff]
    %v164 = vld [vmem:[#allocation8 + $0x110] sm:$0xff]
    %v165 = vld [vmem:[#allocation8 + $0x118] sm:$0xff]
    %v166 = vld [vmem:[#allocation8 + $0x120] sm:$0xff]
    %v167 = vld [vmem:[#allocation8 + $0x128] sm:$0xff]
    %v168 = vld [vmem:[#allocation8 + $0x130] sm:$0xff]
    %v169 = vld [vmem:[#allocation8 + $0x138] sm:$0xff]
    %v170 = vld [vmem:[#allocation8 + $0x140] sm:$0xff]
    %v171 = vld [vmem:[#allocation8 + $0x148] sm:$0xff]
    %v172 = vld [vmem:[#allocation8 + $0x150] sm:$0xff]
    %v173 = vld [vmem:[#allocation8 + $0x158] sm:$0xff]
    %v174 = vld [vmem:[#allocation8 + $0x160] sm:$0xff]
    %v175 = vld [vmem:[#allocation8 + $0x168] sm:$0xff]
    %v176 = vld [vmem:[#allocation8 + $0x170] sm:$0xff]
    %v177 = vld [vmem:[#allocation8 + $0x178] sm:$0xff]
    %v178 = vld [vmem:[#allocation10] sm:$0xff]
    %v179 = vld [vmem:[#allocation10 + $0x8] sm:$0xff]
    %v180 = vld [vmem:[#allocation10 + $0x10] sm:$0xff]
    %v181 = vld [vmem:[#allocation10 + $0x18] sm:$0xff]
    %v182 = vld [vmem:[#allocation10 + $0x20] sm:$0xff]
    %v183 = vld [vmem:[#allocation10 + $0x28] sm:$0xff]
    %v184 = vld [vmem:[#allocation10 + $0x30] sm:$0xff]
    %v185 = vld [vmem:[#allocation10 + $0x38] sm:$0xff]
    %v186 = vld [vmem:[#allocation10 + $0x40] sm:$0xff]
    %v187 = vld [vmem:[#allocation10 + $0x48] sm:$0xff]
    %v188 = vld [vmem:[#allocation10 + $0x50] sm:$0xff]
    %v189 = vld [vmem:[#allocation10 + $0x58] sm:$0xff]
    %v190 = vld [vmem:[#allocation10 + $0x60] sm:$0xff]
    %v191 = vld [vmem:[#allocation10 + $0x68] sm:$0xff]
    %v192 = vld [vmem:[#allocation10 + $0x70] sm:$0xff]
    %v193 = vld [vmem:[#allocation10 + $0x78] sm:$0xff]
    %v194 = vld [vmem:[#allocation10 + $0x80] sm:$0xff]
    %v195 = vld [vmem:[#allocation10 + $0x88] sm:$0xff]
    %v196 = vld [vmem:[#allocation10 + $0x90] sm:$0xff]
    %v197 = vld [vmem:[#allocation10 + $0x98] sm:$0xff]
    %v198 = vld [vmem:[#allocation10 + $0xa0] sm:$0xff]
    %v199 = vld [vmem:[#allocation10 + $0xa8] sm:$0xff]
    %v200 = vld [vmem:[#allocation10 + $0xb0] sm:$0xff]
    %v201 = vld [vmem:[#allocation10 + $0xb8] sm:$0xff]
    %v202 = vld [vmem:[#allocation10 + $0xc0] sm:$0xff]
    %v203 = vld [vmem:[#allocation10 + $0xc8] sm:$0xff]
    %v204 = vld [vmem:[#allocation10 + $0xd0] sm:$0xff]
    %v205 = vld [vmem:[#allocation10 + $0xd8] sm:$0xff]
    %v206 = vld [vmem:[#allocation10 + $0xe0] sm:$0xff]
    %v207 = vld [vmem:[#allocation10 + $0xe8] sm:$0xff]
    %v208 = vld [vmem:[#allocation10 + $0xf0] sm:$0xff]
    %v209 = vld [vmem:[#allocation10 + $0xf8] sm:$0xff]
    %v210 = vld [vmem:[#allocation10 + $0x100] sm:$0xff]
    %v211 = vld [vmem:[#allocation10 + $0x108] sm:$0xff]
    %v212 = vld [vmem:[#allocation10 + $0x110] sm:$0xff]
    %v213 = vld [vmem:[#allocation10 + $0x118] sm:$0xff]
    %v214 = vld [vmem:[#allocation10 + $0x120] sm:$0xff]
    %v215 = vld [vmem:[#allocation10 + $0x128] sm:$0xff]
    %v216 = vld [vmem:[#allocation10 + $0x130] sm:$0xff]
    %v217 = vld [vmem:[#allocation10 + $0x138] sm:$0xff]
    %v218 = vld [vmem:[#allocation10 + $0x140] sm:$0xff]
    %v219 = vld [vmem:[#allocation10 + $0x148] sm:$0xff]
    %v220 = vld [vmem:[#allocation10 + $0x150] sm:$0xff]
    %v221 = vld [vmem:[#allocation10 + $0x158] sm:$0xff]
    %v222 = vld [vmem:[#allocation10 + $0x160] sm:$0xff]
    %v223 = vld [vmem:[#allocation10 + $0x168] sm:$0xff]
    %v224 = vld [vmem:[#allocation10 + $0x170] sm:$0xff]
    %v225 = vld [vmem:[#allocation10 + $0x178] sm:$0xff]
    %v226 = vld [vmem:[%s6] sm:$0x7]
    %v227 = vld [vmem:[%s7] sm:$0x7]
    %v228 = vld [vmem:[#allocation11] sm:$0xff]
    %v229 = vld [vmem:[#allocation11 + $0x8] sm:$0xff]
    %v230 = vld [vmem:[#allocation11 + $0x10] sm:$0xff]
    %v231 = vld [vmem:[#allocation11 + $0x18] sm:$0xff]
    %v232 = vld [vmem:[#allocation11 + $0x20] sm:$0xff]
    %v233 = vld [vmem:[#allocation11 + $0x28] sm:$0xff]
    %v234 = vld [vmem:[#allocation11 + $0x30] sm:$0xff]
    %v235 = vld [vmem:[#allocation11 + $0x38] sm:$0xff]
    %v236 = vld [vmem:[#allocation11 + $0x40] sm:$0xff]
    %v237 = vld [vmem:[#allocation11 + $0x48] sm:$0xff]
    %v238 = vld [vmem:[#allocation11 + $0x50] sm:$0xff]
    %v239 = vld [vmem:[#allocation11 + $0x58] sm:$0xff]
    %v240 = vld [vmem:[#allocation11 + $0x60] sm:$0xff]
    %v241 = vld [vmem:[#allocation11 + $0x68] sm:$0xff]
    %v242 = vld [vmem:[#allocation11 + $0x70] sm:$0xff]
    %v243 = vld [vmem:[#allocation11 + $0x78] sm:$0xff]
    %v244 = vld [vmem:[%s9] sm:$0x1]
    %v245 = vld [vmem:[#allocation14] sm:$0xff]
    %v246 = vld [vmem:[#allocation2] sm:$0xff]
    %v248 = vlaneseq
    %v249 = vshrl.u32 %v248, 7
    %v250 = vsub.s32 0, %v249
    %v251 = vrot.slane %v129, %v250
    %vm253 = vcmask 261120
    %v255 = vsel %vm253, %v246, 0
    %257 = vmatprep.subr.mxu0 0.0
    %258 = vmatpush1.msra.mxu0 %v125
    %259 = vmatprep.subr.mxu0 0.0
    %260 = vmatpush1.msra.mxu0 %v126
    %261 = vmatprep.subr.mxu0 0.0
    %262 = vmatpush1.msra.mxu0 %v127
    %263 = vmatprep.subr.mxu0 0.0
    %264 = vmatpush1.msra.mxu0 %v128
    %265 = vmatprep.subr.mxu0 0.0
    %266 = vmatpush1.msra.mxu0 0.0
    %267 = vmatprep.subr.mxu0 0.0
    %268 = vmatpush1.msra.mxu0 0.0
    %269 = vmatprep.subr.mxu0 0.0
    %270 = vmatpush1.msra.mxu0 0.0
    %271 = vmatprep.subr.mxu0 0.0
    %272 = vmatpush1.msra.mxu0 0.0
    %273 = vmatprep.subr.mxu0 0.0
    %274 = vmatpush1.msra.mxu0 0.0
    %275 = vmatprep.subr.mxu0 0.0
    %276 = vmatpush1.msra.mxu0 0.0
    %277 = vmatprep.subr.mxu0 0.0
    %278 = vmatpush1.msra.mxu0 0.0
    %279 = vmatprep.subr.mxu0 0.0
    %280 = vmatpush1.msra.mxu0 0.0
    %281 = vmatprep.subr.mxu0 0.0
    %282 = vmatpush1.msra.mxu0 0.0
    %283 = vmatprep.subr.mxu0 0.0
    %284 = vmatpush1.msra.mxu0 0.0
    %285 = vmatprep.subr.mxu0 0.0
    %286 = vmatpush1.msra.mxu0 0.0
    %287 = vmatprep.subr.mxu0 0.0
    %288 = vmatpush1.msra.mxu0 0.0
    %289 = vmatprep.subr.mxu0 0.0
    %290 = vmatpush1.msra.mxu0 0.0
    %291 = vmatprep.subr.mxu0 0.0
    %292 = vmatpush1.msra.mxu0 0.0
    %293 = vmatprep.subr.mxu0 0.0
    %294 = vmatpush1.msra.mxu0 0.0
    %295 = vmatprep.subr.mxu0 0.0
    %296 = vmatpush1.msra.mxu0 0.0
    %297 = vmatprep.subr.mxu0 0.0
    %298 = vmatpush1.msra.mxu0 0.0
    %299 = vmatprep.subr.mxu0 0.0
    %300 = vmatpush1.msra.mxu0 0.0
    %301 = vmatprep.subr.mxu0 0.0
    %302 = vmatpush1.msra.mxu0 0.0
    %303 = vmatprep.subr.mxu0 0.0
    %304 = vmatpush1.msra.mxu0 0.0
    %305 = vmatprep.subr.mxu0 0.0
    %306 = vmatpush1.msra.mxu0 0.0
    %307 = vmatprep.subr.mxu0 0.0
    %308 = vmatpush1.msra.mxu0 0.0
    %309 = vmatprep.subr.mxu0 0.0
    %310 = vmatpush1.msra.mxu0 0.0
    %311 = vmatprep.subr.mxu0 0.0
    %312 = vmatpush1.msra.mxu0 0.0
    %313 = vmatprep.subr.mxu0 0.0
    %314 = vmatpush1.msra.mxu0 0.0
    %315 = vmatprep.subr.mxu0 0.0
    %316 = vmatpush1.msra.mxu0 0.0
    %317 = vmatprep.subr.mxu0 0.0
    %318 = vmatpush1.msra.mxu0 0.0
    %319 = vmatprep.subr.mxu0 0.0
    %320 = vmatpush1.msra.mxu0 0.0
    %321 = vmatprep.mubr.f32.mxu0 0.0
    %322 = vmatmul.mubr.f32.gmra.mrb[0].mxu0 %v255
    %v323 = vpop.f32.mrb[0].mxu0
    %v324 = vadd.f32 %v251, %v323
    %v325 = vpop.f32.mrb[0].mxu0
    %326 = vdwg.mxu0
    %v327 = vmax.f32 %v324, 0.0
    %v329 = vlaneseq
    %v330 = vshrl.u32 %v329, 7
    %v331 = vsub.s32 0, %v330
    %v332 = vrot.slane %v226, %v331
    %v333 = vlaneseq
    %v334 = vshrl.u32 %v333, 7
    %v335 = vsub.s32 1, %v334
    %v336 = vrot.slane %v226, %v335
    %v337 = vlaneseq
    %v338 = vshrl.u32 %v337, 7
    %v339 = vsub.s32 2, %v338
    %v340 = vrot.slane %v226, %v339
    %344 = vmatprep.subr.mxu0 %v131
    %345 = vmatpush1.msra.mxu0 %v130
    %346 = vmatprep.subr.mxu0 %v134
    %347 = vmatpush1.msra.mxu0 %v133
    %348 = vmatprep.subr.mxu0 %v137
    %349 = vmatpush1.msra.mxu0 %v136
    %350 = vmatprep.subr.mxu0 %v140
    %351 = vmatpush1.msra.mxu0 %v139
    %352 = vmatprep.subr.mxu0 %v143
    %353 = vmatpush1.msra.mxu0 %v142
    %354 = vmatprep.subr.mxu0 %v146
    %355 = vmatpush1.msra.mxu0 %v145
    %356 = vmatprep.subr.mxu0 %v149
    %357 = vmatpush1.msra.mxu0 %v148
    %358 = vmatprep.subr.mxu0 %v152
    %359 = vmatpush1.msra.mxu0 %v151
    %360 = vmatprep.subr.mxu0 %v155
    %361 = vmatpush1.msra.mxu0 %v154
    %362 = vmatprep.subr.mxu0 %v158
    %363 = vmatpush1.msra.mxu0 %v157
    %364 = vmatprep.subr.mxu0 %v161
    %365 = vmatpush1.msra.mxu0 %v160
    %366 = vmatprep.subr.mxu0 %v164
    %367 = vmatpush1.msra.mxu0 %v163
    %368 = vmatprep.subr.mxu0 %v167
    %369 = vmatpush1.msra.mxu0 %v166
    %370 = vmatprep.subr.mxu0 %v170
    %371 = vmatpush1.msra.mxu0 %v169
    %372 = vmatprep.subr.mxu0 %v173
    %373 = vmatpush1.msra.mxu0 %v172
    %374 = vmatprep.subr.mxu0 %v176
    %375 = vmatpush1.msra.mxu0 %v175
    %376 = vmatprep.subr.mxu0 0.0
    %377 = vmatpush1.msra.mxu0 0.0
    %378 = vmatprep.subr.mxu0 0.0
    %379 = vmatpush1.msra.mxu0 0.0
    %380 = vmatprep.subr.mxu0 0.0
    %381 = vmatpush1.msra.mxu0 0.0
    %382 = vmatprep.subr.mxu0 0.0
    %383 = vmatpush1.msra.mxu0 0.0
    %384 = vmatprep.subr.mxu0 0.0
    %385 = vmatpush1.msra.mxu0 0.0
    %386 = vmatprep.subr.mxu0 0.0
    %387 = vmatpush1.msra.mxu0 0.0
    %388 = vmatprep.subr.mxu0 0.0
    %389 = vmatpush1.msra.mxu0 0.0
    %390 = vmatprep.subr.mxu0 0.0
    %391 = vmatpush1.msra.mxu0 0.0
    %392 = vmatprep.subr.mxu0 0.0
    %393 = vmatpush1.msra.mxu0 0.0
    %394 = vmatprep.subr.mxu0 0.0
    %395 = vmatpush1.msra.mxu0 0.0
    %396 = vmatprep.subr.mxu0 0.0
    %397 = vmatpush1.msra.mxu0 0.0
    %398 = vmatprep.subr.mxu0 0.0
    %399 = vmatpush1.msra.mxu0 0.0
    %400 = vmatprep.subr.mxu0 0.0
    %401 = vmatpush1.msra.mxu0 0.0
    %402 = vmatprep.subr.mxu0 0.0
    %403 = vmatpush1.msra.mxu0 0.0
    %404 = vmatprep.subr.mxu0 0.0
    %405 = vmatpush1.msra.mxu0 0.0
    %406 = vmatprep.subr.mxu0 0.0
    %407 = vmatpush1.msra.mxu0 0.0
    %408 = vmatprep.mubr.f32.mxu0 0.0
    %409 = vmatmul.mubr.f32.gmra.mrb[0].mxu0 %v327
    %v410 = vpop.f32.mrb[0].mxu0
    %v411 = vadd.f32 %v332, %v410
    %v412 = vpop.f32.mrb[0].mxu0
    %v413 = vadd.f32 %v336, %v412
    %414 = vdwg.mxu0
    %415 = vmatprep.subr.mxu0 0.0
    %416 = vmatpush1.msra.mxu0 %v132
    %417 = vmatprep.subr.mxu0 0.0
    %418 = vmatpush1.msra.mxu0 %v135
    %419 = vmatprep.subr.mxu0 0.0
    %420 = vmatpush1.msra.mxu0 %v138
    %421 = vmatprep.subr.mxu0 0.0
    %422 = vmatpush1.msra.mxu0 %v141
    %423 = vmatprep.subr.mxu0 0.0
    %424 = vmatpush1.msra.mxu0 %v144
    %425 = vmatprep.subr.mxu0 0.0
    %426 = vmatpush1.msra.mxu0 %v147
    %427 = vmatprep.subr.mxu0 0.0
    %428 = vmatpush1.msra.mxu0 %v150
    %429 = vmatprep.subr.mxu0 0.0
    %430 = vmatpush1.msra.mxu0 %v153
    %431 = vmatprep.subr.mxu0 0.0
    %432 = vmatpush1.msra.mxu0 %v156
    %433 = vmatprep.subr.mxu0 0.0
    %434 = vmatpush1.msra.mxu0 %v159
    %435 = vmatprep.subr.mxu0 0.0
    %436 = vmatpush1.msra.mxu0 %v162
    %437 = vmatprep.subr.mxu0 0.0
    %438 = vmatpush1.msra.mxu0 %v165
    %439 = vmatprep.subr.mxu0 0.0
    %440 = vmatpush1.msra.mxu0 %v168
    %441 = vmatprep.subr.mxu0 0.0
    %442 = vmatpush1.msra.mxu0 %v171
    %443 = vmatprep.subr.mxu0 0.0
    %444 = vmatpush1.msra.mxu0 %v174
    %445 = vmatprep.subr.mxu0 0.0
    %446 = vmatpush1.msra.mxu0 %v177
    %447 = vmatprep.subr.mxu0 0.0
    %448 = vmatpush1.msra.mxu0 0.0
    %449 = vmatprep.subr.mxu0 0.0
    %450 = vmatpush1.msra.mxu0 0.0
    %451 = vmatprep.subr.mxu0 0.0
    %452 = vmatpush1.msra.mxu0 0.0
    %453 = vmatprep.subr.mxu0 0.0
    %454 = vmatpush1.msra.mxu0 0.0
    %455 = vmatprep.subr.mxu0 0.0
    %456 = vmatpush1.msra.mxu0 0.0
    %457 = vmatprep.subr.mxu0 0.0
    %458 = vmatpush1.msra.mxu0 0.0
    %459 = vmatprep.subr.mxu0 0.0
    %460 = vmatpush1.msra.mxu0 0.0
    %461 = vmatprep.subr.mxu0 0.0
    %462 = vmatpush1.msra.mxu0 0.0
    %463 = vmatprep.subr.mxu0 0.0
    %464 = vmatpush1.msra.mxu0 0.0
    %465 = vmatprep.subr.mxu0 0.0
    %466 = vmatpush1.msra.mxu0 0.0
    %467 = vmatprep.subr.mxu0 0.0
    %468 = vmatpush1.msra.mxu0 0.0
    %469 = vmatprep.subr.mxu0 0.0
    %470 = vmatpush1.msra.mxu0 0.0
    %471 = vmatprep.subr.mxu0 0.0
    %472 = vmatpush1.msra.mxu0 0.0
    %473 = vmatprep.subr.mxu0 0.0
    %474 = vmatpush1.msra.mxu0 0.0
    %475 = vmatprep.subr.mxu0 0.0
    %476 = vmatpush1.msra.mxu0 0.0
    %477 = vmatprep.subr.mxu0 0.0
    %478 = vmatpush1.msra.mxu0 0.0
    %479 = vmatprep.mubr.f32.mxu0 0.0
    %480 = vmatmul.mubr.f32.gmra.mrb[0].mxu0 %v327
    %v481 = vpop.f32.mrb[0].mxu0
    %v482 = vadd.f32 %v340, %v481
    %v483 = vpop.f32.mrb[0].mxu0
    %484 = vdwg.mxu0
    %v486 = vlaneseq
    %v487 = vshrl.u32 %v486, 7
    %v488 = vsub.s32 0, %v487
    %v489 = vrot.slane %v227, %v488
    %v490 = vlaneseq
    %v491 = vshrl.u32 %v490, 7
    %v492 = vsub.s32 1, %v491
    %v493 = vrot.slane %v227, %v492
    %v494 = vlaneseq
    %v495 = vshrl.u32 %v494, 7
    %v496 = vsub.s32 2, %v495
    %v497 = vrot.slane %v227, %v496
    %501 = vmatprep.subr.mxu0 %v179
    %502 = vmatpush1.msra.mxu0 %v178
    %503 = vmatprep.subr.mxu0 %v182
    %504 = vmatpush1.msra.mxu0 %v181
    %505 = vmatprep.subr.mxu0 %v185
    %506 = vmatpush1.msra.mxu0 %v184
    %507 = vmatprep.subr.mxu0 %v188
    %508 = vmatpush1.msra.mxu0 %v187
    %509 = vmatprep.subr.mxu0 %v191
    %510 = vmatpush1.msra.mxu0 %v190
    %511 = vmatprep.subr.mxu0 %v194
    %512 = vmatpush1.msra.mxu0 %v193
    %513 = vmatprep.subr.mxu0 %v197
    %514 = vmatpush1.msra.mxu0 %v196
    %515 = vmatprep.subr.mxu0 %v200
    %516 = vmatpush1.msra.mxu0 %v199
    %517 = vmatprep.subr.mxu0 %v203
    %518 = vmatpush1.msra.mxu0 %v202
    %519 = vmatprep.subr.mxu0 %v206
    %520 = vmatpush1.msra.mxu0 %v205
    %521 = vmatprep.subr.mxu0 %v209
    %522 = vmatpush1.msra.mxu0 %v208
    %523 = vmatprep.subr.mxu0 %v212
    %524 = vmatpush1.msra.mxu0 %v211
    %525 = vmatprep.subr.mxu0 %v215
    %526 = vmatpush1.msra.mxu0 %v214
    %527 = vmatprep.subr.mxu0 %v218
    %528 = vmatpush1.msra.mxu0 %v217
    %529 = vmatprep.subr.mxu0 %v221
    %530 = vmatpush1.msra.mxu0 %v220
    %531 = vmatprep.subr.mxu0 %v224
    %532 = vmatpush1.msra.mxu0 %v223
    %533 = vmatprep.subr.mxu0 0.0
    %534 = vmatpush1.msra.mxu0 0.0
    %535 = vmatprep.subr.mxu0 0.0
    %536 = vmatpush1.msra.mxu0 0.0
    %537 = vmatprep.subr.mxu0 0.0
    %538 = vmatpush1.msra.mxu0 0.0
    %539 = vmatprep.subr.mxu0 0.0
    %540 = vmatpush1.msra.mxu0 0.0
    %541 = vmatprep.subr.mxu0 0.0
    %542 = vmatpush1.msra.mxu0 0.0
    %543 = vmatprep.subr.mxu0 0.0
    %544 = vmatpush1.msra.mxu0 0.0
    %545 = vmatprep.subr.mxu0 0.0
    %546 = vmatpush1.msra.mxu0 0.0
    %547 = vmatprep.subr.mxu0 0.0
    %548 = vmatpush1.msra.mxu0 0.0
    %549 = vmatprep.subr.mxu0 0.0
    %550 = vmatpush1.msra.mxu0 0.0
    %551 = vmatprep.subr.mxu0 0.0
    %552 = vmatpush1.msra.mxu0 0.0
    %553 = vmatprep.subr.mxu0 0.0
    %554 = vmatpush1.msra.mxu0 0.0
    %555 = vmatprep.subr.mxu0 0.0
    %556 = vmatpush1.msra.mxu0 0.0
    %557 = vmatprep.subr.mxu0 0.0
    %558 = vmatpush1.msra.mxu0 0.0
    %559 = vmatprep.subr.mxu0 0.0
    %560 = vmatpush1.msra.mxu0 0.0
    %561 = vmatprep.subr.mxu0 0.0
    %562 = vmatpush1.msra.mxu0 0.0
    %563 = vmatprep.subr.mxu0 0.0
    %564 = vmatpush1.msra.mxu0 0.0
    %565 = vmatprep.mubr.f32.mxu0 0.0
    %566 = vmatmul.mubr.f32.gmra.mrb[0].mxu0 %v245
    %v567 = vpop.f32.mrb[0].mxu0
    %v568 = vadd.f32 %v489, %v567
    %v569 = vpop.f32.mrb[0].mxu0
    %v570 = vadd.f32 %v493, %v569
    %571 = vdwg.mxu0
    %572 = vmatprep.subr.mxu0 0.0
    %573 = vmatpush1.msra.mxu0 %v180
    %574 = vmatprep.subr.mxu0 0.0
    %575 = vmatpush1.msra.mxu0 %v183
    %576 = vmatprep.subr.mxu0 0.0
    %577 = vmatpush1.msra.mxu0 %v186
    %578 = vmatprep.subr.mxu0 0.0
    %579 = vmatpush1.msra.mxu0 %v189
    %580 = vmatprep.subr.mxu0 0.0
    %581 = vmatpush1.msra.mxu0 %v192
    %582 = vmatprep.subr.mxu0 0.0
    %583 = vmatpush1.msra.mxu0 %v195
    %584 = vmatprep.subr.mxu0 0.0
    %585 = vmatpush1.msra.mxu0 %v198
    %586 = vmatprep.subr.mxu0 0.0
    %587 = vmatpush1.msra.mxu0 %v201
    %588 = vmatprep.subr.mxu0 0.0
    %589 = vmatpush1.msra.mxu0 %v204
    %590 = vmatprep.subr.mxu0 0.0
    %591 = vmatpush1.msra.mxu0 %v207
    %592 = vmatprep.subr.mxu0 0.0
    %593 = vmatpush1.msra.mxu0 %v210
    %594 = vmatprep.subr.mxu0 0.0
    %595 = vmatpush1.msra.mxu0 %v213
    %596 = vmatprep.subr.mxu0 0.0
    %597 = vmatpush1.msra.mxu0 %v216
    %598 = vmatprep.subr.mxu0 0.0
    %599 = vmatpush1.msra.mxu0 %v219
    %600 = vmatprep.subr.mxu0 0.0
    %601 = vmatpush1.msra.mxu0 %v222
    %602 = vmatprep.subr.mxu0 0.0
    %603 = vmatpush1.msra.mxu0 %v225
    %604 = vmatprep.subr.mxu0 0.0
    %605 = vmatpush1.msra.mxu0 0.0
    %606 = vmatprep.subr.mxu0 0.0
    %607 = vmatpush1.msra.mxu0 0.0
    %608 = vmatprep.subr.mxu0 0.0
    %609 = vmatpush1.msra.mxu0 0.0
    %610 = vmatprep.subr.mxu0 0.0
    %611 = vmatpush1.msra.mxu0 0.0
    %612 = vmatprep.subr.mxu0 0.0
    %613 = vmatpush1.msra.mxu0 0.0
    %614 = vmatprep.subr.mxu0 0.0
    %615 = vmatpush1.msra.mxu0 0.0
    %616 = vmatprep.subr.mxu0 0.0
    %617 = vmatpush1.msra.mxu0 0.0
    %618 = vmatprep.subr.mxu0 0.0
    %619 = vmatpush1.msra.mxu0 0.0
    %620 = vmatprep.subr.mxu0 0.0
    %621 = vmatpush1.msra.mxu0 0.0
    %622 = vmatprep.subr.mxu0 0.0
    %623 = vmatpush1.msra.mxu0 0.0
    %624 = vmatprep.subr.mxu0 0.0
    %625 = vmatpush1.msra.mxu0 0.0
    %626 = vmatprep.subr.mxu0 0.0
    %627 = vmatpush1.msra.mxu0 0.0
    %628 = vmatprep.subr.mxu0 0.0
    %629 = vmatpush1.msra.mxu0 0.0
    %630 = vmatprep.subr.mxu0 0.0
    %631 = vmatpush1.msra.mxu0 0.0
    %632 = vmatprep.subr.mxu0 0.0
    %633 = vmatpush1.msra.mxu0 0.0
    %634 = vmatprep.subr.mxu0 0.0
    %635 = vmatpush1.msra.mxu0 0.0
    %636 = vmatprep.mubr.f32.mxu0 0.0
    %637 = vmatmul.mubr.f32.gmra.mrb[0].mxu0 %v245
    %v638 = vpop.f32.mrb[0].mxu0
    %v639 = vadd.f32 %v497, %v638
    %v640 = vpop.f32.mrb[0].mxu0
    %641 = vdwg.mxu0
    %v642 = vadd.f32 %v411, %v568
    %v643 = vxor.u32 %v642, 2147483648
    %v644 = vmul.f32 %v643, 1.442695
    %v645 = vpow.pop %v644
    %v646 = vadd.f32 %v645, 1.0
    %v647 = vrcp.pop %v646
    %v648 = vmul.f32 1.0, %v647
    %v649 = vadd.f32 %v413, %v570
    %v650 = vxor.u32 %v649, 2147483648
    %v651 = vmul.f32 %v650, 1.442695
    %v652 = vpow.pop %v651
    %v653 = vadd.f32 %v652, 1.0
    %v654 = vrcp.pop %v653
    %v655 = vmul.f32 1.0, %v654
    %v656 = vmul.f32 %v648, %v639
    %v657 = vadd.f32 %v482, %v656
    %v658 = vtanh.pop %v657
    %v659 = vsub.f32 1.0, %v655
    %v660 = vmul.f32 %v659, %v658
    %v661 = vmul.f32 %v655, %v245
    %v662 = vadd.f32 %v660, %v661
    %v664 = vlaneseq
    %v665 = vshrl.u32 %v664, 7
    %v666 = vsub.s32 0, %v665
    %v667 = vrot.slane %v244, %v666
    %669 = vmatprep.subr.mxu0 0.0
    %670 = vmatpush1.msra.mxu0 %v228
    %671 = vmatprep.subr.mxu0 0.0
    %672 = vmatpush1.msra.mxu0 %v229
    %673 = vmatprep.subr.mxu0 0.0
    %674 = vmatpush1.msra.mxu0 %v230
    %675 = vmatprep.subr.mxu0 0.0
    %676 = vmatpush1.msra.mxu0 %v231
    %677 = vmatprep.subr.mxu0 0.0
    %678 = vmatpush1.msra.mxu0 %v232
    %679 = vmatprep.subr.mxu0 0.0
    %680 = vmatpush1.msra.mxu0 %v233
    %681 = vmatprep.subr.mxu0 0.0
    %682 = vmatpush1.msra.mxu0 %v234
    %683 = vmatprep.subr.mxu0 0.0
    %684 = vmatpush1.msra.mxu0 %v235
    %685 = vmatprep.subr.mxu0 0.0
    %686 = vmatpush1.msra.mxu0 %v236
    %687 = vmatprep.subr.mxu0 0.0
    %688 = vmatpush1.msra.mxu0 %v237
    %689 = vmatprep.subr.mxu0 0.0
    %690 = vmatpush1.msra.mxu0 %v238
    %691 = vmatprep.subr.mxu0 0.0
    %692 = vmatpush1.msra.mxu0 %v239
    %693 = vmatprep.subr.mxu0 0.0
    %694 = vmatpush1.msra.mxu0 %v240
    %695 = vmatprep.subr.mxu0 0.0
    %696 = vmatpush1.msra.mxu0 %v241
    %697 = vmatprep.subr.mxu0 0.0
    %698 = vmatpush1.msra.mxu0 %v242
    %699 = vmatprep.subr.mxu0 0.0
    %700 = vmatpush1.msra.mxu0 %v243
    %701 = vmatprep.subr.mxu0 0.0
    %702 = vmatpush1.msra.mxu0 0.0
    %703 = vmatprep.subr.mxu0 0.0
    %704 = vmatpush1.msra.mxu0 0.0
    %705 = vmatprep.subr.mxu0 0.0
    %706 = vmatpush1.msra.mxu0 0.0
    %707 = vmatprep.subr.mxu0 0.0
    %708 = vmatpush1.msra.mxu0 0.0
    %709 = vmatprep.subr.mxu0 0.0
    %710 = vmatpush1.msra.mxu0 0.0
    %711 = vmatprep.subr.mxu0 0.0
    %712 = vmatpush1.msra.mxu0 0.0
    %713 = vmatprep.subr.mxu0 0.0
    %714 = vmatpush1.msra.mxu0 0.0
    %715 = vmatprep.subr.mxu0 0.0
    %716 = vmatpush1.msra.mxu0 0.0
    %717 = vmatprep.subr.mxu0 0.0
    %718 = vmatpush1.msra.mxu0 0.0
    %719 = vmatprep.subr.mxu0 0.0
    %720 = vmatpush1.msra.mxu0 0.0
    %721 = vmatprep.subr.mxu0 0.0
    %722 = vmatpush1.msra.mxu0 0.0
    %723 = vmatprep.subr.mxu0 0.0
    %724 = vmatpush1.msra.mxu0 0.0
    %725 = vmatprep.subr.mxu0 0.0
    %726 = vmatpush1.msra.mxu0 0.0
    %727 = vmatprep.subr.mxu0 0.0
    %728 = vmatpush1.msra.mxu0 0.0
    %729 = vmatprep.subr.mxu0 0.0
    %730 = vmatpush1.msra.mxu0 0.0
    %731 = vmatprep.subr.mxu0 0.0
    %732 = vmatpush1.msra.mxu0 0.0
    %733 = vmatprep.mubr.f32.mxu0 0.0
    %734 = vmatmul.mubr.f32.gmra.mrb[0].mxu0 %v662
    %v735 = vpop.f32.mrb[0].mxu0
    %v736 = vadd.f32 %v667, %v735
    %v737 = vpop.f32.mrb[0].mxu0
    %738 = vdwg.mxu0
    %739 = vst [vmem:[#allocation13] sm:$0xff] %v736
    %s740 = scalar_lea.vmem [#allocation2], 8
    %v741 = vld [vmem:[%s740] sm:$0xff]
    %v743 = vsel %vm253, %v741, 0
    %745 = vmatprep.subr.mxu0 0.0
    %746 = vmatpush1.msra.mxu0 %v125
    %747 = vmatprep.subr.mxu0 0.0
    %748 = vmatpush1.msra.mxu0 %v126
    %749 = vmatprep.subr.mxu0 0.0
    %750 = vmatpush1.msra.mxu0 %v127
    %751 = vmatprep.subr.mxu0 0.0
    %752 = vmatpush1.msra.mxu0 %v128
    %753 = vmatprep.subr.mxu0 0.0
    %754 = vmatpush1.msra.mxu0 0.0
    %755 = vmatprep.subr.mxu0 0.0
    %756 = vmatpush1.msra.mxu0 0.0
    %757 = vmatprep.subr.mxu0 0.0
    %758 = vmatpush1.msra.mxu0 0.0
    %759 = vmatprep.subr.mxu0 0.0
    %760 = vmatpush1.msra.mxu0 0.0
    %761 = vmatprep.subr.mxu0 0.0
    %762 = vmatpush1.msra.mxu0 0.0
    %763 = vmatprep.subr.mxu0 0.0
    %764 = vmatpush1.msra.mxu0 0.0
    %765 = vmatprep.subr.mxu0 0.0
    %766 = vmatpush1.msra.mxu0 0.0
    %767 = vmatprep.subr.mxu0 0.0
    %768 = vmatpush1.msra.mxu0 0.0
    %769 = vmatprep.subr.mxu0 0.0
    %770 = vmatpush1.msra.mxu0 0.0
    %771 = vmatprep.subr.mxu0 0.0
    %772 = vmatpush1.msra.mxu0 0.0
    %773 = vmatprep.subr.mxu0 0.0
    %774 = vmatpush1.msra.mxu0 0.0
    %775 = vmatprep.subr.mxu0 0.0
    %776 = vmatpush1.msra.mxu0 0.0
    %777 = vmatprep.subr.mxu0 0.0
    %778 = vmatpush1.msra.mxu0 0.0
    %779 = vmatprep.subr.mxu0 0.0
    %780 = vmatpush1.msra.mxu0 0.0
    %781 = vmatprep.subr.mxu0 0.0
    %782 = vmatpush1.msra.mxu0 0.0
    %783 = vmatprep.subr.mxu0 0.0
    %784 = vmatpush1.msra.mxu0 0.0
    %785 = vmatprep.subr.mxu0 0.0
    %786 = vmatpush1.msra.mxu0 0.0
    %787 = vmatprep.subr.mxu0 0.0
    %788 = vmatpush1.msra.mxu0 0.0
    %789 = vmatprep.subr.mxu0 0.0
    %790 = vmatpush1.msra.mxu0 0.0
    %791 = vmatprep.subr.mxu0 0.0
    %792 = vmatpush1.msra.mxu0 0.0
    %793 = vmatprep.subr.mxu0 0.0
    %794 = vmatpush1.msra.mxu0 0.0
    %795 = vmatprep.subr.mxu0 0.0
    %796 = vmatpush1.msra.mxu0 0.0
    %797 = vmatprep.subr.mxu0 0.0
    %798 = vmatpush1.msra.mxu0 0.0
    %799 = vmatprep.subr.mxu0 0.0
    %800 = vmatpush1.msra.mxu0 0.0
    %801 = vmatprep.subr.mxu0 0.0
    %802 = vmatpush1.msra.mxu0 0.0
    %803 = vmatprep.subr.mxu0 0.0
    %804 = vmatpush1.msra.mxu0 0.0
    %805 = vmatprep.subr.mxu0 0.0
    %806 = vmatpush1.msra.mxu0 0.0
    %807 = vmatprep.subr.mxu0 0.0
    %808 = vmatpush1.msra.mxu0 0.0
    %809 = vmatprep.mubr.f32.mxu0 0.0
    %810 = vmatmul.mubr.f32.gmra.mrb[0].mxu0 %v743
    %v811 = vpop.f32.mrb[0].mxu0
    %v812 = vadd.f32 %v251, %v811
    %v813 = vpop.f32.mrb[0].mxu0
    %814 = vdwg.mxu0
    %v815 = vmax.f32 %v812, 0.0
    %816 = vmatprep.subr.mxu0 %v131
    %817 = vmatpush1.msra.mxu0 %v130
    %818 = vmatprep.subr.mxu0 %v134
    %819 = vmatpush1.msra.mxu0 %v133
    %820 = vmatprep.subr.mxu0 %v137
    %821 = vmatpush1.msra.mxu0 %v136
    %822 = vmatprep.subr.mxu0 %v140
    %823 = vmatpush1.msra.mxu0 %v139
    %824 = vmatprep.subr.mxu0 %v143
    %825 = vmatpush1.msra.mxu0 %v142
    %826 = vmatprep.subr.mxu0 %v146
    %827 = vmatpush1.msra.mxu0 %v145
    %828 = vmatprep.subr.mxu0 %v149
    %829 = vmatpush1.msra.mxu0 %v148
    %830 = vmatprep.subr.mxu0 %v152
    %831 = vmatpush1.msra.mxu0 %v151
    %832 = vmatprep.subr.mxu0 %v155
    %833 = vmatpush1.msra.mxu0 %v154
    %834 = vmatprep.subr.mxu0 %v158
    %835 = vmatpush1.msra.mxu0 %v157
    %836 = vmatprep.subr.mxu0 %v161
    %837 = vmatpush1.msra.mxu0 %v160
    %838 = vmatprep.subr.mxu0 %v164
    %839 = vmatpush1.msra.mxu0 %v163
    %840 = vmatprep.subr.mxu0 %v167
    %841 = vmatpush1.msra.mxu0 %v166
    %842 = vmatprep.subr.mxu0 %v170
    %843 = vmatpush1.msra.mxu0 %v169
    %844 = vmatprep.subr.mxu0 %v173
    %845 = vmatpush1.msra.mxu0 %v172
    %846 = vmatprep.subr.mxu0 %v176
    %847 = vmatpush1.msra.mxu0 %v175
    %848 = vmatprep.subr.mxu0 0.0
    %849 = vmatpush1.msra.mxu0 0.0
    %850 = vmatprep.subr.mxu0 0.0
    %851 = vmatpush1.msra.mxu0 0.0
    %852 = vmatprep.subr.mxu0 0.0
    %853 = vmatpush1.msra.mxu0 0.0
    %854 = vmatprep.subr.mxu0 0.0
    %855 = vmatpush1.msra.mxu0 0.0
    %856 = vmatprep.subr.mxu0 0.0
    %857 = vmatpush1.msra.mxu0 0.0
    %858 = vmatprep.subr.mxu0 0.0
    %859 = vmatpush1.msra.mxu0 0.0
    %860 = vmatprep.subr.mxu0 0.0
    %861 = vmatpush1.msra.mxu0 0.0
    %862 = vmatprep.subr.mxu0 0.0
    %863 = vmatpush1.msra.mxu0 0.0
    %864 = vmatprep.subr.mxu0 0.0
    %865 = vmatpush1.msra.mxu0 0.0
    %866 = vmatprep.subr.mxu0 0.0
    %867 = vmatpush1.msra.mxu0 0.0
    %868 = vmatprep.subr.mxu0 0.0
    %869 = vmatpush1.msra.mxu0 0.0
    %870 = vmatprep.subr.mxu0 0.0
    %871 = vmatpush1.msra.mxu0 0.0
    %872 = vmatprep.subr.mxu0 0.0
    %873 = vmatpush1.msra.mxu0 0.0
    %874 = vmatprep.subr.mxu0 0.0
    %875 = vmatpush1.msra.mxu0 0.0
    %876 = vmatprep.subr.mxu0 0.0
    %877 = vmatpush1.msra.mxu0 0.0
    %878 = vmatprep.subr.mxu0 0.0
    %879 = vmatpush1.msra.mxu0 0.0
    %880 = vmatprep.mubr.f32.mxu0 0.0
    %881 = vmatmul.mubr.f32.gmra.mrb[0].mxu0 %v815
    %v882 = vpop.f32.mrb[0].mxu0
    %v883 = vadd.f32 %v332, %v882
    %v884 = vpop.f32.mrb[0].mxu0
    %v885 = vadd.f32 %v336, %v884
    %886 = vdwg.mxu0
    %887 = vmatprep.subr.mxu0 0.0
    %888 = vmatpush1.msra.mxu0 %v132
    %889 = vmatprep.subr.mxu0 0.0
    %890 = vmatpush1.msra.mxu0 %v135
    %891 = vmatprep.subr.mxu0 0.0
    %892 = vmatpush1.msra.mxu0 %v138
    %893 = vmatprep.subr.mxu0 0.0
    %894 = vmatpush1.msra.mxu0 %v141
    %895 = vmatprep.subr.mxu0 0.0
    %896 = vmatpush1.msra.mxu0 %v144
    %897 = vmatprep.subr.mxu0 0.0
    %898 = vmatpush1.msra.mxu0 %v147
    %899 = vmatprep.subr.mxu0 0.0
    %900 = vmatpush1.msra.mxu0 %v150
    %901 = vmatprep.subr.mxu0 0.0
    %902 = vmatpush1.msra.mxu0 %v153
    %903 = vmatprep.subr.mxu0 0.0
    %904 = vmatpush1.msra.mxu0 %v156
    %905 = vmatprep.subr.mxu0 0.0
    %906 = vmatpush1.msra.mxu0 %v159
    %907 = vmatprep.subr.mxu0 0.0
    %908 = vmatpush1.msra.mxu0 %v162
    %909 = vmatprep.subr.mxu0 0.0
    %910 = vmatpush1.msra.mxu0 %v165
    %911 = vmatprep.subr.mxu0 0.0
    %912 = vmatpush1.msra.mxu0 %v168
    %913 = vmatprep.subr.mxu0 0.0
    %914 = vmatpush1.msra.mxu0 %v171
    %915 = vmatprep.subr.mxu0 0.0
    %916 = vmatpush1.msra.mxu0 %v174
    %917 = vmatprep.subr.mxu0 0.0
    %918 = vmatpush1.msra.mxu0 %v177
    %919 = vmatprep.subr.mxu0 0.0
    %920 = vmatpush1.msra.mxu0 0.0
    %921 = vmatprep.subr.mxu0 0.0
    %922 = vmatpush1.msra.mxu0 0.0
    %923 = vmatprep.subr.mxu0 0.0
    %924 = vmatpush1.msra.mxu0 0.0
    %925 = vmatprep.subr.mxu0 0.0
    %926 = vmatpush1.msra.mxu0 0.0
    %927 = vmatprep.subr.mxu0 0.0
    %928 = vmatpush1.msra.mxu0 0.0
    %929 = vmatprep.subr.mxu0 0.0
    %930 = vmatpush1.msra.mxu0 0.0
    %931 = vmatprep.subr.mxu0 0.0
    %932 = vmatpush1.msra.mxu0 0.0
    %933 = vmatprep.subr.mxu0 0.0
    %934 = vmatpush1.msra.mxu0 0.0
    %935 = vmatprep.subr.mxu0 0.0
    %936 = vmatpush1.msra.mxu0 0.0
    %937 = vmatprep.subr.mxu0 0.0
    %938 = vmatpush1.msra.mxu0 0.0
    %939 = vmatprep.subr.mxu0 0.0
    %940 = vmatpush1.msra.mxu0 0.0
    %941 = vmatprep.subr.mxu0 0.0
    %942 = vmatpush1.msra.mxu0 0.0
    %943 = vmatprep.subr.mxu0 0.0
    %944 = vmatpush1.msra.mxu0 0.0
    %945 = vmatprep.subr.mxu0 0.0
    %946 = vmatpush1.msra.mxu0 0.0
    %947 = vmatprep.subr.mxu0 0.0
    %948 = vmatpush1.msra.mxu0 0.0
    %949 = vmatprep.subr.mxu0 0.0
    %950 = vmatpush1.msra.mxu0 0.0
    %951 = vmatprep.mubr.f32.mxu0 0.0
    %952 = vmatmul.mubr.f32.gmra.mrb[0].mxu0 %v815
    %v953 = vpop.f32.mrb[0].mxu0
    %v954 = vadd.f32 %v340, %v953
    %v955 = vpop.f32.mrb[0].mxu0
    %956 = vdwg.mxu0
    %957 = vmatprep.subr.mxu0 %v179
    %958 = vmatpush1.msra.mxu0 %v178
    %959 = vmatprep.subr.mxu0 %v182
    %960 = vmatpush1.msra.mxu0 %v181
    %961 = vmatprep.subr.mxu0 %v185
    %962 = vmatpush1.msra.mxu0 %v184
    %963 = vmatprep.subr.mxu0 %v188
    %964 = vmatpush1.msra.mxu0 %v187
    %965 = vmatprep.subr.mxu0 %v191
    %966 = vmatpush1.msra.mxu0 %v190
    %967 = vmatprep.subr.mxu0 %v194
    %968 = vmatpush1.msra.mxu0 %v193
    %969 = vmatprep.subr.mxu0 %v197
    %970 = vmatpush1.msra.mxu0 %v196
    %971 = vmatprep.subr.mxu0 %v200
    %972 = vmatpush1.msra.mxu0 %v199
    %973 = vmatprep.subr.mxu0 %v203
    %974 = vmatpush1.msra.mxu0 %v202
    %975 = vmatprep.subr.mxu0 %v206
    %976 = vmatpush1.msra.mxu0 %v205
    %977 = vmatprep.subr.mxu0 %v209
    %978 = vmatpush1.msra.mxu0 %v208
    %979 = vmatprep.subr.mxu0 %v212
    %980 = vmatpush1.msra.mxu0 %v211
    %981 = vmatprep.subr.mxu0 %v215
    %982 = vmatpush1.msra.mxu0 %v214
    %983 = vmatprep.subr.mxu0 %v218
    %984 = vmatpush1.msra.mxu0 %v217
    %985 = vmatprep.subr.mxu0 %v221
    %986 = vmatpush1.msra.mxu0 %v220
    %987 = vmatprep.subr.mxu0 %v224
    %988 = vmatpush1.msra.mxu0 %v223
    %989 = vmatprep.subr.mxu0 0.0
    %990 = vmatpush1.msra.mxu0 0.0
    %991 = vmatprep.subr.mxu0 0.0
    %992 = vmatpush1.msra.mxu0 0.0
    %993 = vmatprep.subr.mxu0 0.0
    %994 = vmatpush1.msra.mxu0 0.0
    %995 = vmatprep.subr.mxu0 0.0
    %996 = vmatpush1.msra.mxu0 0.0
    %997 = vmatprep.subr.mxu0 0.0
    %998 = vmatpush1.msra.mxu0 0.0
    %999 = vmatprep.subr.mxu0 0.0
    %1000 = vmatpush1.msra.mxu0 0.0
    %1001 = vmatprep.subr.mxu0 0.0
    %1002 = vmatpush1.msra.mxu0 0.0
    %1003 = vmatprep.subr.mxu0 0.0
    %1004 = vmatpush1.msra.mxu0 0.0
    %1005 = vmatprep.subr.mxu0 0.0
    %1006 = vmatpush1.msra.mxu0 0.0
    %1007 = vmatprep.subr.mxu0 0.0
    %1008 = vmatpush1.msra.mxu0 0.0
    %1009 = vmatprep.subr.mxu0 0.0
    %1010 = vmatpush1.msra.mxu0 0.0
    %1011 = vmatprep.subr.mxu0 0.0
    %1012 = vmatpush1.msra.mxu0 0.0
    %1013 = vmatprep.subr.mxu0 0.0
    %1014 = vmatpush1.msra.mxu0 0.0
    %1015 = vmatprep.subr.mxu0 0.0
    %1016 = vmatpush1.msra.mxu0 0.0
    %1017 = vmatprep.subr.mxu0 0.0
    %1018 = vmatpush1.msra.mxu0 0.0
    %1019 = vmatprep.subr.mxu0 0.0
    %1020 = vmatpush1.msra.mxu0 0.0
    %1021 = vmatprep.mubr.f32.mxu0 0.0
    %1022 = vmatmul.mubr.f32.gmra.mrb[0].mxu0 %v662
    %v1023 = vpop.f32.mrb[0].mxu0
    %v1024 = vadd.f32 %v489, %v1023
    %v1025 = vpop.f32.mrb[0].mxu0
    %v1026 = vadd.f32 %v493, %v1025
    %1027 = vdwg.mxu0
    %1028 = vmatprep.subr.mxu0 0.0
    %1029 = vmatpush1.msra.mxu0 %v180
    %1030 = vmatprep.subr.mxu0 0.0
    %1031 = vmatpush1.msra.mxu0 %v183
    %1032 = vmatprep.subr.mxu0 0.0
    %1033 = vmatpush1.msra.mxu0 %v186
    %1034 = vmatprep.subr.mxu0 0.0
    %1035 = vmatpush1.msra.mxu0 %v189
    %1036 = vmatprep.subr.mxu0 0.0
    %1037 = vmatpush1.msra.mxu0 %v192
    %1038 = vmatprep.subr.mxu0 0.0
    %1039 = vmatpush1.msra.mxu0 %v195
    %1040 = vmatprep.subr.mxu0 0.0
    %1041 = vmatpush1.msra.mxu0 %v198
    %1042 = vmatprep.subr.mxu0 0.0
    %1043 = vmatpush1.msra.mxu0 %v201
    %1044 = vmatprep.subr.mxu0 0.0
    %1045 = vmatpush1.msra.mxu0 %v204
    %1046 = vmatprep.subr.mxu0 0.0
    %1047 = vmatpush1.msra.mxu0 %v207
    %1048 = vmatprep.subr.mxu0 0.0
    %1049 = vmatpush1.msra.mxu0 %v210
    %1050 = vmatprep.subr.mxu0 0.0
    %1051 = vmatpush1.msra.mxu0 %v213
    %1052 = vmatprep.subr.mxu0 0.0
    %1053 = vmatpush1.msra.mxu0 %v216
    %1054 = vmatprep.subr.mxu0 0.0
    %1055 = vmatpush1.msra.mxu0 %v219
    %1056 = vmatprep.subr.mxu0 0.0
    %1057 = vmatpush1.msra.mxu0 %v222
    %1058 = vmatprep.subr.mxu0 0.0
    %1059 = vmatpush1.msra.mxu0 %v225
    %1060 = vmatprep.subr.mxu0 0.0
    %1061 = vmatpush1.msra.mxu0 0.0
    %1062 = vmatprep.subr.mxu0 0.0
    %1063 = vmatpush1.msra.mxu0 0.0
    %1064 = vmatprep.subr.mxu0 0.0
    %1065 = vmatpush1.msra.mxu0 0.0
    %1066 = vmatprep.subr.mxu0 0.0
    %1067 = vmatpush1.msra.mxu0 0.0
    %1068 = vmatprep.subr.mxu0 0.0
    %1069 = vmatpush1.msra.mxu0 0.0
    %1070 = vmatprep.subr.mxu0 0.0
    %1071 = vmatpush1.msra.mxu0 0.0
    %1072 = vmatprep.subr.mxu0 0.0
    %1073 = vmatpush1.msra.mxu0 0.0
    %1074 = vmatprep.subr.mxu0 0.0
    %1075 = vmatpush1.msra.mxu0 0.0
    %1076 = vmatprep.subr.mxu0 0.0
    %1077 = vmatpush1.msra.mxu0 0.0
    %1078 = vmatprep.subr.mxu0 0.0
    %1079 = vmatpush1.msra.mxu0 0.0
    %1080 = vmatprep.subr.mxu0 0.0
    %1081 = vmatpush1.msra.mxu0 0.0
    %1082 = vmatprep.subr.mxu0 0.0
    %1083 = vmatpush1.msra.mxu0 0.0
    %1084 = vmatprep.subr.mxu0 0.0
    %1085 = vmatpush1.msra.mxu0 0.0
    %1086 = vmatprep.subr.mxu0 0.0
    %1087 = vmatpush1.msra.mxu0 0.0
    %1088 = vmatprep.subr.mxu0 0.0
    %1089 = vmatpush1.msra.mxu0 0.0
    %1090 = vmatprep.subr.mxu0 0.0
    %1091 = vmatpush1.msra.mxu0 0.0
    %1092 = vmatprep.mubr.f32.mxu0 0.0
    %1093 = vmatmul.mubr.f32.gmra.mrb[0].mxu0 %v662
    %v1094 = vpop.f32.mrb[0].mxu0
    %v1095 = vadd.f32 %v497, %v1094
    %v1096 = vpop.f32.mrb[0].mxu0
    %1097 = vdwg.mxu0
    %v1098 = vadd.f32 %v883, %v1024
    %v1099 = vxor.u32 %v1098, 2147483648
    %v1100 = vmul.f32 %v1099, 1.442695
    %v1101 = vpow.pop %v1100
    %v1102 = vadd.f32 %v1101, 1.0
    %v1103 = vrcp.pop %v1102
    %v1104 = vmul.f32 1.0, %v1103
    %v1105 = vadd.f32 %v885, %v1026
    %v1106 = vxor.u32 %v1105, 2147483648
    %v1107 = vmul.f32 %v1106, 1.442695
    %v1108 = vpow.pop %v1107
    %v1109 = vadd.f32 %v1108, 1.0
    %v1110 = vrcp.pop %v1109
    %v1111 = vmul.f32 1.0, %v1110
    %v1112 = vmul.f32 %v1104, %v1095
    %v1113 = vadd.f32 %v954, %v1112
    %v1114 = vtanh.pop %v1113
    %v1115 = vsub.f32 1.0, %v1111
    %v1116 = vmul.f32 %v1115, %v1114
    %v1117 = vmul.f32 %v1111, %v662
    %v1118 = vadd.f32 %v1116, %v1117
    %1119 = vmatprep.subr.mxu0 0.0
    %1120 = vmatpush1.msra.mxu0 %v228
    %1121 = vmatprep.subr.mxu0 0.0
    %1122 = vmatpush1.msra.mxu0 %v229
    %1123 = vmatprep.subr.mxu0 0.0
    %1124 = vmatpush1.msra.mxu0 %v230
    %1125 = vmatprep.subr.mxu0 0.0
    %1126 = vmatpush1.msra.mxu0 %v231
    %1127 = vmatprep.subr.mxu0 0.0
    %1128 = vmatpush1.msra.mxu0 %v232
    %1129 = vmatprep.subr.mxu0 0.0
    %1130 = vmatpush1.msra.mxu0 %v233
    %1131 = vmatprep.subr.mxu0 0.0
    %1132 = vmatpush1.msra.mxu0 %v234
    %1133 = vmatprep.subr.mxu0 0.0
    %1134 = vmatpush1.msra.mxu0 %v235
    %1135 = vmatprep.subr.mxu0 0.0
    %1136 = vmatpush1.msra.mxu0 %v236
    %1137 = vmatprep.subr.mxu0 0.0
    %1138 = vmatpush1.msra.mxu0 %v237
    %1139 = vmatprep.subr.mxu0 0.0
    %1140 = vmatpush1.msra.mxu0 %v238
    %1141 = vmatprep.subr.mxu0 0.0
    %1142 = vmatpush1.msra.mxu0 %v239
    %1143 = vmatprep.subr.mxu0 0.0
    %1144 = vmatpush1.msra.mxu0 %v240
    %1145 = vmatprep.subr.mxu0 0.0
    %1146 = vmatpush1.msra.mxu0 %v241
    %1147 = vmatprep.subr.mxu0 0.0
    %1148 = vmatpush1.msra.mxu0 %v242
    %1149 = vmatprep.subr.mxu0 0.0
    %1150 = vmatpush1.msra.mxu0 %v243
    %1151 = vmatprep.subr.mxu0 0.0
    %1152 = vmatpush1.msra.mxu0 0.0
    %1153 = vmatprep.subr.mxu0 0.0
    %1154 = vmatpush1.msra.mxu0 0.0
    %1155 = vmatprep.subr.mxu0 0.0
    %1156 = vmatpush1.msra.mxu0 0.0
    %1157 = vmatprep.subr.mxu0 0.0
    %1158 = vmatpush1.msra.mxu0 0.0
    %1159 = vmatprep.subr.mxu0 0.0
    %1160 = vmatpush1.msra.mxu0 0.0
    %1161 = vmatprep.subr.mxu0 0.0
    %1162 = vmatpush1.msra.mxu0 0.0
    %1163 = vmatprep.subr.mxu0 0.0
    %1164 = vmatpush1.msra.mxu0 0.0
    %1165 = vmatprep.subr.mxu0 0.0
    %1166 = vmatpush1.msra.mxu0 0.0
    %1167 = vmatprep.subr.mxu0 0.0
    %1168 = vmatpush1.msra.mxu0 0.0
    %1169 = vmatprep.subr.mxu0 0.0
    %1170 = vmatpush1.msra.mxu0 0.0
    %1171 = vmatprep.subr.mxu0 0.0
    %1172 = vmatpush1.msra.mxu0 0.0
    %1173 = vmatprep.subr.mxu0 0.0
    %1174 = vmatpush1.msra.mxu0 0.0
    %1175 = vmatprep.subr.mxu0 0.0
    %1176 = vmatpush1.msra.mxu0 0.0
    %1177 = vmatprep.subr.mxu0 0.0
    %1178 = vmatpush1.msra.mxu0 0.0
    %1179 = vmatprep.subr.mxu0 0.0
    %1180 = vmatpush1.msra.mxu0 0.0
    %1181 = vmatprep.subr.mxu0 0.0
    %1182 = vmatpush1.msra.mxu0 0.0
    %1183 = vmatprep.mubr.f32.mxu0 0.0
    %1184 = vmatmul.mubr.f32.gmra.mrb[0].mxu0 %v1118
    %v1185 = vpop.f32.mrb[0].mxu0
    %v1186 = vadd.f32 %v667, %v1185
    %v1187 = vpop.f32.mrb[0].mxu0
    %1188 = vdwg.mxu0
    %s1189 = scalar_lea.vmem [#allocation13], 8
    %1190 = vst [vmem:[%s1189] sm:$0xff] %v1186
    %s1191 = scalar_lea.vmem [#allocation2], 16
    %v1192 = vld [vmem:[%s1191] sm:$0xff]
    %v1194 = vsel %vm253, %v1192, 0
    %1196 = vmatprep.subr.mxu0 0.0
    %1197 = vmatpush1.msra.mxu0 %v125
    %1198 = vmatprep.subr.mxu0 0.0
    %1199 = vmatpush1.msra.mxu0 %v126
    %1200 = vmatprep.subr.mxu0 0.0
    %1201 = vmatpush1.msra.mxu0 %v127
    %1202 = vmatprep.subr.mxu0 0.0
    %1203 = vmatpush1.msra.mxu0 %v128
    %1204 = vmatprep.subr.mxu0 0.0
    %1205 = vmatpush1.msra.mxu0 0.0
    %1206 = vmatprep.subr.mxu0 0.0
    %1207 = vmatpush1.msra.mxu0 0.0
    %1208 = vmatprep.subr.mxu0 0.0
    %1209 = vmatpush1.msra.mxu0 0.0
    %1210 = vmatprep.subr.mxu0 0.0
    %1211 = vmatpush1.msra.mxu0 0.0
    %1212 = vmatprep.subr.mxu0 0.0
    %1213 = vmatpush1.msra.mxu0 0.0
    %1214 = vmatprep.subr.mxu0 0.0
    %1215 = vmatpush1.msra.mxu0 0.0
    %1216 = vmatprep.subr.mxu0 0.0
    %1217 = vmatpush1.msra.mxu0 0.0
    %1218 = vmatprep.subr.mxu0 0.0
    %1219 = vmatpush1.msra.mxu0 0.0
    %1220 = vmatprep.subr.mxu0 0.0
    %1221 = vmatpush1.msra.mxu0 0.0
    %1222 = vmatprep.subr.mxu0 0.0
    %1223 = vmatpush1.msra.mxu0 0.0
    %1224 = vmatprep.subr.mxu0 0.0
    %1225 = vmatpush1.msra.mxu0 0.0
    %1226 = vmatprep.subr.mxu0 0.0
    %1227 = vmatpush1.msra.mxu0 0.0
    %1228 = vmatprep.subr.mxu0 0.0
    %1229 = vmatpush1.msra.mxu0 0.0
    %1230 = vmatprep.subr.mxu0 0.0
    %1231 = vmatpush1.msra.mxu0 0.0
    %1232 = vmatprep.subr.mxu0 0.0
    %1233 = vmatpush1.msra.mxu0 0.0
    %1234 = vmatprep.subr.mxu0 0.0
    %1235 = vmatpush1.msra.mxu0 0.0
    %1236 = vmatprep.subr.mxu0 0.0
    %1237 = vmatpush1.msra.mxu0 0.0
    %1238 = vmatprep.subr.mxu0 0.0
    %1239 = vmatpush1.msra.mxu0 0.0
    %1240 = vmatprep.subr.mxu0 0.0
    %1241 = vmatpush1.msra.mxu0 0.0
    %1242 = vmatprep.subr.mxu0 0.0
    %1243 = vmatpush1.msra.mxu0 0.0
    %1244 = vmatprep.subr.mxu0 0.0
    %1245 = vmatpush1.msra.mxu0 0.0
    %1246 = vmatprep.subr.mxu0 0.0
    %1247 = vmatpush1.msra.mxu0 0.0
    %1248 = vmatprep.subr.mxu0 0.0
    %1249 = vmatpush1.msra.mxu0 0.0
    %1250 = vmatprep.subr.mxu0 0.0
    %1251 = vmatpush1.msra.mxu0 0.0
    %1252 = vmatprep.subr.mxu0 0.0
    %1253 = vmatpush1.msra.mxu0 0.0
    %1254 = vmatprep.subr.mxu0 0.0
    %1255 = vmatpush1.msra.mxu0 0.0
    %1256 = vmatprep.subr.mxu0 0.0
    %1257 = vmatpush1.msra.mxu0 0.0
    %1258 = vmatprep.subr.mxu0 0.0
    %1259 = vmatpush1.msra.mxu0 0.0
    %1260 = vmatprep.mubr.f32.mxu0 0.0
    %1261 = vmatmul.mubr.f32.gmra.mrb[0].mxu0 %v1194
    %v1262 = vpop.f32.mrb[0].mxu0
    %v1263 = vadd.f32 %v251, %v1262
    %v1264 = vpop.f32.mrb[0].mxu0
    %1265 = vdwg.mxu0
    %v1266 = vmax.f32 %v1263, 0.0
    %1267 = vmatprep.subr.mxu0 %v131
    %1268 = vmatpush1.msra.mxu0 %v130
    %1269 = vmatprep.subr.mxu0 %v134
    %1270 = vmatpush1.msra.mxu0 %v133
    %1271 = vmatprep.subr.mxu0 %v137
    %1272 = vmatpush1.msra.mxu0 %v136
    %1273 = vmatprep.subr.mxu0 %v140
    %1274 = vmatpush1.msra.mxu0 %v139
    %1275 = vmatprep.subr.mxu0 %v143
    %1276 = vmatpush1.msra.mxu0 %v142
    %1277 = vmatprep.subr.mxu0 %v146
    %1278 = vmatpush1.msra.mxu0 %v145
    %1279 = vmatprep.subr.mxu0 %v149
    %1280 = vmatpush1.msra.mxu0 %v148
    %1281 = vmatprep.subr.mxu0 %v152
    %1282 = vmatpush1.msra.mxu0 %v151
    %1283 = vmatprep.subr.mxu0 %v155
    %1284 = vmatpush1.msra.mxu0 %v154
    %1285 = vmatprep.subr.mxu0 %v158
    %1286 = vmatpush1.msra.mxu0 %v157
    %1287 = vmatprep.subr.mxu0 %v161
    %1288 = vmatpush1.msra.mxu0 %v160
    %1289 = vmatprep.subr.mxu0 %v164
    %1290 = vmatpush1.msra.mxu0 %v163
    %1291 = vmatprep.subr.mxu0 %v167
    %1292 = vmatpush1.msra.mxu0 %v166
    %1293 = vmatprep.subr.mxu0 %v170
    %1294 = vmatpush1.msra.mxu0 %v169
    %1295 = vmatprep.subr.mxu0 %v173
    %1296 = vmatpush1.msra.mxu0 %v172
    %1297 = vmatprep.subr.mxu0 %v176
    %1298 = vmatpush1.msra.mxu0 %v175
    %1299 = vmatprep.subr.mxu0 0.0
    %1300 = vmatpush1.msra.mxu0 0.0
    %1301 = vmatprep.subr.mxu0 0.0
    %1302 = vmatpush1.msra.mxu0 0.0
    %1303 = vmatprep.subr.mxu0 0.0
    %1304 = vmatpush1.msra.mxu0 0.0
    %1305 = vmatprep.subr.mxu0 0.0
    %1306 = vmatpush1.msra.mxu0 0.0
    %1307 = vmatprep.subr.mxu0 0.0
    %1308 = vmatpush1.msra.mxu0 0.0
    %1309 = vmatprep.subr.mxu0 0.0
    %1310 = vmatpush1.msra.mxu0 0.0
    %1311 = vmatprep.subr.mxu0 0.0
    %1312 = vmatpush1.msra.mxu0 0.0
    %1313 = vmatprep.subr.mxu0 0.0
    %1314 = vmatpush1.msra.mxu0 0.0
    %1315 = vmatprep.subr.mxu0 0.0
    %1316 = vmatpush1.msra.mxu0 0.0
    %1317 = vmatprep.subr.mxu0 0.0
    %1318 = vmatpush1.msra.mxu0 0.0
    %1319 = vmatprep.subr.mxu0 0.0
    %1320 = vmatpush1.msra.mxu0 0.0
    %1321 = vmatprep.subr.mxu0 0.0
    %1322 = vmatpush1.msra.mxu0 0.0
    %1323 = vmatprep.subr.mxu0 0.0
    %1324 = vmatpush1.msra.mxu0 0.0
    %1325 = vmatprep.subr.mxu0 0.0
    %1326 = vmatpush1.msra.mxu0 0.0
    %1327 = vmatprep.subr.mxu0 0.0
    %1328 = vmatpush1.msra.mxu0 0.0
    %1329 = vmatprep.subr.mxu0 0.0
    %1330 = vmatpush1.msra.mxu0 0.0
    %1331 = vmatprep.mubr.f32.mxu0 0.0
    %1332 = vmatmul.mubr.f32.gmra.mrb[0].mxu0 %v1266
    %v1333 = vpop.f32.mrb[0].mxu0
    %v1334 = vadd.f32 %v332, %v1333
    %v1335 = vpop.f32.mrb[0].mxu0
    %v1336 = vadd.f32 %v336, %v1335
    %1337 = vdwg.mxu0
    %1338 = vmatprep.subr.mxu0 0.0
    %1339 = vmatpush1.msra.mxu0 %v132
    %1340 = vmatprep.subr.mxu0 0.0
    %1341 = vmatpush1.msra.mxu0 %v135
    %1342 = vmatprep.subr.mxu0 0.0
    %1343 = vmatpush1.msra.mxu0 %v138
    %1344 = vmatprep.subr.mxu0 0.0
    %1345 = vmatpush1.msra.mxu0 %v141
    %1346 = vmatprep.subr.mxu0 0.0
    %1347 = vmatpush1.msra.mxu0 %v144
    %1348 = vmatprep.subr.mxu0 0.0
    %1349 = vmatpush1.msra.mxu0 %v147
    %1350 = vmatprep.subr.mxu0 0.0
    %1351 = vmatpush1.msra.mxu0 %v150
    %1352 = vmatprep.subr.mxu0 0.0
    %1353 = vmatpush1.msra.mxu0 %v153
    %1354 = vmatprep.subr.mxu0 0.0
    %1355 = vmatpush1.msra.mxu0 %v156
    %1356 = vmatprep.subr.mxu0 0.0
    %1357 = vmatpush1.msra.mxu0 %v159
    %1358 = vmatprep.subr.mxu0 0.0
    %1359 = vmatpush1.msra.mxu0 %v162
    %1360 = vmatprep.subr.mxu0 0.0
    %1361 = vmatpush1.msra.mxu0 %v165
    %1362 = vmatprep.subr.mxu0 0.0
    %1363 = vmatpush1.msra.mxu0 %v168
    %1364 = vmatprep.subr.mxu0 0.0
    %1365 = vmatpush1.msra.mxu0 %v171
    %1366 = vmatprep.subr.mxu0 0.0
    %1367 = vmatpush1.msra.mxu0 %v174
    %1368 = vmatprep.subr.mxu0 0.0
    %1369 = vmatpush1.msra.mxu0 %v177
    %1370 = vmatprep.subr.mxu0 0.0
    %1371 = vmatpush1.msra.mxu0 0.0
    %1372 = vmatprep.subr.mxu0 0.0
    %1373 = vmatpush1.msra.mxu0 0.0
    %1374 = vmatprep.subr.mxu0 0.0
    %1375 = vmatpush1.msra.mxu0 0.0
    %1376 = vmatprep.subr.mxu0 0.0
    %1377 = vmatpush1.msra.mxu0 0.0
    %1378 = vmatprep.subr.mxu0 0.0
    %1379 = vmatpush1.msra.mxu0 0.0
    %1380 = vmatprep.subr.mxu0 0.0
    %1381 = vmatpush1.msra.mxu0 0.0
    %1382 = vmatprep.subr.mxu0 0.0
    %1383 = vmatpush1.msra.mxu0 0.0
    %1384 = vmatprep.subr.mxu0 0.0
    %1385 = vmatpush1.msra.mxu0 0.0
    %1386 = vmatprep.subr.mxu0 0.0
    %1387 = vmatpush1.msra.mxu0 0.0
    %1388 = vmatprep.subr.mxu0 0.0
    %1389 = vmatpush1.msra.mxu0 0.0
    %1390 = vmatprep.subr.mxu0 0.0
    %1391 = vmatpush1.msra.mxu0 0.0
    %1392 = vmatprep.subr.mxu0 0.0
    %1393 = vmatpush1.msra.mxu0 0.0
    %1394 = vmatprep.subr.mxu0 0.0
    %1395 = vmatpush1.msra.mxu0 0.0
    %1396 = vmatprep.subr.mxu0 0.0
    %1397 = vmatpush1.msra.mxu0 0.0
    %1398 = vmatprep.subr.mxu0 0.0
    %1399 = vmatpush1.msra.mxu0 0.0
    %1400 = vmatprep.subr.mxu0 0.0
    %1401 = vmatpush1.msra.mxu0 0.0
    %1402 = vmatprep.mubr.f32.mxu0 0.0
    %1403 = vmatmul.mubr.f32.gmra.mrb[0].mxu0 %v1266
    %v1404 = vpop.f32.mrb[0].mxu0
    %v1405 = vadd.f32 %v340, %v1404
    %v1406 = vpop.f32.mrb[0].mxu0
    %1407 = vdwg.mxu0
    %1408 = vmatprep.subr.mxu0 %v179
    %1409 = vmatpush1.msra.mxu0 %v178
    %1410 = vmatprep.subr.mxu0 %v182
    %1411 = vmatpush1.msra.mxu0 %v181
    %1412 = vmatprep.subr.mxu0 %v185
    %1413 = vmatpush1.msra.mxu0 %v184
    %1414 = vmatprep.subr.mxu0 %v188
    %1415 = vmatpush1.msra.mxu0 %v187
    %1416 = vmatprep.subr.mxu0 %v191
    %1417 = vmatpush1.msra.mxu0 %v190
    %1418 = vmatprep.subr.mxu0 %v194
    %1419 = vmatpush1.msra.mxu0 %v193
    %1420 = vmatprep.subr.mxu0 %v197
    %1421 = vmatpush1.msra.mxu0 %v196
    %1422 = vmatprep.subr.mxu0 %v200
    %1423 = vmatpush1.msra.mxu0 %v199
    %1424 = vmatprep.subr.mxu0 %v203
    %1425 = vmatpush1.msra.mxu0 %v202
    %1426 = vmatprep.subr.mxu0 %v206
    %1427 = vmatpush1.msra.mxu0 %v205
    %1428 = vmatprep.subr.mxu0 %v209
    %1429 = vmatpush1.msra.mxu0 %v208
    %1430 = vmatprep.subr.mxu0 %v212
    %1431 = vmatpush1.msra.mxu0 %v211
    %1432 = vmatprep.subr.mxu0 %v215
    %1433 = vmatpush1.msra.mxu0 %v214
    %1434 = vmatprep.subr.mxu0 %v218
    %1435 = vmatpush1.msra.mxu0 %v217
    %1436 = vmatprep.subr.mxu0 %v221
    %1437 = vmatpush1.msra.mxu0 %v220
    %1438 = vmatprep.subr.mxu0 %v224
    %1439 = vmatpush1.msra.mxu0 %v223
    %1440 = vmatprep.subr.mxu0 0.0
    %1441 = vmatpush1.msra.mxu0 0.0
    %1442 = vmatprep.subr.mxu0 0.0
    %1443 = vmatpush1.msra.mxu0 0.0
    %1444 = vmatprep.subr.mxu0 0.0
    %1445 = vmatpush1.msra.mxu0 0.0
    %1446 = vmatprep.subr.mxu0 0.0
    %1447 = vmatpush1.msra.mxu0 0.0
    %1448 = vmatprep.subr.mxu0 0.0
    %1449 = vmatpush1.msra.mxu0 0.0
    %1450 = vmatprep.subr.mxu0 0.0
    %1451 = vmatpush1.msra.mxu0 0.0
    %1452 = vmatprep.subr.mxu0 0.0
    %1453 = vmatpush1.msra.mxu0 0.0
    %1454 = vmatprep.subr.mxu0 0.0
    %1455 = vmatpush1.msra.mxu0 0.0
    %1456 = vmatprep.subr.mxu0 0.0
    %1457 = vmatpush1.msra.mxu0 0.0
    %1458 = vmatprep.subr.mxu0 0.0
    %1459 = vmatpush1.msra.mxu0 0.0
    %1460 = vmatprep.subr.mxu0 0.0
    %1461 = vmatpush1.msra.mxu0 0.0
    %1462 = vmatprep.subr.mxu0 0.0
    %1463 = vmatpush1.msra.mxu0 0.0
    %1464 = vmatprep.subr.mxu0 0.0
    %1465 = vmatpush1.msra.mxu0 0.0
    %1466 = vmatprep.subr.mxu0 0.0
    %1467 = vmatpush1.msra.mxu0 0.0
    %1468 = vmatprep.subr.mxu0 0.0
    %1469 = vmatpush1.msra.mxu0 0.0
    %1470 = vmatprep.subr.mxu0 0.0
    %1471 = vmatpush1.msra.mxu0 0.0
    %1472 = vmatprep.mubr.f32.mxu0 0.0
    %1473 = vmatmul.mubr.f32.gmra.mrb[0].mxu0 %v1118
    %v1474 = vpop.f32.mrb[0].mxu0
    %v1475 = vadd.f32 %v489, %v1474
    %v1476 = vpop.f32.mrb[0].mxu0
    %v1477 = vadd.f32 %v493, %v1476
    %1478 = vdwg.mxu0
    %1479 = vmatprep.subr.mxu0 0.0
    %1480 = vmatpush1.msra.mxu0 %v180
    %1481 = vmatprep.subr.mxu0 0.0
    %1482 = vmatpush1.msra.mxu0 %v183
    %1483 = vmatprep.subr.mxu0 0.0
    %1484 = vmatpush1.msra.mxu0 %v186
    %1485 = vmatprep.subr.mxu0 0.0
    %1486 = vmatpush1.msra.mxu0 %v189
    %1487 = vmatprep.subr.mxu0 0.0
    %1488 = vmatpush1.msra.mxu0 %v192
    %1489 = vmatprep.subr.mxu0 0.0
    %1490 = vmatpush1.msra.mxu0 %v195
    %1491 = vmatprep.subr.mxu0 0.0
    %1492 = vmatpush1.msra.mxu0 %v198
    %1493 = vmatprep.subr.mxu0 0.0
    %1494 = vmatpush1.msra.mxu0 %v201
    %1495 = vmatprep.subr.mxu0 0.0
    %1496 = vmatpush1.msra.mxu0 %v204
    %1497 = vmatprep.subr.mxu0 0.0
    %1498 = vmatpush1.msra.mxu0 %v207
    %1499 = vmatprep.subr.mxu0 0.0
    %1500 = vmatpush1.msra.mxu0 %v210
    %1501 = vmatprep.subr.mxu0 0.0
    %1502 = vmatpush1.msra.mxu0 %v213
    %1503 = vmatprep.subr.mxu0 0.0
    %1504 = vmatpush1.msra.mxu0 %v216
    %1505 = vmatprep.subr.mxu0 0.0
    %1506 = vmatpush1.msra.mxu0 %v219
    %1507 = vmatprep.subr.mxu0 0.0
    %1508 = vmatpush1.msra.mxu0 %v222
    %1509 = vmatprep.subr.mxu0 0.0
    %1510 = vmatpush1.msra.mxu0 %v225
    %1511 = vmatprep.subr.mxu0 0.0
    %1512 = vmatpush1.msra.mxu0 0.0
    %1513 = vmatprep.subr.mxu0 0.0
    %1514 = vmatpush1.msra.mxu0 0.0
    %1515 = vmatprep.subr.mxu0 0.0
    %1516 = vmatpush1.msra.mxu0 0.0
    %1517 = vmatprep.subr.mxu0 0.0
    %1518 = vmatpush1.msra.mxu0 0.0
    %1519 = vmatprep.subr.mxu0 0.0
    %1520 = vmatpush1.msra.mxu0 0.0
    %1521 = vmatprep.subr.mxu0 0.0
    %1522 = vmatpush1.msra.mxu0 0.0
    %1523 = vmatprep.subr.mxu0 0.0
    %1524 = vmatpush1.msra.mxu0 0.0
    %1525 = vmatprep.subr.mxu0 0.0
    %1526 = vmatpush1.msra.mxu0 0.0
    %1527 = vmatprep.subr.mxu0 0.0
    %1528 = vmatpush1.msra.mxu0 0.0
    %1529 = vmatprep.subr.mxu0 0.0
    %1530 = vmatpush1.msra.mxu0 0.0
    %1531 = vmatprep.subr.mxu0 0.0
    %1532 = vmatpush1.msra.mxu0 0.0
    %1533 = vmatprep.subr.mxu0 0.0
    %1534 = vmatpush1.msra.mxu0 0.0
    %1535 = vmatprep.subr.mxu0 0.0
    %1536 = vmatpush1.msra.mxu0 0.0
    %1537 = vmatprep.subr.mxu0 0.0
    %1538 = vmatpush1.msra.mxu0 0.0
    %1539 = vmatprep.subr.mxu0 0.0
    %1540 = vmatpush1.msra.mxu0 0.0
    %1541 = vmatprep.subr.mxu0 0.0
    %1542 = vmatpush1.msra.mxu0 0.0
    %1543 = vmatprep.mubr.f32.mxu0 0.0
    %1544 = vmatmul.mubr.f32.gmra.mrb[0].mxu0 %v1118
    %v1545 = vpop.f32.mrb[0].mxu0
    %v1546 = vadd.f32 %v497, %v1545
    %v1547 = vpop.f32.mrb[0].mxu0
    %1548 = vdwg.mxu0
    %v1549 = vadd.f32 %v1334, %v1475
    %v1550 = vxor.u32 %v1549, 2147483648
    %v1551 = vmul.f32 %v1550, 1.442695
    %v1552 = vpow.pop %v1551
    %v1553 = vadd.f32 %v1552, 1.0
    %v1554 = vrcp.pop %v1553
    %v1555 = vmul.f32 1.0, %v1554
    %v1556 = vadd.f32 %v1336, %v1477
    %v1557 = vxor.u32 %v1556, 2147483648
    %v1558 = vmul.f32 %v1557, 1.442695
    %v1559 = vpow.pop %v1558
    %v1560 = vadd.f32 %v1559, 1.0
    %v1561 = vrcp.pop %v1560
    %v1562 = vmul.f32 1.0, %v1561
    %v1563 = vmul.f32 %v1555, %v1546
    %v1564 = vadd.f32 %v1405, %v1563
    %v1565 = vtanh.pop %v1564
    %v1566 = vsub.f32 1.0, %v1562
    %v1567 = vmul.f32 %v1566, %v1565
    %v1568 = vmul.f32 %v1562, %v1118
    %v1569 = vadd.f32 %v1567, %v1568
    %1570 = vmatprep.subr.mxu0 0.0
    %1571 = vmatpush1.msra.mxu0 %v228
    %1572 = vmatprep.subr.mxu0 0.0
    %1573 = vmatpush1.msra.mxu0 %v229
    %1574 = vmatprep.subr.mxu0 0.0
    %1575 = vmatpush1.msra.mxu0 %v230
    %1576 = vmatprep.subr.mxu0 0.0
    %1577 = vmatpush1.msra.mxu0 %v231
    %1578 = vmatprep.subr.mxu0 0.0
    %1579 = vmatpush1.msra.mxu0 %v232
    %1580 = vmatprep.subr.mxu0 0.0
    %1581 = vmatpush1.msra.mxu0 %v233
    %1582 = vmatprep.subr.mxu0 0.0
    %1583 = vmatpush1.msra.mxu0 %v234
    %1584 = vmatprep.subr.mxu0 0.0
    %1585 = vmatpush1.msra.mxu0 %v235
    %1586 = vmatprep.subr.mxu0 0.0
    %1587 = vmatpush1.msra.mxu0 %v236
    %1588 = vmatprep.subr.mxu0 0.0
    %1589 = vmatpush1.msra.mxu0 %v237
    %1590 = vmatprep.subr.mxu0 0.0
    %1591 = vmatpush1.msra.mxu0 %v238
    %1592 = vmatprep.subr.mxu0 0.0
    %1593 = vmatpush1.msra.mxu0 %v239
    %1594 = vmatprep.subr.mxu0 0.0
    %1595 = vmatpush1.msra.mxu0 %v240
    %1596 = vmatprep.subr.mxu0 0.0
    %1597 = vmatpush1.msra.mxu0 %v241
    %1598 = vmatprep.subr.mxu0 0.0
    %1599 = vmatpush1.msra.mxu0 %v242
    %1600 = vmatprep.subr.mxu0 0.0
    %1601 = vmatpush1.msra.mxu0 %v243
    %1602 = vmatprep.subr.mxu0 0.0
    %1603 = vmatpush1.msra.mxu0 0.0
    %1604 = vmatprep.subr.mxu0 0.0
    %1605 = vmatpush1.msra.mxu0 0.0
    %1606 = vmatprep.subr.mxu0 0.0
    %1607 = vmatpush1.msra.mxu0 0.0
    %1608 = vmatprep.subr.mxu0 0.0
    %1609 = vmatpush1.msra.mxu0 0.0
    %1610 = vmatprep.subr.mxu0 0.0
    %1611 = vmatpush1.msra.mxu0 0.0
    %1612 = vmatprep.subr.mxu0 0.0
    %1613 = vmatpush1.msra.mxu0 0.0
    %1614 = vmatprep.subr.mxu0 0.0
    %1615 = vmatpush1.msra.mxu0 0.0
    %1616 = vmatprep.subr.mxu0 0.0
    %1617 = vmatpush1.msra.mxu0 0.0
    %1618 = vmatprep.subr.mxu0 0.0
    %1619 = vmatpush1.msra.mxu0 0.0
    %1620 = vmatprep.subr.mxu0 0.0
    %1621 = vmatpush1.msra.mxu0 0.0
    %1622 = vmatprep.subr.mxu0 0.0
    %1623 = vmatpush1.msra.mxu0 0.0
    %1624 = vmatprep.subr.mxu0 0.0
    %1625 = vmatpush1.msra.mxu0 0.0
    %1626 = vmatprep.subr.mxu0 0.0
    %1627 = vmatpush1.msra.mxu0 0.0
    %1628 = vmatprep.subr.mxu0 0.0
    %1629 = vmatpush1.msra.mxu0 0.0
    %1630 = vmatprep.subr.mxu0 0.0
    %1631 = vmatpush1.msra.mxu0 0.0
    %1632 = vmatprep.subr.mxu0 0.0
    %1633 = vmatpush1.msra.mxu0 0.0
    %1634 = vmatprep.mubr.f32.mxu0 0.0
    %1635 = vmatmul.mubr.f32.gmra.mrb[0].mxu0 %v1569
    %v1636 = vpop.f32.mrb[0].mxu0
    %v1637 = vadd.f32 %v667, %v1636
    %v1638 = vpop.f32.mrb[0].mxu0
    %1639 = vdwg.mxu0
    %s1640 = scalar_lea.vmem [#allocation13], 16
    %1641 = vst [vmem:[%s1640] sm:$0xff] %v1637
    %s1642 = scalar_lea.vmem [#allocation2], 24
    %v1643 = vld [vmem:[%s1642] sm:$0xff]
    %v1645 = vsel %vm253, %v1643, 0
    %1647 = vmatprep.subr.mxu0 0.0
    %1648 = vmatpush1.msra.mxu0 %v125
    %1649 = vmatprep.subr.mxu0 0.0
    %1650 = vmatpush1.msra.mxu0 %v126
    %1651 = vmatprep.subr.mxu0 0.0
    %1652 = vmatpush1.msra.mxu0 %v127
    %1653 = vmatprep.subr.mxu0 0.0
    %1654 = vmatpush1.msra.mxu0 %v128
    %1655 = vmatprep.subr.mxu0 0.0
    %1656 = vmatpush1.msra.mxu0 0.0
    %1657 = vmatprep.subr.mxu0 0.0
    %1658 = vmatpush1.msra.mxu0 0.0
    %1659 = vmatprep.subr.mxu0 0.0
    %1660 = vmatpush1.msra.mxu0 0.0
    %1661 = vmatprep.subr.mxu0 0.0
    %1662 = vmatpush1.msra.mxu0 0.0
    %1663 = vmatprep.subr.mxu0 0.0
    %1664 = vmatpush1.msra.mxu0 0.0
    %1665 = vmatprep.subr.mxu0 0.0
    %1666 = vmatpush1.msra.mxu0 0.0
    %1667 = vmatprep.subr.mxu0 0.0
    %1668 = vmatpush1.msra.mxu0 0.0
    %1669 = vmatprep.subr.mxu0 0.0
    %1670 = vmatpush1.msra.mxu0 0.0
    %1671 = vmatprep.subr.mxu0 0.0
    %1672 = vmatpush1.msra.mxu0 0.0
    %1673 = vmatprep.subr.mxu0 0.0
    %1674 = vmatpush1.msra.mxu0 0.0
    %1675 = vmatprep.subr.mxu0 0.0
    %1676 = vmatpush1.msra.mxu0 0.0
    %1677 = vmatprep.subr.mxu0 0.0
    %1678 = vmatpush1.msra.mxu0 0.0
    %1679 = vmatprep.subr.mxu0 0.0
    %1680 = vmatpush1.msra.mxu0 0.0
    %1681 = vmatprep.subr.mxu0 0.0
    %1682 = vmatpush1.msra.mxu0 0.0
    %1683 = vmatprep.subr.mxu0 0.0
    %1684 = vmatpush1.msra.mxu0 0.0
    %1685 = vmatprep.subr.mxu0 0.0
    %1686 = vmatpush1.msra.mxu0 0.0
    %1687 = vmatprep.subr.mxu0 0.0
    %1688 = vmatpush1.msra.mxu0 0.0
    %1689 = vmatprep.subr.mxu0 0.0
    %1690 = vmatpush1.msra.mxu0 0.0
    %1691 = vmatprep.subr.mxu0 0.0
    %1692 = vmatpush1.msra.mxu0 0.0
    %1693 = vmatprep.subr.mxu0 0.0
    %1694 = vmatpush1.msra.mxu0 0.0
    %1695 = vmatprep.subr.mxu0 0.0
    %1696 = vmatpush1.msra.mxu0 0.0
    %1697 = vmatprep.subr.mxu0 0.0
    %1698 = vmatpush1.msra.mxu0 0.0
    %1699 = vmatprep.subr.mxu0 0.0
    %1700 = vmatpush1.msra.mxu0 0.0
    %1701 = vmatprep.subr.mxu0 0.0
    %1702 = vmatpush1.msra.mxu0 0.0
    %1703 = vmatprep.subr.mxu0 0.0
    %1704 = vmatpush1.msra.mxu0 0.0
    %1705 = vmatprep.subr.mxu0 0.0
    %1706 = vmatpush1.msra.mxu0 0.0
    %1707 = vmatprep.subr.mxu0 0.0
    %1708 = vmatpush1.msra.mxu0 0.0
    %1709 = vmatprep.subr.mxu0 0.0
    %1710 = vmatpush1.msra.mxu0 0.0
    %1711 = vmatprep.mubr.f32.mxu0 0.0
    %1712 = vmatmul.mubr.f32.gmra.mrb[0].mxu0 %v1645
    %v1713 = vpop.f32.mrb[0].mxu0
    %v1714 = vadd.f32 %v251, %v1713
    %v1715 = vpop.f32.mrb[0].mxu0
    %1716 = vdwg.mxu0
    %v1717 = vmax.f32 %v1714, 0.0
    %1718 = vmatprep.subr.mxu0 %v131
    %1719 = vmatpush1.msra.mxu0 %v130
    %1720 = vmatprep.subr.mxu0 %v134
    %1721 = vmatpush1.msra.mxu0 %v133
    %1722 = vmatprep.subr.mxu0 %v137
    %1723 = vmatpush1.msra.mxu0 %v136
    %1724 = vmatprep.subr.mxu0 %v140
    %1725 = vmatpush1.msra.mxu0 %v139
    %1726 = vmatprep.subr.mxu0 %v143
    %1727 = vmatpush1.msra.mxu0 %v142
    %1728 = vmatprep.subr.mxu0 %v146
    %1729 = vmatpush1.msra.mxu0 %v145
    %1730 = vmatprep.subr.mxu0 %v149
    %1731 = vmatpush1.msra.mxu0 %v148
    %1732 = vmatprep.subr.mxu0 %v152
    %1733 = vmatpush1.msra.mxu0 %v151
    %1734 = vmatprep.subr.mxu0 %v155
    %1735 = vmatpush1.msra.mxu0 %v154
    %1736 = vmatprep.subr.mxu0 %v158
    %1737 = vmatpush1.msra.mxu0 %v157
    %1738 = vmatprep.subr.mxu0 %v161
    %1739 = vmatpush1.msra.mxu0 %v160
    %1740 = vmatprep.subr.mxu0 %v164
    %1741 = vmatpush1.msra.mxu0 %v163
    %1742 = vmatprep.subr.mxu0 %v167
    %1743 = vmatpush1.msra.mxu0 %v166
    %1744 = vmatprep.subr.mxu0 %v170
    %1745 = vmatpush1.msra.mxu0 %v169
    %1746 = vmatprep.subr.mxu0 %v173
    %1747 = vmatpush1.msra.mxu0 %v172
    %1748 = vmatprep.subr.mxu0 %v176
    %1749 = vmatpush1.msra.mxu0 %v175
    %1750 = vmatprep.subr.mxu0 0.0
    %1751 = vmatpush1.msra.mxu0 0.0
    %1752 = vmatprep.subr.mxu0 0.0
    %1753 = vmatpush1.msra.mxu0 0.0
    %1754 = vmatprep.subr.mxu0 0.0
    %1755 = vmatpush1.msra.mxu0 0.0
    %1756 = vmatprep.subr.mxu0 0.0
    %1757 = vmatpush1.msra.mxu0 0.0
    %1758 = vmatprep.subr.mxu0 0.0
    %1759 = vmatpush1.msra.mxu0 0.0
    %1760 = vmatprep.subr.mxu0 0.0
    %1761 = vmatpush1.msra.mxu0 0.0
    %1762 = vmatprep.subr.mxu0 0.0
    %1763 = vmatpush1.msra.mxu0 0.0
    %1764 = vmatprep.subr.mxu0 0.0
    %1765 = vmatpush1.msra.mxu0 0.0
    %1766 = vmatprep.subr.mxu0 0.0
    %1767 = vmatpush1.msra.mxu0 0.0
    %1768 = vmatprep.subr.mxu0 0.0
    %1769 = vmatpush1.msra.mxu0 0.0
    %1770 = vmatprep.subr.mxu0 0.0
    %1771 = vmatpush1.msra.mxu0 0.0
    %1772 = vmatprep.subr.mxu0 0.0
    %1773 = vmatpush1.msra.mxu0 0.0
    %1774 = vmatprep.subr.mxu0 0.0
    %1775 = vmatpush1.msra.mxu0 0.0
    %1776 = vmatprep.subr.mxu0 0.0
    %1777 = vmatpush1.msra.mxu0 0.0
    %1778 = vmatprep.subr.mxu0 0.0
    %1779 = vmatpush1.msra.mxu0 0.0
    %1780 = vmatprep.subr.mxu0 0.0
    %1781 = vmatpush1.msra.mxu0 0.0
    %1782 = vmatprep.mubr.f32.mxu0 0.0
    %1783 = vmatmul.mubr.f32.gmra.mrb[0].mxu0 %v1717
    %v1784 = vpop.f32.mrb[0].mxu0
    %v1785 = vadd.f32 %v332, %v1784
    %v1786 = vpop.f32.mrb[0].mxu0
    %v1787 = vadd.f32 %v336, %v1786
    %1788 = vdwg.mxu0
    %1789 = vmatprep.subr.mxu0 0.0
    %1790 = vmatpush1.msra.mxu0 %v132
    %1791 = vmatprep.subr.mxu0 0.0
    %1792 = vmatpush1.msra.mxu0 %v135
    %1793 = vmatprep.subr.mxu0 0.0
    %1794 = vmatpush1.msra.mxu0 %v138
    %1795 = vmatprep.subr.mxu0 0.0
    %1796 = vmatpush1.msra.mxu0 %v141
    %1797 = vmatprep.subr.mxu0 0.0
    %1798 = vmatpush1.msra.mxu0 %v144
    %1799 = vmatprep.subr.mxu0 0.0
    %1800 = vmatpush1.msra.mxu0 %v147
    %1801 = vmatprep.subr.mxu0 0.0
    %1802 = vmatpush1.msra.mxu0 %v150
    %1803 = vmatprep.subr.mxu0 0.0
    %1804 = vmatpush1.msra.mxu0 %v153
    %1805 = vmatprep.subr.mxu0 0.0
    %1806 = vmatpush1.msra.mxu0 %v156
    %1807 = vmatprep.subr.mxu0 0.0
    %1808 = vmatpush1.msra.mxu0 %v159
    %1809 = vmatprep.subr.mxu0 0.0
    %1810 = vmatpush1.msra.mxu0 %v162
    %1811 = vmatprep.subr.mxu0 0.0
    %1812 = vmatpush1.msra.mxu0 %v165
    %1813 = vmatprep.subr.mxu0 0.0
    %1814 = vmatpush1.msra.mxu0 %v168
    %1815 = vmatprep.subr.mxu0 0.0
    %1816 = vmatpush1.msra.mxu0 %v171
    %1817 = vmatprep.subr.mxu0 0.0
    %1818 = vmatpush1.msra.mxu0 %v174
    %1819 = vmatprep.subr.mxu0 0.0
    %1820 = vmatpush1.msra.mxu0 %v177
    %1821 = vmatprep.subr.mxu0 0.0
    %1822 = vmatpush1.msra.mxu0 0.0
    %1823 = vmatprep.subr.mxu0 0.0
    %1824 = vmatpush1.msra.mxu0 0.0
    %1825 = vmatprep.subr.mxu0 0.0
    %1826 = vmatpush1.msra.mxu0 0.0
    %1827 = vmatprep.subr.mxu0 0.0
    %1828 = vmatpush1.msra.mxu0 0.0
    %1829 = vmatprep.subr.mxu0 0.0
    %1830 = vmatpush1.msra.mxu0 0.0
    %1831 = vmatprep.subr.mxu0 0.0
    %1832 = vmatpush1.msra.mxu0 0.0
    %1833 = vmatprep.subr.mxu0 0.0
    %1834 = vmatpush1.msra.mxu0 0.0
    %1835 = vmatprep.subr.mxu0 0.0
    %1836 = vmatpush1.msra.mxu0 0.0
    %1837 = vmatprep.subr.mxu0 0.0
    %1838 = vmatpush1.msra.mxu0 0.0
    %1839 = vmatprep.subr.mxu0 0.0
    %1840 = vmatpush1.msra.mxu0 0.0
    %1841 = vmatprep.subr.mxu0 0.0
    %1842 = vmatpush1.msra.mxu0 0.0
    %1843 = vmatprep.subr.mxu0 0.0
    %1844 = vmatpush1.msra.mxu0 0.0
    %1845 = vmatprep.subr.mxu0 0.0
    %1846 = vmatpush1.msra.mxu0 0.0
    %1847 = vmatprep.subr.mxu0 0.0
    %1848 = vmatpush1.msra.mxu0 0.0
    %1849 = vmatprep.subr.mxu0 0.0
    %1850 = vmatpush1.msra.mxu0 0.0
    %1851 = vmatprep.subr.mxu0 0.0
    %1852 = vmatpush1.msra.mxu0 0.0
    %1853 = vmatprep.mubr.f32.mxu0 0.0
    %1854 = vmatmul.mubr.f32.gmra.mrb[0].mxu0 %v1717
    %v1855 = vpop.f32.mrb[0].mxu0
    %v1856 = vadd.f32 %v340, %v1855
    %v1857 = vpop.f32.mrb[0].mxu0
    %1858 = vdwg.mxu0
    %1859 = vmatprep.subr.mxu0 %v179
    %1860 = vmatpush1.msra.mxu0 %v178
    %1861 = vmatprep.subr.mxu0 %v182
    %1862 = vmatpush1.msra.mxu0 %v181
    %1863 = vmatprep.subr.mxu0 %v185
    %1864 = vmatpush1.msra.mxu0 %v184
    %1865 = vmatprep.subr.mxu0 %v188
    %1866 = vmatpush1.msra.mxu0 %v187
    %1867 = vmatprep.subr.mxu0 %v191
    %1868 = vmatpush1.msra.mxu0 %v190
    %1869 = vmatprep.subr.mxu0 %v194
    %1870 = vmatpush1.msra.mxu0 %v193
    %1871 = vmatprep.subr.mxu0 %v197
    %1872 = vmatpush1.msra.mxu0 %v196
    %1873 = vmatprep.subr.mxu0 %v200
    %1874 = vmatpush1.msra.mxu0 %v199
    %1875 = vmatprep.subr.mxu0 %v203
    %1876 = vmatpush1.msra.mxu0 %v202
    %1877 = vmatprep.subr.mxu0 %v206
    %1878 = vmatpush1.msra.mxu0 %v205
    %1879 = vmatprep.subr.mxu0 %v209
    %1880 = vmatpush1.msra.mxu0 %v208
    %1881 = vmatprep.subr.mxu0 %v212
    %1882 = vmatpush1.msra.mxu0 %v211
    %1883 = vmatprep.subr.mxu0 %v215
    %1884 = vmatpush1.msra.mxu0 %v214
    %1885 = vmatprep.subr.mxu0 %v218
    %1886 = vmatpush1.msra.mxu0 %v217
    %1887 = vmatprep.subr.mxu0 %v221
    %1888 = vmatpush1.msra.mxu0 %v220
    %1889 = vmatprep.subr.mxu0 %v224
    %1890 = vmatpush1.msra.mxu0 %v223
    %1891 = vmatprep.subr.mxu0 0.0
    %1892 = vmatpush1.msra.mxu0 0.0
    %1893 = vmatprep.subr.mxu0 0.0
    %1894 = vmatpush1.msra.mxu0 0.0
    %1895 = vmatprep.subr.mxu0 0.0
    %1896 = vmatpush1.msra.mxu0 0.0
    %1897 = vmatprep.subr.mxu0 0.0
    %1898 = vmatpush1.msra.mxu0 0.0
    %1899 = vmatprep.subr.mxu0 0.0
    %1900 = vmatpush1.msra.mxu0 0.0
    %1901 = vmatprep.subr.mxu0 0.0
    %1902 = vmatpush1.msra.mxu0 0.0
    %1903 = vmatprep.subr.mxu0 0.0
    %1904 = vmatpush1.msra.mxu0 0.0
    %1905 = vmatprep.subr.mxu0 0.0
    %1906 = vmatpush1.msra.mxu0 0.0
    %1907 = vmatprep.subr.mxu0 0.0
    %1908 = vmatpush1.msra.mxu0 0.0
    %1909 = vmatprep.subr.mxu0 0.0
    %1910 = vmatpush1.msra.mxu0 0.0
    %1911 = vmatprep.subr.mxu0 0.0
    %1912 = vmatpush1.msra.mxu0 0.0
    %1913 = vmatprep.subr.mxu0 0.0
    %1914 = vmatpush1.msra.mxu0 0.0
    %1915 = vmatprep.subr.mxu0 0.0
    %1916 = vmatpush1.msra.mxu0 0.0
    %1917 = vmatprep.subr.mxu0 0.0
    %1918 = vmatpush1.msra.mxu0 0.0
    %1919 = vmatprep.subr.mxu0 0.0
    %1920 = vmatpush1.msra.mxu0 0.0
    %1921 = vmatprep.subr.mxu0 0.0
    %1922 = vmatpush1.msra.mxu0 0.0
    %1923 = vmatprep.mubr.f32.mxu0 0.0
    %1924 = vmatmul.mubr.f32.gmra.mrb[0].mxu0 %v1569
    %v1925 = vpop.f32.mrb[0].mxu0
    %v1926 = vadd.f32 %v489, %v1925
    %v1927 = vpop.f32.mrb[0].mxu0
    %v1928 = vadd.f32 %v493, %v1927
    %1929 = vdwg.mxu0
    %1930 = vmatprep.subr.mxu0 0.0
    %1931 = vmatpush1.msra.mxu0 %v180
    %1932 = vmatprep.subr.mxu0 0.0
    %1933 = vmatpush1.msra.mxu0 %v183
    %1934 = vmatprep.subr.mxu0 0.0
    %1935 = vmatpush1.msra.mxu0 %v186
    %1936 = vmatprep.subr.mxu0 0.0
    %1937 = vmatpush1.msra.mxu0 %v189
    %1938 = vmatprep.subr.mxu0 0.0
    %1939 = vmatpush1.msra.mxu0 %v192
    %1940 = vmatprep.subr.mxu0 0.0
    %1941 = vmatpush1.msra.mxu0 %v195
    %1942 = vmatprep.subr.mxu0 0.0
    %1943 = vmatpush1.msra.mxu0 %v198
    %1944 = vmatprep.subr.mxu0 0.0
    %1945 = vmatpush1.msra.mxu0 %v201
    %1946 = vmatprep.subr.mxu0 0.0
    %1947 = vmatpush1.msra.mxu0 %v204
    %1948 = vmatprep.subr.mxu0 0.0
    %1949 = vmatpush1.msra.mxu0 %v207
    %1950 = vmatprep.subr.mxu0 0.0
    %1951 = vmatpush1.msra.mxu0 %v210
    %1952 = vmatprep.subr.mxu0 0.0
    %1953 = vmatpush1.msra.mxu0 %v213
    %1954 = vmatprep.subr.mxu0 0.0
    %1955 = vmatpush1.msra.mxu0 %v216
    %1956 = vmatprep.subr.mxu0 0.0
    %1957 = vmatpush1.msra.mxu0 %v219
    %1958 = vmatprep.subr.mxu0 0.0
    %1959 = vmatpush1.msra.mxu0 %v222
    %1960 = vmatprep.subr.mxu0 0.0
    %1961 = vmatpush1.msra.mxu0 %v225
    %1962 = vmatprep.subr.mxu0 0.0
    %1963 = vmatpush1.msra.mxu0 0.0
    %1964 = vmatprep.subr.mxu0 0.0
    %1965 = vmatpush1.msra.mxu0 0.0
    %1966 = vmatprep.subr.mxu0 0.0
    %1967 = vmatpush1.msra.mxu0 0.0
    %1968 = vmatprep.subr.mxu0 0.0
    %1969 = vmatpush1.msra.mxu0 0.0
    %1970 = vmatprep.subr.mxu0 0.0
    %1971 = vmatpush1.msra.mxu0 0.0
    %1972 = vmatprep.subr.mxu0 0.0
    %1973 = vmatpush1.msra.mxu0 0.0
    %1974 = vmatprep.subr.mxu0 0.0
    %1975 = vmatpush1.msra.mxu0 0.0
    %1976 = vmatprep.subr.mxu0 0.0
    %1977 = vmatpush1.msra.mxu0 0.0
    %1978 = vmatprep.subr.mxu0 0.0
    %1979 = vmatpush1.msra.mxu0 0.0
    %1980 = vmatprep.subr.mxu0 0.0
    %1981 = vmatpush1.msra.mxu0 0.0
    %1982 = vmatprep.subr.mxu0 0.0
    %1983 = vmatpush1.msra.mxu0 0.0
    %1984 = vmatprep.subr.mxu0 0.0
    %1985 = vmatpush1.msra.mxu0 0.0
    %1986 = vmatprep.subr.mxu0 0.0
    %1987 = vmatpush1.msra.mxu0 0.0
    %1988 = vmatprep.subr.mxu0 0.0
    %1989 = vmatpush1.msra.mxu0 0.0
    %1990 = vmatprep.subr.mxu0 0.0
    %1991 = vmatpush1.msra.mxu0 0.0
    %1992 = vmatprep.subr.mxu0 0.0
    %1993 = vmatpush1.msra.mxu0 0.0
    %1994 = vmatprep.mubr.f32.mxu0 0.0
    %1995 = vmatmul.mubr.f32.gmra.mrb[0].mxu0 %v1569
    %v1996 = vpop.f32.mrb[0].mxu0
    %v1997 = vadd.f32 %v497, %v1996
    %v1998 = vpop.f32.mrb[0].mxu0
    %1999 = vdwg.mxu0
    %v2000 = vadd.f32 %v1785, %v1926
    %v2001 = vxor.u32 %v2000, 2147483648
    %v2002 = vmul.f32 %v2001, 1.442695
    %v2003 = vpow.pop %v2002
    %v2004 = vadd.f32 %v2003, 1.0
    %v2005 = vrcp.pop %v2004
    %v2006 = vmul.f32 1.0, %v2005
    %v2007 = vadd.f32 %v1787, %v1928
    %v2008 = vxor.u32 %v2007, 2147483648
    %v2009 = vmul.f32 %v2008, 1.442695
    %v2010 = vpow.pop %v2009
    %v2011 = vadd.f32 %v2010, 1.0
    %v2012 = vrcp.pop %v2011
    %v2013 = vmul.f32 1.0, %v2012
    %v2014 = vmul.f32 %v2006, %v1997
    %v2015 = vadd.f32 %v1856, %v2014
    %v2016 = vtanh.pop %v2015
    %v2017 = vsub.f32 1.0, %v2013
    %v2018 = vmul.f32 %v2017, %v2016
    %v2019 = vmul.f32 %v2013, %v1569
    %v2020 = vadd.f32 %v2018, %v2019
    %2021 = vmatprep.subr.mxu0 0.0
    %2022 = vmatpush1.msra.mxu0 %v228
    %2023 = vmatprep.subr.mxu0 0.0
    %2024 = vmatpush1.msra.mxu0 %v229
    %2025 = vmatprep.subr.mxu0 0.0
    %2026 = vmatpush1.msra.mxu0 %v230
    %2027 = vmatprep.subr.mxu0 0.0
    %2028 = vmatpush1.msra.mxu0 %v231
    %2029 = vmatprep.subr.mxu0 0.0
    %2030 = vmatpush1.msra.mxu0 %v232
    %2031 = vmatprep.subr.mxu0 0.0
    %2032 = vmatpush1.msra.mxu0 %v233
    %2033 = vmatprep.subr.mxu0 0.0
    %2034 = vmatpush1.msra.mxu0 %v234
    %2035 = vmatprep.subr.mxu0 0.0
    %2036 = vmatpush1.msra.mxu0 %v235
    %2037 = vmatprep.subr.mxu0 0.0
    %2038 = vmatpush1.msra.mxu0 %v236
    %2039 = vmatprep.subr.mxu0 0.0
    %2040 = vmatpush1.msra.mxu0 %v237
    %2041 = vmatprep.subr.mxu0 0.0
    %2042 = vmatpush1.msra.mxu0 %v238
    %2043 = vmatprep.subr.mxu0 0.0
    %2044 = vmatpush1.msra.mxu0 %v239
    %2045 = vmatprep.subr.mxu0 0.0
    %2046 = vmatpush1.msra.mxu0 %v240
    %2047 = vmatprep.subr.mxu0 0.0
    %2048 = vmatpush1.msra.mxu0 %v241
    %2049 = vmatprep.subr.mxu0 0.0
    %2050 = vmatpush1.msra.mxu0 %v242
    %2051 = vmatprep.subr.mxu0 0.0
    %2052 = vmatpush1.msra.mxu0 %v243
    %2053 = vmatprep.subr.mxu0 0.0
    %2054 = vmatpush1.msra.mxu0 0.0
    %2055 = vmatprep.subr.mxu0 0.0
    %2056 = vmatpush1.msra.mxu0 0.0
    %2057 = vmatprep.subr.mxu0 0.0
    %2058 = vmatpush1.msra.mxu0 0.0
    %2059 = vmatprep.subr.mxu0 0.0
    %2060 = vmatpush1.msra.mxu0 0.0
    %2061 = vmatprep.subr.mxu0 0.0
    %2062 = vmatpush1.msra.mxu0 0.0
    %2063 = vmatprep.subr.mxu0 0.0
    %2064 = vmatpush1.msra.mxu0 0.0
    %2065 = vmatprep.subr.mxu0 0.0
    %2066 = vmatpush1.msra.mxu0 0.0
    %2067 = vmatprep.subr.mxu0 0.0
    %2068 = vmatpush1.msra.mxu0 0.0
    %2069 = vmatprep.subr.mxu0 0.0
    %2070 = vmatpush1.msra.mxu0 0.0
    %2071 = vmatprep.subr.mxu0 0.0
    %2072 = vmatpush1.msra.mxu0 0.0
    %2073 = vmatprep.subr.mxu0 0.0
    %2074 = vmatpush1.msra.mxu0 0.0
    %2075 = vmatprep.subr.mxu0 0.0
    %2076 = vmatpush1.msra.mxu0 0.0
    %2077 = vmatprep.subr.mxu0 0.0
    %2078 = vmatpush1.msra.mxu0 0.0
    %2079 = vmatprep.subr.mxu0 0.0
    %2080 = vmatpush1.msra.mxu0 0.0
    %2081 = vmatprep.subr.mxu0 0.0
    %2082 = vmatpush1.msra.mxu0 0.0
    %2083 = vmatprep.subr.mxu0 0.0
    %2084 = vmatpush1.msra.mxu0 0.0
    %2085 = vmatprep.mubr.f32.mxu0 0.0
    %2086 = vmatmul.mubr.f32.gmra.mrb[0].mxu0 %v2020
    %v2087 = vpop.f32.mrb[0].mxu0
    %v2088 = vadd.f32 %v667, %v2087
    %v2089 = vpop.f32.mrb[0].mxu0
    %2090 = vdwg.mxu0
    %s2091 = scalar_lea.vmem [#allocation13], 24
    %2092 = vst [vmem:[%s2091] sm:$0xff] %v2088
    %s2093 = scalar_lea.vmem [#allocation2], 32
    %v2094 = vld [vmem:[%s2093] sm:$0xff]
    %v2096 = vsel %vm253, %v2094, 0
    %2098 = vmatprep.subr.mxu0 0.0
    %2099 = vmatpush1.msra.mxu0 %v125
    %2100 = vmatprep.subr.mxu0 0.0
    %2101 = vmatpush1.msra.mxu0 %v126
    %2102 = vmatprep.subr.mxu0 0.0
    %2103 = vmatpush1.msra.mxu0 %v127
    %2104 = vmatprep.subr.mxu0 0.0
    %2105 = vmatpush1.msra.mxu0 %v128
    %2106 = vmatprep.subr.mxu0 0.0
    %2107 = vmatpush1.msra.mxu0 0.0
    %2108 = vmatprep.subr.mxu0 0.0
    %2109 = vmatpush1.msra.mxu0 0.0
    %2110 = vmatprep.subr.mxu0 0.0
    %2111 = vmatpush1.msra.mxu0 0.0
    %2112 = vmatprep.subr.mxu0 0.0
    %2113 = vmatpush1.msra.mxu0 0.0
    %2114 = vmatprep.subr.mxu0 0.0
    %2115 = vmatpush1.msra.mxu0 0.0
    %2116 = vmatprep.subr.mxu0 0.0
    %2117 = vmatpush1.msra.mxu0 0.0
    %2118 = vmatprep.subr.mxu0 0.0
    %2119 = vmatpush1.msra.mxu0 0.0
    %2120 = vmatprep.subr.mxu0 0.0
    %2121 = vmatpush1.msra.mxu0 0.0
    %2122 = vmatprep.subr.mxu0 0.0
    %2123 = vmatpush1.msra.mxu0 0.0
    %2124 = vmatprep.subr.mxu0 0.0
    %2125 = vmatpush1.msra.mxu0 0.0
    %2126 = vmatprep.subr.mxu0 0.0
    %2127 = vmatpush1.msra.mxu0 0.0
    %2128 = vmatprep.subr.mxu0 0.0
    %2129 = vmatpush1.msra.mxu0 0.0
    %2130 = vmatprep.subr.mxu0 0.0
    %2131 = vmatpush1.msra.mxu0 0.0
    %2132 = vmatprep.subr.mxu0 0.0
    %2133 = vmatpush1.msra.mxu0 0.0
    %2134 = vmatprep.subr.mxu0 0.0
    %2135 = vmatpush1.msra.mxu0 0.0
    %2136 = vmatprep.subr.mxu0 0.0
    %2137 = vmatpush1.msra.mxu0 0.0
    %2138 = vmatprep.subr.mxu0 0.0
    %2139 = vmatpush1.msra.mxu0 0.0
    %2140 = vmatprep.subr.mxu0 0.0
    %2141 = vmatpush1.msra.mxu0 0.0
    %2142 = vmatprep.subr.mxu0 0.0
    %2143 = vmatpush1.msra.mxu0 0.0
    %2144 = vmatprep.subr.mxu0 0.0
    %2145 = vmatpush1.msra.mxu0 0.0
    %2146 = vmatprep.subr.mxu0 0.0
    %2147 = vmatpush1.msra.mxu0 0.0
    %2148 = vmatprep.subr.mxu0 0.0
    %2149 = vmatpush1.msra.mxu0 0.0
    %2150 = vmatprep.subr.mxu0 0.0
    %2151 = vmatpush1.msra.mxu0 0.0
    %2152 = vmatprep.subr.mxu0 0.0
    %2153 = vmatpush1.msra.mxu0 0.0
    %2154 = vmatprep.subr.mxu0 0.0
    %2155 = vmatpush1.msra.mxu0 0.0
    %2156 = vmatprep.subr.mxu0 0.0
    %2157 = vmatpush1.msra.mxu0 0.0
    %2158 = vmatprep.subr.mxu0 0.0
    %2159 = vmatpush1.msra.mxu0 0.0
    %2160 = vmatprep.subr.mxu0 0.0
    %2161 = vmatpush1.msra.mxu0 0.0
    %2162 = vmatprep.mubr.f32.mxu0 0.0
    %2163 = vmatmul.mubr.f32.gmra.mrb[0].mxu0 %v2096
    %v2164 = vpop.f32.mrb[0].mxu0
    %v2165 = vadd.f32 %v251, %v2164
    %v2166 = vpop.f32.mrb[0].mxu0
    %2167 = vdwg.mxu0
    %v2168 = vmax.f32 %v2165, 0.0
    %2169 = vmatprep.subr.mxu0 %v131
    %2170 = vmatpush1.msra.mxu0 %v130
    %2171 = vmatprep.subr.mxu0 %v134
    %2172 = vmatpush1.msra.mxu0 %v133
    %2173 = vmatprep.subr.mxu0 %v137
    %2174 = vmatpush1.msra.mxu0 %v136
    %2175 = vmatprep.subr.mxu0 %v140
    %2176 = vmatpush1.msra.mxu0 %v139
    %2177 = vmatprep.subr.mxu0 %v143
    %2178 = vmatpush1.msra.mxu0 %v142
    %2179 = vmatprep.subr.mxu0 %v146
    %2180 = vmatpush1.msra.mxu0 %v145
    %2181 = vmatprep.subr.mxu0 %v149
    %2182 = vmatpush1.msra.mxu0 %v148
    %2183 = vmatprep.subr.mxu0 %v152
    %2184 = vmatpush1.msra.mxu0 %v151
    %2185 = vmatprep.subr.mxu0 %v155
    %2186 = vmatpush1.msra.mxu0 %v154
    %2187 = vmatprep.subr.mxu0 %v158
    %2188 = vmatpush1.msra.mxu0 %v157
    %2189 = vmatprep.subr.mxu0 %v161
    %2190 = vmatpush1.msra.mxu0 %v160
    %2191 = vmatprep.subr.mxu0 %v164
    %2192 = vmatpush1.msra.mxu0 %v163
    %2193 = vmatprep.subr.mxu0 %v167
    %2194 = vmatpush1.msra.mxu0 %v166
    %2195 = vmatprep.subr.mxu0 %v170
    %2196 = vmatpush1.msra.mxu0 %v169
    %2197 = vmatprep.subr.mxu0 %v173
    %2198 = vmatpush1.msra.mxu0 %v172
    %2199 = vmatprep.subr.mxu0 %v176
    %2200 = vmatpush1.msra.mxu0 %v175
    %2201 = vmatprep.subr.mxu0 0.0
    %2202 = vmatpush1.msra.mxu0 0.0
    %2203 = vmatprep.subr.mxu0 0.0
    %2204 = vmatpush1.msra.mxu0 0.0
    %2205 = vmatprep.subr.mxu0 0.0
    %2206 = vmatpush1.msra.mxu0 0.0
    %2207 = vmatprep.subr.mxu0 0.0
    %2208 = vmatpush1.msra.mxu0 0.0
    %2209 = vmatprep.subr.mxu0 0.0
    %2210 = vmatpush1.msra.mxu0 0.0
    %2211 = vmatprep.subr.mxu0 0.0
    %2212 = vmatpush1.msra.mxu0 0.0
    %2213 = vmatprep.subr.mxu0 0.0
    %2214 = vmatpush1.msra.mxu0 0.0
    %2215 = vmatprep.subr.mxu0 0.0
    %2216 = vmatpush1.msra.mxu0 0.0
    %2217 = vmatprep.subr.mxu0 0.0
    %2218 = vmatpush1.msra.mxu0 0.0
    %2219 = vmatprep.subr.mxu0 0.0
    %2220 = vmatpush1.msra.mxu0 0.0
    %2221 = vmatprep.subr.mxu0 0.0
    %2222 = vmatpush1.msra.mxu0 0.0
    %2223 = vmatprep.subr.mxu0 0.0
    %2224 = vmatpush1.msra.mxu0 0.0
    %2225 = vmatprep.subr.mxu0 0.0
    %2226 = vmatpush1.msra.mxu0 0.0
    %2227 = vmatprep.subr.mxu0 0.0
    %2228 = vmatpush1.msra.mxu0 0.0
    %2229 = vmatprep.subr.mxu0 0.0
    %2230 = vmatpush1.msra.mxu0 0.0
    %2231 = vmatprep.subr.mxu0 0.0
    %2232 = vmatpush1.msra.mxu0 0.0
    %2233 = vmatprep.mubr.f32.mxu0 0.0
    %2234 = vmatmul.mubr.f32.gmra.mrb[0].mxu0 %v2168
    %v2235 = vpop.f32.mrb[0].mxu0
    %v2236 = vadd.f32 %v332, %v2235
    %v2237 = vpop.f32.mrb[0].mxu0
    %v2238 = vadd.f32 %v336, %v2237
    %2239 = vdwg.mxu0
    %2240 = vmatprep.subr.mxu0 0.0
    %2241 = vmatpush1.msra.mxu0 %v132
    %2242 = vmatprep.subr.mxu0 0.0
    %2243 = vmatpush1.msra.mxu0 %v135
    %2244 = vmatprep.subr.mxu0 0.0
    %2245 = vmatpush1.msra.mxu0 %v138
    %2246 = vmatprep.subr.mxu0 0.0
    %2247 = vmatpush1.msra.mxu0 %v141
    %2248 = vmatprep.subr.mxu0 0.0
    %2249 = vmatpush1.msra.mxu0 %v144
    %2250 = vmatprep.subr.mxu0 0.0
    %2251 = vmatpush1.msra.mxu0 %v147
    %2252 = vmatprep.subr.mxu0 0.0
    %2253 = vmatpush1.msra.mxu0 %v150
    %2254 = vmatprep.subr.mxu0 0.0
    %2255 = vmatpush1.msra.mxu0 %v153
    %2256 = vmatprep.subr.mxu0 0.0
    %2257 = vmatpush1.msra.mxu0 %v156
    %2258 = vmatprep.subr.mxu0 0.0
    %2259 = vmatpush1.msra.mxu0 %v159
    %2260 = vmatprep.subr.mxu0 0.0
    %2261 = vmatpush1.msra.mxu0 %v162
    %2262 = vmatprep.subr.mxu0 0.0
    %2263 = vmatpush1.msra.mxu0 %v165
    %2264 = vmatprep.subr.mxu0 0.0
    %2265 = vmatpush1.msra.mxu0 %v168
    %2266 = vmatprep.subr.mxu0 0.0
    %2267 = vmatpush1.msra.mxu0 %v171
    %2268 = vmatprep.subr.mxu0 0.0
    %2269 = vmatpush1.msra.mxu0 %v174
    %2270 = vmatprep.subr.mxu0 0.0
    %2271 = vmatpush1.msra.mxu0 %v177
    %2272 = vmatprep.subr.mxu0 0.0
    %2273 = vmatpush1.msra.mxu0 0.0
    %2274 = vmatprep.subr.mxu0 0.0
    %2275 = vmatpush1.msra.mxu0 0.0
    %2276 = vmatprep.subr.mxu0 0.0
    %2277 = vmatpush1.msra.mxu0 0.0
    %2278 = vmatprep.subr.mxu0 0.0
    %2279 = vmatpush1.msra.mxu0 0.0
    %2280 = vmatprep.subr.mxu0 0.0
    %2281 = vmatpush1.msra.mxu0 0.0
    %2282 = vmatprep.subr.mxu0 0.0
    %2283 = vmatpush1.msra.mxu0 0.0
    %2284 = vmatprep.subr.mxu0 0.0
    %2285 = vmatpush1.msra.mxu0 0.0
    %2286 = vmatprep.subr.mxu0 0.0
    %2287 = vmatpush1.msra.mxu0 0.0
    %2288 = vmatprep.subr.mxu0 0.0
    %2289 = vmatpush1.msra.mxu0 0.0
    %2290 = vmatprep.subr.mxu0 0.0
    %2291 = vmatpush1.msra.mxu0 0.0
    %2292 = vmatprep.subr.mxu0 0.0
    %2293 = vmatpush1.msra.mxu0 0.0
    %2294 = vmatprep.subr.mxu0 0.0
    %2295 = vmatpush1.msra.mxu0 0.0
    %2296 = vmatprep.subr.mxu0 0.0
    %2297 = vmatpush1.msra.mxu0 0.0
    %2298 = vmatprep.subr.mxu0 0.0
    %2299 = vmatpush1.msra.mxu0 0.0
    %2300 = vmatprep.subr.mxu0 0.0
    %2301 = vmatpush1.msra.mxu0 0.0
    %2302 = vmatprep.subr.mxu0 0.0
    %2303 = vmatpush1.msra.mxu0 0.0
    %2304 = vmatprep.mubr.f32.mxu0 0.0
    %2305 = vmatmul.mubr.f32.gmra.mrb[0].mxu0 %v2168
    %v2306 = vpop.f32.mrb[0].mxu0
    %v2307 = vadd.f32 %v340, %v2306
    %v2308 = vpop.f32.mrb[0].mxu0
    %2309 = vdwg.mxu0
    %2310 = vmatprep.subr.mxu0 %v179
    %2311 = vmatpush1.msra.mxu0 %v178
    %2312 = vmatprep.subr.mxu0 %v182
    %2313 = vmatpush1.msra.mxu0 %v181
    %2314 = vmatprep.subr.mxu0 %v185
    %2315 = vmatpush1.msra.mxu0 %v184
    %2316 = vmatprep.subr.mxu0 %v188
    %2317 = vmatpush1.msra.mxu0 %v187
    %2318 = vmatprep.subr.mxu0 %v191
    %2319 = vmatpush1.msra.mxu0 %v190
    %2320 = vmatprep.subr.mxu0 %v194
    %2321 = vmatpush1.msra.mxu0 %v193
    %2322 = vmatprep.subr.mxu0 %v197
    %2323 = vmatpush1.msra.mxu0 %v196
    %2324 = vmatprep.subr.mxu0 %v200
    %2325 = vmatpush1.msra.mxu0 %v199
    %2326 = vmatprep.subr.mxu0 %v203
    %2327 = vmatpush1.msra.mxu0 %v202
    %2328 = vmatprep.subr.mxu0 %v206
    %2329 = vmatpush1.msra.mxu0 %v205
    %2330 = vmatprep.subr.mxu0 %v209
    %2331 = vmatpush1.msra.mxu0 %v208
    %2332 = vmatprep.subr.mxu0 %v212
    %2333 = vmatpush1.msra.mxu0 %v211
    %2334 = vmatprep.subr.mxu0 %v215
    %2335 = vmatpush1.msra.mxu0 %v214
    %2336 = vmatprep.subr.mxu0 %v218
    %2337 = vmatpush1.msra.mxu0 %v217
    %2338 = vmatprep.subr.mxu0 %v221
    %2339 = vmatpush1.msra.mxu0 %v220
    %2340 = vmatprep.subr.mxu0 %v224
    %2341 = vmatpush1.msra.mxu0 %v223
    %2342 = vmatprep.subr.mxu0 0.0
    %2343 = vmatpush1.msra.mxu0 0.0
    %2344 = vmatprep.subr.mxu0 0.0
    %2345 = vmatpush1.msra.mxu0 0.0
    %2346 = vmatprep.subr.mxu0 0.0
    %2347 = vmatpush1.msra.mxu0 0.0
    %2348 = vmatprep.subr.mxu0 0.0
    %2349 = vmatpush1.msra.mxu0 0.0
    %2350 = vmatprep.subr.mxu0 0.0
    %2351 = vmatpush1.msra.mxu0 0.0
    %2352 = vmatprep.subr.mxu0 0.0
    %2353 = vmatpush1.msra.mxu0 0.0
    %2354 = vmatprep.subr.mxu0 0.0
    %2355 = vmatpush1.msra.mxu0 0.0
    %2356 = vmatprep.subr.mxu0 0.0
    %2357 = vmatpush1.msra.mxu0 0.0
    %2358 = vmatprep.subr.mxu0 0.0
    %2359 = vmatpush1.msra.mxu0 0.0
    %2360 = vmatprep.subr.mxu0 0.0
    %2361 = vmatpush1.msra.mxu0 0.0
    %2362 = vmatprep.subr.mxu0 0.0
    %2363 = vmatpush1.msra.mxu0 0.0
    %2364 = vmatprep.subr.mxu0 0.0
    %2365 = vmatpush1.msra.mxu0 0.0
    %2366 = vmatprep.subr.mxu0 0.0
    %2367 = vmatpush1.msra.mxu0 0.0
    %2368 = vmatprep.subr.mxu0 0.0
    %2369 = vmatpush1.msra.mxu0 0.0
    %2370 = vmatprep.subr.mxu0 0.0
    %2371 = vmatpush1.msra.mxu0 0.0
    %2372 = vmatprep.subr.mxu0 0.0
    %2373 = vmatpush1.msra.mxu0 0.0
    %2374 = vmatprep.mubr.f32.mxu0 0.0
    %2375 = vmatmul.mubr.f32.gmra.mrb[0].mxu0 %v2020
    %v2376 = vpop.f32.mrb[0].mxu0
    %v2377 = vadd.f32 %v489, %v2376
    %v2378 = vpop.f32.mrb[0].mxu0
    %v2379 = vadd.f32 %v493, %v2378
    %2380 = vdwg.mxu0
    %2381 = vmatprep.subr.mxu0 0.0
    %2382 = vmatpush1.msra.mxu0 %v180
    %2383 = vmatprep.subr.mxu0 0.0
    %2384 = vmatpush1.msra.mxu0 %v183
    %2385 = vmatprep.subr.mxu0 0.0
    %2386 = vmatpush1.msra.mxu0 %v186
    %2387 = vmatprep.subr.mxu0 0.0
    %2388 = vmatpush1.msra.mxu0 %v189
    %2389 = vmatprep.subr.mxu0 0.0
    %2390 = vmatpush1.msra.mxu0 %v192
    %2391 = vmatprep.subr.mxu0 0.0
    %2392 = vmatpush1.msra.mxu0 %v195
    %2393 = vmatprep.subr.mxu0 0.0
    %2394 = vmatpush1.msra.mxu0 %v198
    %2395 = vmatprep.subr.mxu0 0.0
    %2396 = vmatpush1.msra.mxu0 %v201
    %2397 = vmatprep.subr.mxu0 0.0
    %2398 = vmatpush1.msra.mxu0 %v204
    %2399 = vmatprep.subr.mxu0 0.0
    %2400 = vmatpush1.msra.mxu0 %v207
    %2401 = vmatprep.subr.mxu0 0.0
    %2402 = vmatpush1.msra.mxu0 %v210
    %2403 = vmatprep.subr.mxu0 0.0
    %2404 = vmatpush1.msra.mxu0 %v213
    %2405 = vmatprep.subr.mxu0 0.0
    %2406 = vmatpush1.msra.mxu0 %v216
    %2407 = vmatprep.subr.mxu0 0.0
    %2408 = vmatpush1.msra.mxu0 %v219
    %2409 = vmatprep.subr.mxu0 0.0
    %2410 = vmatpush1.msra.mxu0 %v222
    %2411 = vmatprep.subr.mxu0 0.0
    %2412 = vmatpush1.msra.mxu0 %v225
    %2413 = vmatprep.subr.mxu0 0.0
    %2414 = vmatpush1.msra.mxu0 0.0
    %2415 = vmatprep.subr.mxu0 0.0
    %2416 = vmatpush1.msra.mxu0 0.0
    %2417 = vmatprep.subr.mxu0 0.0
    %2418 = vmatpush1.msra.mxu0 0.0
    %2419 = vmatprep.subr.mxu0 0.0
    %2420 = vmatpush1.msra.mxu0 0.0
    %2421 = vmatprep.subr.mxu0 0.0
    %2422 = vmatpush1.msra.mxu0 0.0
    %2423 = vmatprep.subr.mxu0 0.0
    %2424 = vmatpush1.msra.mxu0 0.0
    %2425 = vmatprep.subr.mxu0 0.0
    %2426 = vmatpush1.msra.mxu0 0.0
    %2427 = vmatprep.subr.mxu0 0.0
    %2428 = vmatpush1.msra.mxu0 0.0
    %2429 = vmatprep.subr.mxu0 0.0
    %2430 = vmatpush1.msra.mxu0 0.0
    %2431 = vmatprep.subr.mxu0 0.0
    %2432 = vmatpush1.msra.mxu0 0.0
    %2433 = vmatprep.subr.mxu0 0.0
    %2434 = vmatpush1.msra.mxu0 0.0
    %2435 = vmatprep.subr.mxu0 0.0
    %2436 = vmatpush1.msra.mxu0 0.0
    %2437 = vmatprep.subr.mxu0 0.0
    %2438 = vmatpush1.msra.mxu0 0.0
    %2439 = vmatprep.subr.mxu0 0.0
    %2440 = vmatpush1.msra.mxu0 0.0
    %2441 = vmatprep.subr.mxu0 0.0
    %2442 = vmatpush1.msra.mxu0 0.0
    %2443 = vmatprep.subr.mxu0 0.0
    %2444 = vmatpush1.msra.mxu0 0.0
    %2445 = vmatprep.mubr.f32.mxu0 0.0
    %2446 = vmatmul.mubr.f32.gmra.mrb[0].mxu0 %v2020
    %v2447 = vpop.f32.mrb[0].mxu0
    %v2448 = vadd.f32 %v497, %v2447
    %v2449 = vpop.f32.mrb[0].mxu0
    %2450 = vdwg.mxu0
    %v2451 = vadd.f32 %v2236, %v2377
    %v2452 = vxor.u32 %v2451, 2147483648
    %v2453 = vmul.f32 %v2452, 1.442695
    %v2454 = vpow.pop %v2453
    %v2455 = vadd.f32 %v2454, 1.0
    %v2456 = vrcp.pop %v2455
    %v2457 = vmul.f32 1.0, %v2456
    %v2458 = vadd.f32 %v2238, %v2379
    %v2459 = vxor.u32 %v2458, 2147483648
    %v2460 = vmul.f32 %v2459, 1.442695
    %v2461 = vpow.pop %v2460
    %v2462 = vadd.f32 %v2461, 1.0
    %v2463 = vrcp.pop %v2462
    %v2464 = vmul.f32 1.0, %v2463
    %v2465 = vmul.f32 %v2457, %v2448
    %v2466 = vadd.f32 %v2307, %v2465
    %v2467 = vtanh.pop %v2466
    %v2468 = vsub.f32 1.0, %v2464
    %v2469 = vmul.f32 %v2468, %v2467
    %v2470 = vmul.f32 %v2464, %v2020
    %v2471 = vadd.f32 %v2469, %v2470
    %2472 = vmatprep.subr.mxu0 0.0
    %2473 = vmatpush1.msra.mxu0 %v228
    %2474 = vmatprep.subr.mxu0 0.0
    %2475 = vmatpush1.msra.mxu0 %v229
    %2476 = vmatprep.subr.mxu0 0.0
    %2477 = vmatpush1.msra.mxu0 %v230
    %2478 = vmatprep.subr.mxu0 0.0
    %2479 = vmatpush1.msra.mxu0 %v231
    %2480 = vmatprep.subr.mxu0 0.0
    %2481 = vmatpush1.msra.mxu0 %v232
    %2482 = vmatprep.subr.mxu0 0.0
    %2483 = vmatpush1.msra.mxu0 %v233
    %2484 = vmatprep.subr.mxu0 0.0
    %2485 = vmatpush1.msra.mxu0 %v234
    %2486 = vmatprep.subr.mxu0 0.0
    %2487 = vmatpush1.msra.mxu0 %v235
    %2488 = vmatprep.subr.mxu0 0.0
    %2489 = vmatpush1.msra.mxu0 %v236
    %2490 = vmatprep.subr.mxu0 0.0
    %2491 = vmatpush1.msra.mxu0 %v237
    %2492 = vmatprep.subr.mxu0 0.0
    %2493 = vmatpush1.msra.mxu0 %v238
    %2494 = vmatprep.subr.mxu0 0.0
    %2495 = vmatpush1.msra.mxu0 %v239
    %2496 = vmatprep.subr.mxu0 0.0
    %2497 = vmatpush1.msra.mxu0 %v240
    %2498 = vmatprep.subr.mxu0 0.0
    %2499 = vmatpush1.msra.mxu0 %v241
    %2500 = vmatprep.subr.mxu0 0.0
    %2501 = vmatpush1.msra.mxu0 %v242
    %2502 = vmatprep.subr.mxu0 0.0
    %2503 = vmatpush1.msra.mxu0 %v243
    %2504 = vmatprep.subr.mxu0 0.0
    %2505 = vmatpush1.msra.mxu0 0.0
    %2506 = vmatprep.subr.mxu0 0.0
    %2507 = vmatpush1.msra.mxu0 0.0
    %2508 = vmatprep.subr.mxu0 0.0
    %2509 = vmatpush1.msra.mxu0 0.0
    %2510 = vmatprep.subr.mxu0 0.0
    %2511 = vmatpush1.msra.mxu0 0.0
    %2512 = vmatprep.subr.mxu0 0.0
    %2513 = vmatpush1.msra.mxu0 0.0
    %2514 = vmatprep.subr.mxu0 0.0
    %2515 = vmatpush1.msra.mxu0 0.0
    %2516 = vmatprep.subr.mxu0 0.0
    %2517 = vmatpush1.msra.mxu0 0.0
    %2518 = vmatprep.subr.mxu0 0.0
    %2519 = vmatpush1.msra.mxu0 0.0
    %2520 = vmatprep.subr.mxu0 0.0
    %2521 = vmatpush1.msra.mxu0 0.0
    %2522 = vmatprep.subr.mxu0 0.0
    %2523 = vmatpush1.msra.mxu0 0.0
    %2524 = vmatprep.subr.mxu0 0.0
    %2525 = vmatpush1.msra.mxu0 0.0
    %2526 = vmatprep.subr.mxu0 0.0
    %2527 = vmatpush1.msra.mxu0 0.0
    %2528 = vmatprep.subr.mxu0 0.0
    %2529 = vmatpush1.msra.mxu0 0.0
    %2530 = vmatprep.subr.mxu0 0.0
    %2531 = vmatpush1.msra.mxu0 0.0
    %2532 = vmatprep.subr.mxu0 0.0
    %2533 = vmatpush1.msra.mxu0 0.0
    %2534 = vmatprep.subr.mxu0 0.0
    %2535 = vmatpush1.msra.mxu0 0.0
    %2536 = vmatprep.mubr.f32.mxu0 0.0
    %2537 = vmatmul.mubr.f32.gmra.mrb[0].mxu0 %v2471
    %v2538 = vpop.f32.mrb[0].mxu0
    %v2539 = vadd.f32 %v667, %v2538
    %v2540 = vpop.f32.mrb[0].mxu0
    %2541 = vdwg.mxu0
    %s2542 = scalar_lea.vmem [#allocation13], 32
    %2543 = vst [vmem:[%s2542] sm:$0xff] %v2539
    %s2544 = scalar_lea.vmem [#allocation2], 40
    %v2545 = vld [vmem:[%s2544] sm:$0xff]
    %v2547 = vsel %vm253, %v2545, 0
    %2549 = vmatprep.subr.mxu0 0.0
    %2550 = vmatpush1.msra.mxu0 %v125
    %2551 = vmatprep.subr.mxu0 0.0
    %2552 = vmatpush1.msra.mxu0 %v126
    %2553 = vmatprep.subr.mxu0 0.0
    %2554 = vmatpush1.msra.mxu0 %v127
    %2555 = vmatprep.subr.mxu0 0.0
    %2556 = vmatpush1.msra.mxu0 %v128
    %2557 = vmatprep.subr.mxu0 0.0
    %2558 = vmatpush1.msra.mxu0 0.0
    %2559 = vmatprep.subr.mxu0 0.0
    %2560 = vmatpush1.msra.mxu0 0.0
    %2561 = vmatprep.subr.mxu0 0.0
    %2562 = vmatpush1.msra.mxu0 0.0
    %2563 = vmatprep.subr.mxu0 0.0
    %2564 = vmatpush1.msra.mxu0 0.0
    %2565 = vmatprep.subr.mxu0 0.0
    %2566 = vmatpush1.msra.mxu0 0.0
    %2567 = vmatprep.subr.mxu0 0.0
    %2568 = vmatpush1.msra.mxu0 0.0
    %2569 = vmatprep.subr.mxu0 0.0
    %2570 = vmatpush1.msra.mxu0 0.0
    %2571 = vmatprep.subr.mxu0 0.0
    %2572 = vmatpush1.msra.mxu0 0.0
    %2573 = vmatprep.subr.mxu0 0.0
    %2574 = vmatpush1.msra.mxu0 0.0
    %2575 = vmatprep.subr.mxu0 0.0
    %2576 = vmatpush1.msra.mxu0 0.0
    %2577 = vmatprep.subr.mxu0 0.0
    %2578 = vmatpush1.msra.mxu0 0.0
    %2579 = vmatprep.subr.mxu0 0.0
    %2580 = vmatpush1.msra.mxu0 0.0
    %2581 = vmatprep.subr.mxu0 0.0
    %2582 = vmatpush1.msra.mxu0 0.0
    %2583 = vmatprep.subr.mxu0 0.0
    %2584 = vmatpush1.msra.mxu0 0.0
    %2585 = vmatprep.subr.mxu0 0.0
    %2586 = vmatpush1.msra.mxu0 0.0
    %2587 = vmatprep.subr.mxu0 0.0
    %2588 = vmatpush1.msra.mxu0 0.0
    %2589 = vmatprep.subr.mxu0 0.0
    %2590 = vmatpush1.msra.mxu0 0.0
    %2591 = vmatprep.subr.mxu0 0.0
    %2592 = vmatpush1.msra.mxu0 0.0
    %2593 = vmatprep.subr.mxu0 0.0
    %2594 = vmatpush1.msra.mxu0 0.0
    %2595 = vmatprep.subr.mxu0 0.0
    %2596 = vmatpush1.msra.mxu0 0.0
    %2597 = vmatprep.subr.mxu0 0.0
    %2598 = vmatpush1.msra.mxu0 0.0
    %2599 = vmatprep.subr.mxu0 0.0
    %2600 = vmatpush1.msra.mxu0 0.0
    %2601 = vmatprep.subr.mxu0 0.0
    %2602 = vmatpush1.msra.mxu0 0.0
    %2603 = vmatprep.subr.mxu0 0.0
    %2604 = vmatpush1.msra.mxu0 0.0
    %2605 = vmatprep.subr.mxu0 0.0
    %2606 = vmatpush1.msra.mxu0 0.0
    %2607 = vmatprep.subr.mxu0 0.0
    %2608 = vmatpush1.msra.mxu0 0.0
    %2609 = vmatprep.subr.mxu0 0.0
    %2610 = vmatpush1.msra.mxu0 0.0
    %2611 = vmatprep.subr.mxu0 0.0
    %2612 = vmatpush1.msra.mxu0 0.0
    %2613 = vmatprep.mubr.f32.mxu0 0.0
    %2614 = vmatmul.mubr.f32.gmra.mrb[0].mxu0 %v2547
    %v2615 = vpop.f32.mrb[0].mxu0
    %v2616 = vadd.f32 %v251, %v2615
    %v2617 = vpop.f32.mrb[0].mxu0
    %2618 = vdwg.mxu0
    %v2619 = vmax.f32 %v2616, 0.0
    %2620 = vmatprep.subr.mxu0 %v131
    %2621 = vmatpush1.msra.mxu0 %v130
    %2622 = vmatprep.subr.mxu0 %v134
    %2623 = vmatpush1.msra.mxu0 %v133
    %2624 = vmatprep.subr.mxu0 %v137
    %2625 = vmatpush1.msra.mxu0 %v136
    %2626 = vmatprep.subr.mxu0 %v140
    %2627 = vmatpush1.msra.mxu0 %v139
    %2628 = vmatprep.subr.mxu0 %v143
    %2629 = vmatpush1.msra.mxu0 %v142
    %2630 = vmatprep.subr.mxu0 %v146
    %2631 = vmatpush1.msra.mxu0 %v145
    %2632 = vmatprep.subr.mxu0 %v149
    %2633 = vmatpush1.msra.mxu0 %v148
    %2634 = vmatprep.subr.mxu0 %v152
    %2635 = vmatpush1.msra.mxu0 %v151
    %2636 = vmatprep.subr.mxu0 %v155
    %2637 = vmatpush1.msra.mxu0 %v154
    %2638 = vmatprep.subr.mxu0 %v158
    %2639 = vmatpush1.msra.mxu0 %v157
    %2640 = vmatprep.subr.mxu0 %v161
    %2641 = vmatpush1.msra.mxu0 %v160
    %2642 = vmatprep.subr.mxu0 %v164
    %2643 = vmatpush1.msra.mxu0 %v163
    %2644 = vmatprep.subr.mxu0 %v167
    %2645 = vmatpush1.msra.mxu0 %v166
    %2646 = vmatprep.subr.mxu0 %v170
    %2647 = vmatpush1.msra.mxu0 %v169
    %2648 = vmatprep.subr.mxu0 %v173
    %2649 = vmatpush1.msra.mxu0 %v172
    %2650 = vmatprep.subr.mxu0 %v176
    %2651 = vmatpush1.msra.mxu0 %v175
    %2652 = vmatprep.subr.mxu0 0.0
    %2653 = vmatpush1.msra.mxu0 0.0
    %2654 = vmatprep.subr.mxu0 0.0
    %2655 = vmatpush1.msra.mxu0 0.0
    %2656 = vmatprep.subr.mxu0 0.0
    %2657 = vmatpush1.msra.mxu0 0.0
    %2658 = vmatprep.subr.mxu0 0.0
    %2659 = vmatpush1.msra.mxu0 0.0
    %2660 = vmatprep.subr.mxu0 0.0
    %2661 = vmatpush1.msra.mxu0 0.0
    %2662 = vmatprep.subr.mxu0 0.0
    %2663 = vmatpush1.msra.mxu0 0.0
    %2664 = vmatprep.subr.mxu0 0.0
    %2665 = vmatpush1.msra.mxu0 0.0
    %2666 = vmatprep.subr.mxu0 0.0
    %2667 = vmatpush1.msra.mxu0 0.0
    %2668 = vmatprep.subr.mxu0 0.0
    %2669 = vmatpush1.msra.mxu0 0.0
    %2670 = vmatprep.subr.mxu0 0.0
    %2671 = vmatpush1.msra.mxu0 0.0
    %2672 = vmatprep.subr.mxu0 0.0
    %2673 = vmatpush1.msra.mxu0 0.0
    %2674 = vmatprep.subr.mxu0 0.0
    %2675 = vmatpush1.msra.mxu0 0.0
    %2676 = vmatprep.subr.mxu0 0.0
    %2677 = vmatpush1.msra.mxu0 0.0
    %2678 = vmatprep.subr.mxu0 0.0
    %2679 = vmatpush1.msra.mxu0 0.0
    %2680 = vmatprep.subr.mxu0 0.0
    %2681 = vmatpush1.msra.mxu0 0.0
    %2682 = vmatprep.subr.mxu0 0.0
    %2683 = vmatpush1.msra.mxu0 0.0
    %2684 = vmatprep.mubr.f32.mxu0 0.0
    %2685 = vmatmul.mubr.f32.gmra.mrb[0].mxu0 %v2619
    %v2686 = vpop.f32.mrb[0].mxu0
    %v2687 = vadd.f32 %v332, %v2686
    %v2688 = vpop.f32.mrb[0].mxu0
    %v2689 = vadd.f32 %v336, %v2688
    %2690 = vdwg.mxu0
    %2691 = vmatprep.subr.mxu0 0.0
    %2692 = vmatpush1.msra.mxu0 %v132
    %2693 = vmatprep.subr.mxu0 0.0
    %2694 = vmatpush1.msra.mxu0 %v135
    %2695 = vmatprep.subr.mxu0 0.0
    %2696 = vmatpush1.msra.mxu0 %v138
    %2697 = vmatprep.subr.mxu0 0.0
    %2698 = vmatpush1.msra.mxu0 %v141
    %2699 = vmatprep.subr.mxu0 0.0
    %2700 = vmatpush1.msra.mxu0 %v144
    %2701 = vmatprep.subr.mxu0 0.0
    %2702 = vmatpush1.msra.mxu0 %v147
    %2703 = vmatprep.subr.mxu0 0.0
    %2704 = vmatpush1.msra.mxu0 %v150
    %2705 = vmatprep.subr.mxu0 0.0
    %2706 = vmatpush1.msra.mxu0 %v153
    %2707 = vmatprep.subr.mxu0 0.0
    %2708 = vmatpush1.msra.mxu0 %v156
    %2709 = vmatprep.subr.mxu0 0.0
    %2710 = vmatpush1.msra.mxu0 %v159
    %2711 = vmatprep.subr.mxu0 0.0
    %2712 = vmatpush1.msra.mxu0 %v162
    %2713 = vmatprep.subr.mxu0 0.0
    %2714 = vmatpush1.msra.mxu0 %v165
    %2715 = vmatprep.subr.mxu0 0.0
    %2716 = vmatpush1.msra.mxu0 %v168
    %2717 = vmatprep.subr.mxu0 0.0
    %2718 = vmatpush1.msra.mxu0 %v171
    %2719 = vmatprep.subr.mxu0 0.0
    %2720 = vmatpush1.msra.mxu0 %v174
    %2721 = vmatprep.subr.mxu0 0.0
    %2722 = vmatpush1.msra.mxu0 %v177
    %2723 = vmatprep.subr.mxu0 0.0
    %2724 = vmatpush1.msra.mxu0 0.0
    %2725 = vmatprep.subr.mxu0 0.0
    %2726 = vmatpush1.msra.mxu0 0.0
    %2727 = vmatprep.subr.mxu0 0.0
    %2728 = vmatpush1.msra.mxu0 0.0
    %2729 = vmatprep.subr.mxu0 0.0
    %2730 = vmatpush1.msra.mxu0 0.0
    %2731 = vmatprep.subr.mxu0 0.0
    %2732 = vmatpush1.msra.mxu0 0.0
    %2733 = vmatprep.subr.mxu0 0.0
    %2734 = vmatpush1.msra.mxu0 0.0
    %2735 = vmatprep.subr.mxu0 0.0
    %2736 = vmatpush1.msra.mxu0 0.0
    %2737 = vmatprep.subr.mxu0 0.0
    %2738 = vmatpush1.msra.mxu0 0.0
    %2739 = vmatprep.subr.mxu0 0.0
    %2740 = vmatpush1.msra.mxu0 0.0
    %2741 = vmatprep.subr.mxu0 0.0
    %2742 = vmatpush1.msra.mxu0 0.0
    %2743 = vmatprep.subr.mxu0 0.0
    %2744 = vmatpush1.msra.mxu0 0.0
    %2745 = vmatprep.subr.mxu0 0.0
    %2746 = vmatpush1.msra.mxu0 0.0
    %2747 = vmatprep.subr.mxu0 0.0
    %2748 = vmatpush1.msra.mxu0 0.0
    %2749 = vmatprep.subr.mxu0 0.0
    %2750 = vmatpush1.msra.mxu0 0.0
    %2751 = vmatprep.subr.mxu0 0.0
    %2752 = vmatpush1.msra.mxu0 0.0
    %2753 = vmatprep.subr.mxu0 0.0
    %2754 = vmatpush1.msra.mxu0 0.0
    %2755 = vmatprep.mubr.f32.mxu0 0.0
    %2756 = vmatmul.mubr.f32.gmra.mrb[0].mxu0 %v2619
    %v2757 = vpop.f32.mrb[0].mxu0
    %v2758 = vadd.f32 %v340, %v2757
    %v2759 = vpop.f32.mrb[0].mxu0
    %2760 = vdwg.mxu0
    %2761 = vmatprep.subr.mxu0 %v179
    %2762 = vmatpush1.msra.mxu0 %v178
    %2763 = vmatprep.subr.mxu0 %v182
    %2764 = vmatpush1.msra.mxu0 %v181
    %2765 = vmatprep.subr.mxu0 %v185
    %2766 = vmatpush1.msra.mxu0 %v184
    %2767 = vmatprep.subr.mxu0 %v188
    %2768 = vmatpush1.msra.mxu0 %v187
    %2769 = vmatprep.subr.mxu0 %v191
    %2770 = vmatpush1.msra.mxu0 %v190
    %2771 = vmatprep.subr.mxu0 %v194
    %2772 = vmatpush1.msra.mxu0 %v193
    %2773 = vmatprep.subr.mxu0 %v197
    %2774 = vmatpush1.msra.mxu0 %v196
    %2775 = vmatprep.subr.mxu0 %v200
    %2776 = vmatpush1.msra.mxu0 %v199
    %2777 = vmatprep.subr.mxu0 %v203
    %2778 = vmatpush1.msra.mxu0 %v202
    %2779 = vmatprep.subr.mxu0 %v206
    %2780 = vmatpush1.msra.mxu0 %v205
    %2781 = vmatprep.subr.mxu0 %v209
    %2782 = vmatpush1.msra.mxu0 %v208
    %2783 = vmatprep.subr.mxu0 %v212
    %2784 = vmatpush1.msra.mxu0 %v211
    %2785 = vmatprep.subr.mxu0 %v215
    %2786 = vmatpush1.msra.mxu0 %v214
    %2787 = vmatprep.subr.mxu0 %v218
    %2788 = vmatpush1.msra.mxu0 %v217
    %2789 = vmatprep.subr.mxu0 %v221
    %2790 = vmatpush1.msra.mxu0 %v220
    %2791 = vmatprep.subr.mxu0 %v224
    %2792 = vmatpush1.msra.mxu0 %v223
    %2793 = vmatprep.subr.mxu0 0.0
    %2794 = vmatpush1.msra.mxu0 0.0
    %2795 = vmatprep.subr.mxu0 0.0
    %2796 = vmatpush1.msra.mxu0 0.0
    %2797 = vmatprep.subr.mxu0 0.0
    %2798 = vmatpush1.msra.mxu0 0.0
    %2799 = vmatprep.subr.mxu0 0.0
    %2800 = vmatpush1.msra.mxu0 0.0
    %2801 = vmatprep.subr.mxu0 0.0
    %2802 = vmatpush1.msra.mxu0 0.0
    %2803 = vmatprep.subr.mxu0 0.0
    %2804 = vmatpush1.msra.mxu0 0.0
    %2805 = vmatprep.subr.mxu0 0.0
    %2806 = vmatpush1.msra.mxu0 0.0
    %2807 = vmatprep.subr.mxu0 0.0
    %2808 = vmatpush1.msra.mxu0 0.0
    %2809 = vmatprep.subr.mxu0 0.0
    %2810 = vmatpush1.msra.mxu0 0.0
    %2811 = vmatprep.subr.mxu0 0.0
    %2812 = vmatpush1.msra.mxu0 0.0
    %2813 = vmatprep.subr.mxu0 0.0
    %2814 = vmatpush1.msra.mxu0 0.0
    %2815 = vmatprep.subr.mxu0 0.0
    %2816 = vmatpush1.msra.mxu0 0.0
    %2817 = vmatprep.subr.mxu0 0.0
    %2818 = vmatpush1.msra.mxu0 0.0
    %2819 = vmatprep.subr.mxu0 0.0
    %2820 = vmatpush1.msra.mxu0 0.0
    %2821 = vmatprep.subr.mxu0 0.0
    %2822 = vmatpush1.msra.mxu0 0.0
    %2823 = vmatprep.subr.mxu0 0.0
    %2824 = vmatpush1.msra.mxu0 0.0
    %2825 = vmatprep.mubr.f32.mxu0 0.0
    %2826 = vmatmul.mubr.f32.gmra.mrb[0].mxu0 %v2471
    %v2827 = vpop.f32.mrb[0].mxu0
    %v2828 = vadd.f32 %v489, %v2827
    %v2829 = vpop.f32.mrb[0].mxu0
    %v2830 = vadd.f32 %v493, %v2829
    %2831 = vdwg.mxu0
    %2832 = vmatprep.subr.mxu0 0.0
    %2833 = vmatpush1.msra.mxu0 %v180
    %2834 = vmatprep.subr.mxu0 0.0
    %2835 = vmatpush1.msra.mxu0 %v183
    %2836 = vmatprep.subr.mxu0 0.0
    %2837 = vmatpush1.msra.mxu0 %v186
    %2838 = vmatprep.subr.mxu0 0.0
    %2839 = vmatpush1.msra.mxu0 %v189
    %2840 = vmatprep.subr.mxu0 0.0
    %2841 = vmatpush1.msra.mxu0 %v192
    %2842 = vmatprep.subr.mxu0 0.0
    %2843 = vmatpush1.msra.mxu0 %v195
    %2844 = vmatprep.subr.mxu0 0.0
    %2845 = vmatpush1.msra.mxu0 %v198
    %2846 = vmatprep.subr.mxu0 0.0
    %2847 = vmatpush1.msra.mxu0 %v201
    %2848 = vmatprep.subr.mxu0 0.0
    %2849 = vmatpush1.msra.mxu0 %v204
    %2850 = vmatprep.subr.mxu0 0.0
    %2851 = vmatpush1.msra.mxu0 %v207
    %2852 = vmatprep.subr.mxu0 0.0
    %2853 = vmatpush1.msra.mxu0 %v210
    %2854 = vmatprep.subr.mxu0 0.0
    %2855 = vmatpush1.msra.mxu0 %v213
    %2856 = vmatprep.subr.mxu0 0.0
    %2857 = vmatpush1.msra.mxu0 %v216
    %2858 = vmatprep.subr.mxu0 0.0
    %2859 = vmatpush1.msra.mxu0 %v219
    %2860 = vmatprep.subr.mxu0 0.0
    %2861 = vmatpush1.msra.mxu0 %v222
    %2862 = vmatprep.subr.mxu0 0.0
    %2863 = vmatpush1.msra.mxu0 %v225
    %2864 = vmatprep.subr.mxu0 0.0
    %2865 = vmatpush1.msra.mxu0 0.0
    %2866 = vmatprep.subr.mxu0 0.0
    %2867 = vmatpush1.msra.mxu0 0.0
    %2868 = vmatprep.subr.mxu0 0.0
    %2869 = vmatpush1.msra.mxu0 0.0
    %2870 = vmatprep.subr.mxu0 0.0
    %2871 = vmatpush1.msra.mxu0 0.0
    %2872 = vmatprep.subr.mxu0 0.0
    %2873 = vmatpush1.msra.mxu0 0.0
    %2874 = vmatprep.subr.mxu0 0.0
    %2875 = vmatpush1.msra.mxu0 0.0
    %2876 = vmatprep.subr.mxu0 0.0
    %2877 = vmatpush1.msra.mxu0 0.0
    %2878 = vmatprep.subr.mxu0 0.0
    %2879 = vmatpush1.msra.mxu0 0.0
    %2880 = vmatprep.subr.mxu0 0.0
    %2881 = vmatpush1.msra.mxu0 0.0
    %2882 = vmatprep.subr.mxu0 0.0
    %2883 = vmatpush1.msra.mxu0 0.0
    %2884 = vmatprep.subr.mxu0 0.0
    %2885 = vmatpush1.msra.mxu0 0.0
    %2886 = vmatprep.subr.mxu0 0.0
    %2887 = vmatpush1.msra.mxu0 0.0
    %2888 = vmatprep.subr.mxu0 0.0
    %2889 = vmatpush1.msra.mxu0 0.0
    %2890 = vmatprep.subr.mxu0 0.0
    %2891 = vmatpush1.msra.mxu0 0.0
    %2892 = vmatprep.subr.mxu0 0.0
    %2893 = vmatpush1.msra.mxu0 0.0
    %2894 = vmatprep.subr.mxu0 0.0
    %2895 = vmatpush1.msra.mxu0 0.0
    %2896 = vmatprep.mubr.f32.mxu0 0.0
    %2897 = vmatmul.mubr.f32.gmra.mrb[0].mxu0 %v2471
    %v2898 = vpop.f32.mrb[0].mxu0
    %v2899 = vadd.f32 %v497, %v2898
    %v2900 = vpop.f32.mrb[0].mxu0
    %2901 = vdwg.mxu0
    %v2902 = vadd.f32 %v2687, %v2828
    %v2903 = vxor.u32 %v2902, 2147483648
    %v2904 = vmul.f32 %v2903, 1.442695
    %v2905 = vpow.pop %v2904
    %v2906 = vadd.f32 %v2905, 1.0
    %v2907 = vrcp.pop %v2906
    %v2908 = vmul.f32 1.0, %v2907
    %v2909 = vadd.f32 %v2689, %v2830
    %v2910 = vxor.u32 %v2909, 2147483648
    %v2911 = vmul.f32 %v2910, 1.442695
    %v2912 = vpow.pop %v2911
    %v2913 = vadd.f32 %v2912, 1.0
    %v2914 = vrcp.pop %v2913
    %v2915 = vmul.f32 1.0, %v2914
    %v2916 = vmul.f32 %v2908, %v2899
    %v2917 = vadd.f32 %v2758, %v2916
    %v2918 = vtanh.pop %v2917
    %v2919 = vsub.f32 1.0, %v2915
    %v2920 = vmul.f32 %v2919, %v2918
    %v2921 = vmul.f32 %v2915, %v2471
    %v2922 = vadd.f32 %v2920, %v2921
    %2923 = vmatprep.subr.mxu0 0.0
    %2924 = vmatpush1.msra.mxu0 %v228
    %2925 = vmatprep.subr.mxu0 0.0
    %2926 = vmatpush1.msra.mxu0 %v229
    %2927 = vmatprep.subr.mxu0 0.0
    %2928 = vmatpush1.msra.mxu0 %v230
    %2929 = vmatprep.subr.mxu0 0.0
    %2930 = vmatpush1.msra.mxu0 %v231
    %2931 = vmatprep.subr.mxu0 0.0
    %2932 = vmatpush1.msra.mxu0 %v232
    %2933 = vmatprep.subr.mxu0 0.0
    %2934 = vmatpush1.msra.mxu0 %v233
    %2935 = vmatprep.subr.mxu0 0.0
    %2936 = vmatpush1.msra.mxu0 %v234
    %2937 = vmatprep.subr.mxu0 0.0
    %2938 = vmatpush1.msra.mxu0 %v235
    %2939 = vmatprep.subr.mxu0 0.0
    %2940 = vmatpush1.msra.mxu0 %v236
    %2941 = vmatprep.subr.mxu0 0.0
    %2942 = vmatpush1.msra.mxu0 %v237
    %2943 = vmatprep.subr.mxu0 0.0
    %2944 = vmatpush1.msra.mxu0 %v238
    %2945 = vmatprep.subr.mxu0 0.0
    %2946 = vmatpush1.msra.mxu0 %v239
    %2947 = vmatprep.subr.mxu0 0.0
    %2948 = vmatpush1.msra.mxu0 %v240
    %2949 = vmatprep.subr.mxu0 0.0
    %2950 = vmatpush1.msra.mxu0 %v241
    %2951 = vmatprep.subr.mxu0 0.0
    %2952 = vmatpush1.msra.mxu0 %v242
    %2953 = vmatprep.subr.mxu0 0.0
    %2954 = vmatpush1.msra.mxu0 %v243
    %2955 = vmatprep.subr.mxu0 0.0
    %2956 = vmatpush1.msra.mxu0 0.0
    %2957 = vmatprep.subr.mxu0 0.0
    %2958 = vmatpush1.msra.mxu0 0.0
    %2959 = vmatprep.subr.mxu0 0.0
    %2960 = vmatpush1.msra.mxu0 0.0
    %2961 = vmatprep.subr.mxu0 0.0
    %2962 = vmatpush1.msra.mxu0 0.0
    %2963 = vmatprep.subr.mxu0 0.0
    %2964 = vmatpush1.msra.mxu0 0.0
    %2965 = vmatprep.subr.mxu0 0.0
    %2966 = vmatpush1.msra.mxu0 0.0
    %2967 = vmatprep.subr.mxu0 0.0
    %2968 = vmatpush1.msra.mxu0 0.0
    %2969 = vmatprep.subr.mxu0 0.0
    %2970 = vmatpush1.msra.mxu0 0.0
    %2971 = vmatprep.subr.mxu0 0.0
    %2972 = vmatpush1.msra.mxu0 0.0
    %2973 = vmatprep.subr.mxu0 0.0
    %2974 = vmatpush1.msra.mxu0 0.0
    %2975 = vmatprep.subr.mxu0 0.0
    %2976 = vmatpush1.msra.mxu0 0.0
    %2977 = vmatprep.subr.mxu0 0.0
    %2978 = vmatpush1.msra.mxu0 0.0
    %2979 = vmatprep.subr.mxu0 0.0
    %2980 = vmatpush1.msra.mxu0 0.0
    %2981 = vmatprep.subr.mxu0 0.0
    %2982 = vmatpush1.msra.mxu0 0.0
    %2983 = vmatprep.subr.mxu0 0.0
    %2984 = vmatpush1.msra.mxu0 0.0
    %2985 = vmatprep.subr.mxu0 0.0
    %2986 = vmatpush1.msra.mxu0 0.0
    %2987 = vmatprep.mubr.f32.mxu0 0.0
    %2988 = vmatmul.mubr.f32.gmra.mrb[0].mxu0 %v2922
    %v2989 = vpop.f32.mrb[0].mxu0
    %v2990 = vadd.f32 %v667, %v2989
    %v2991 = vpop.f32.mrb[0].mxu0
    %2992 = vdwg.mxu0
    %s2993 = scalar_lea.vmem [#allocation13], 40
    %2994 = vst [vmem:[%s2993] sm:$0xff] %v2990
    %s2995 = scalar_lea.vmem [#allocation2], 48
    %v2996 = vld [vmem:[%s2995] sm:$0xff]
    %v2998 = vsel %vm253, %v2996, 0
    %3000 = vmatprep.subr.mxu0 0.0
    %3001 = vmatpush1.msra.mxu0 %v125
    %3002 = vmatprep.subr.mxu0 0.0
    %3003 = vmatpush1.msra.mxu0 %v126
    %3004 = vmatprep.subr.mxu0 0.0
    %3005 = vmatpush1.msra.mxu0 %v127
    %3006 = vmatprep.subr.mxu0 0.0
    %3007 = vmatpush1.msra.mxu0 %v128
    %3008 = vmatprep.subr.mxu0 0.0
    %3009 = vmatpush1.msra.mxu0 0.0
    %3010 = vmatprep.subr.mxu0 0.0
    %3011 = vmatpush1.msra.mxu0 0.0
    %3012 = vmatprep.subr.mxu0 0.0
    %3013 = vmatpush1.msra.mxu0 0.0
    %3014 = vmatprep.subr.mxu0 0.0
    %3015 = vmatpush1.msra.mxu0 0.0
    %3016 = vmatprep.subr.mxu0 0.0
    %3017 = vmatpush1.msra.mxu0 0.0
    %3018 = vmatprep.subr.mxu0 0.0
    %3019 = vmatpush1.msra.mxu0 0.0
    %3020 = vmatprep.subr.mxu0 0.0
    %3021 = vmatpush1.msra.mxu0 0.0
    %3022 = vmatprep.subr.mxu0 0.0
    %3023 = vmatpush1.msra.mxu0 0.0
    %3024 = vmatprep.subr.mxu0 0.0
    %3025 = vmatpush1.msra.mxu0 0.0
    %3026 = vmatprep.subr.mxu0 0.0
    %3027 = vmatpush1.msra.mxu0 0.0
    %3028 = vmatprep.subr.mxu0 0.0
    %3029 = vmatpush1.msra.mxu0 0.0
    %3030 = vmatprep.subr.mxu0 0.0
    %3031 = vmatpush1.msra.mxu0 0.0
    %3032 = vmatprep.subr.mxu0 0.0
    %3033 = vmatpush1.msra.mxu0 0.0
    %3034 = vmatprep.subr.mxu0 0.0
    %3035 = vmatpush1.msra.mxu0 0.0
    %3036 = vmatprep.subr.mxu0 0.0
    %3037 = vmatpush1.msra.mxu0 0.0
    %3038 = vmatprep.subr.mxu0 0.0
    %3039 = vmatpush1.msra.mxu0 0.0
    %3040 = vmatprep.subr.mxu0 0.0
    %3041 = vmatpush1.msra.mxu0 0.0
    %3042 = vmatprep.subr.mxu0 0.0
    %3043 = vmatpush1.msra.mxu0 0.0
    %3044 = vmatprep.subr.mxu0 0.0
    %3045 = vmatpush1.msra.mxu0 0.0
    %3046 = vmatprep.subr.mxu0 0.0
    %3047 = vmatpush1.msra.mxu0 0.0
    %3048 = vmatprep.subr.mxu0 0.0
    %3049 = vmatpush1.msra.mxu0 0.0
    %3050 = vmatprep.subr.mxu0 0.0
    %3051 = vmatpush1.msra.mxu0 0.0
    %3052 = vmatprep.subr.mxu0 0.0
    %3053 = vmatpush1.msra.mxu0 0.0
    %3054 = vmatprep.subr.mxu0 0.0
    %3055 = vmatpush1.msra.mxu0 0.0
    %3056 = vmatprep.subr.mxu0 0.0
    %3057 = vmatpush1.msra.mxu0 0.0
    %3058 = vmatprep.subr.mxu0 0.0
    %3059 = vmatpush1.msra.mxu0 0.0
    %3060 = vmatprep.subr.mxu0 0.0
    %3061 = vmatpush1.msra.mxu0 0.0
    %3062 = vmatprep.subr.mxu0 0.0
    %3063 = vmatpush1.msra.mxu0 0.0
    %3064 = vmatprep.mubr.f32.mxu0 0.0
    %3065 = vmatmul.mubr.f32.gmra.mrb[0].mxu0 %v2998
    %v3066 = vpop.f32.mrb[0].mxu0
    %v3067 = vadd.f32 %v251, %v3066
    %v3068 = vpop.f32.mrb[0].mxu0
    %3069 = vdwg.mxu0
    %v3070 = vmax.f32 %v3067, 0.0
    %3071 = vmatprep.subr.mxu0 %v131
    %3072 = vmatpush1.msra.mxu0 %v130
    %3073 = vmatprep.subr.mxu0 %v134
    %3074 = vmatpush1.msra.mxu0 %v133
    %3075 = vmatprep.subr.mxu0 %v137
    %3076 = vmatpush1.msra.mxu0 %v136
    %3077 = vmatprep.subr.mxu0 %v140
    %3078 = vmatpush1.msra.mxu0 %v139
    %3079 = vmatprep.subr.mxu0 %v143
    %3080 = vmatpush1.msra.mxu0 %v142
    %3081 = vmatprep.subr.mxu0 %v146
    %3082 = vmatpush1.msra.mxu0 %v145
    %3083 = vmatprep.subr.mxu0 %v149
    %3084 = vmatpush1.msra.mxu0 %v148
    %3085 = vmatprep.subr.mxu0 %v152
    %3086 = vmatpush1.msra.mxu0 %v151
    %3087 = vmatprep.subr.mxu0 %v155
    %3088 = vmatpush1.msra.mxu0 %v154
    %3089 = vmatprep.subr.mxu0 %v158
    %3090 = vmatpush1.msra.mxu0 %v157
    %3091 = vmatprep.subr.mxu0 %v161
    %3092 = vmatpush1.msra.mxu0 %v160
    %3093 = vmatprep.subr.mxu0 %v164
    %3094 = vmatpush1.msra.mxu0 %v163
    %3095 = vmatprep.subr.mxu0 %v167
    %3096 = vmatpush1.msra.mxu0 %v166
    %3097 = vmatprep.subr.mxu0 %v170
    %3098 = vmatpush1.msra.mxu0 %v169
    %3099 = vmatprep.subr.mxu0 %v173
    %3100 = vmatpush1.msra.mxu0 %v172
    %3101 = vmatprep.subr.mxu0 %v176
    %3102 = vmatpush1.msra.mxu0 %v175
    %3103 = vmatprep.subr.mxu0 0.0
    %3104 = vmatpush1.msra.mxu0 0.0
    %3105 = vmatprep.subr.mxu0 0.0
    %3106 = vmatpush1.msra.mxu0 0.0
    %3107 = vmatprep.subr.mxu0 0.0
    %3108 = vmatpush1.msra.mxu0 0.0
    %3109 = vmatprep.subr.mxu0 0.0
    %3110 = vmatpush1.msra.mxu0 0.0
    %3111 = vmatprep.subr.mxu0 0.0
    %3112 = vmatpush1.msra.mxu0 0.0
    %3113 = vmatprep.subr.mxu0 0.0
    %3114 = vmatpush1.msra.mxu0 0.0
    %3115 = vmatprep.subr.mxu0 0.0
    %3116 = vmatpush1.msra.mxu0 0.0
    %3117 = vmatprep.subr.mxu0 0.0
    %3118 = vmatpush1.msra.mxu0 0.0
    %3119 = vmatprep.subr.mxu0 0.0
    %3120 = vmatpush1.msra.mxu0 0.0
    %3121 = vmatprep.subr.mxu0 0.0
    %3122 = vmatpush1.msra.mxu0 0.0
    %3123 = vmatprep.subr.mxu0 0.0
    %3124 = vmatpush1.msra.mxu0 0.0
    %3125 = vmatprep.subr.mxu0 0.0
    %3126 = vmatpush1.msra.mxu0 0.0
    %3127 = vmatprep.subr.mxu0 0.0
    %3128 = vmatpush1.msra.mxu0 0.0
    %3129 = vmatprep.subr.mxu0 0.0
    %3130 = vmatpush1.msra.mxu0 0.0
    %3131 = vmatprep.subr.mxu0 0.0
    %3132 = vmatpush1.msra.mxu0 0.0
    %3133 = vmatprep.subr.mxu0 0.0
    %3134 = vmatpush1.msra.mxu0 0.0
    %3135 = vmatprep.mubr.f32.mxu0 0.0
    %3136 = vmatmul.mubr.f32.gmra.mrb[0].mxu0 %v3070
    %v3137 = vpop.f32.mrb[0].mxu0
    %v3138 = vadd.f32 %v332, %v3137
    %v3139 = vpop.f32.mrb[0].mxu0
    %v3140 = vadd.f32 %v336, %v3139
    %3141 = vdwg.mxu0
    %3142 = vmatprep.subr.mxu0 0.0
    %3143 = vmatpush1.msra.mxu0 %v132
    %3144 = vmatprep.subr.mxu0 0.0
    %3145 = vmatpush1.msra.mxu0 %v135
    %3146 = vmatprep.subr.mxu0 0.0
    %3147 = vmatpush1.msra.mxu0 %v138
    %3148 = vmatprep.subr.mxu0 0.0
    %3149 = vmatpush1.msra.mxu0 %v141
    %3150 = vmatprep.subr.mxu0 0.0
    %3151 = vmatpush1.msra.mxu0 %v144
    %3152 = vmatprep.subr.mxu0 0.0
    %3153 = vmatpush1.msra.mxu0 %v147
    %3154 = vmatprep.subr.mxu0 0.0
    %3155 = vmatpush1.msra.mxu0 %v150
    %3156 = vmatprep.subr.mxu0 0.0
    %3157 = vmatpush1.msra.mxu0 %v153
    %3158 = vmatprep.subr.mxu0 0.0
    %3159 = vmatpush1.msra.mxu0 %v156
    %3160 = vmatprep.subr.mxu0 0.0
    %3161 = vmatpush1.msra.mxu0 %v159
    %3162 = vmatprep.subr.mxu0 0.0
    %3163 = vmatpush1.msra.mxu0 %v162
    %3164 = vmatprep.subr.mxu0 0.0
    %3165 = vmatpush1.msra.mxu0 %v165
    %3166 = vmatprep.subr.mxu0 0.0
    %3167 = vmatpush1.msra.mxu0 %v168
    %3168 = vmatprep.subr.mxu0 0.0
    %3169 = vmatpush1.msra.mxu0 %v171
    %3170 = vmatprep.subr.mxu0 0.0
    %3171 = vmatpush1.msra.mxu0 %v174
    %3172 = vmatprep.subr.mxu0 0.0
    %3173 = vmatpush1.msra.mxu0 %v177
    %3174 = vmatprep.subr.mxu0 0.0
    %3175 = vmatpush1.msra.mxu0 0.0
    %3176 = vmatprep.subr.mxu0 0.0
    %3177 = vmatpush1.msra.mxu0 0.0
    %3178 = vmatprep.subr.mxu0 0.0
    %3179 = vmatpush1.msra.mxu0 0.0
    %3180 = vmatprep.subr.mxu0 0.0
    %3181 = vmatpush1.msra.mxu0 0.0
    %3182 = vmatprep.subr.mxu0 0.0
    %3183 = vmatpush1.msra.mxu0 0.0
    %3184 = vmatprep.subr.mxu0 0.0
    %3185 = vmatpush1.msra.mxu0 0.0
    %3186 = vmatprep.subr.mxu0 0.0
    %3187 = vmatpush1.msra.mxu0 0.0
    %3188 = vmatprep.subr.mxu0 0.0
    %3189 = vmatpush1.msra.mxu0 0.0
    %3190 = vmatprep.subr.mxu0 0.0
    %3191 = vmatpush1.msra.mxu0 0.0
    %3192 = vmatprep.subr.mxu0 0.0
    %3193 = vmatpush1.msra.mxu0 0.0
    %3194 = vmatprep.subr.mxu0 0.0
    %3195 = vmatpush1.msra.mxu0 0.0
    %3196 = vmatprep.subr.mxu0 0.0
    %3197 = vmatpush1.msra.mxu0 0.0
    %3198 = vmatprep.subr.mxu0 0.0
    %3199 = vmatpush1.msra.mxu0 0.0
    %3200 = vmatprep.subr.mxu0 0.0
    %3201 = vmatpush1.msra.mxu0 0.0
    %3202 = vmatprep.subr.mxu0 0.0
    %3203 = vmatpush1.msra.mxu0 0.0
    %3204 = vmatprep.subr.mxu0 0.0
    %3205 = vmatpush1.msra.mxu0 0.0
    %3206 = vmatprep.mubr.f32.mxu0 0.0
    %3207 = vmatmul.mubr.f32.gmra.mrb[0].mxu0 %v3070
    %v3208 = vpop.f32.mrb[0].mxu0
    %v3209 = vadd.f32 %v340, %v3208
    %v3210 = vpop.f32.mrb[0].mxu0
    %3211 = vdwg.mxu0
    %3212 = vmatprep.subr.mxu0 %v179
    %3213 = vmatpush1.msra.mxu0 %v178
    %3214 = vmatprep.subr.mxu0 %v182
    %3215 = vmatpush1.msra.mxu0 %v181
    %3216 = vmatprep.subr.mxu0 %v185
    %3217 = vmatpush1.msra.mxu0 %v184
    %3218 = vmatprep.subr.mxu0 %v188
    %3219 = vmatpush1.msra.mxu0 %v187
    %3220 = vmatprep.subr.mxu0 %v191
    %3221 = vmatpush1.msra.mxu0 %v190
    %3222 = vmatprep.subr.mxu0 %v194
    %3223 = vmatpush1.msra.mxu0 %v193
    %3224 = vmatprep.subr.mxu0 %v197
    %3225 = vmatpush1.msra.mxu0 %v196
    %3226 = vmatprep.subr.mxu0 %v200
    %3227 = vmatpush1.msra.mxu0 %v199
    %3228 = vmatprep.subr.mxu0 %v203
    %3229 = vmatpush1.msra.mxu0 %v202
    %3230 = vmatprep.subr.mxu0 %v206
    %3231 = vmatpush1.msra.mxu0 %v205
    %3232 = vmatprep.subr.mxu0 %v209
    %3233 = vmatpush1.msra.mxu0 %v208
    %3234 = vmatprep.subr.mxu0 %v212
    %3235 = vmatpush1.msra.mxu0 %v211
    %3236 = vmatprep.subr.mxu0 %v215
    %3237 = vmatpush1.msra.mxu0 %v214
    %3238 = vmatprep.subr.mxu0 %v218
    %3239 = vmatpush1.msra.mxu0 %v217
    %3240 = vmatprep.subr.mxu0 %v221
    %3241 = vmatpush1.msra.mxu0 %v220
    %3242 = vmatprep.subr.mxu0 %v224
    %3243 = vmatpush1.msra.mxu0 %v223
    %3244 = vmatprep.subr.mxu0 0.0
    %3245 = vmatpush1.msra.mxu0 0.0
    %3246 = vmatprep.subr.mxu0 0.0
    %3247 = vmatpush1.msra.mxu0 0.0
    %3248 = vmatprep.subr.mxu0 0.0
    %3249 = vmatpush1.msra.mxu0 0.0
    %3250 = vmatprep.subr.mxu0 0.0
    %3251 = vmatpush1.msra.mxu0 0.0
    %3252 = vmatprep.subr.mxu0 0.0
    %3253 = vmatpush1.msra.mxu0 0.0
    %3254 = vmatprep.subr.mxu0 0.0
    %3255 = vmatpush1.msra.mxu0 0.0
    %3256 = vmatprep.subr.mxu0 0.0
    %3257 = vmatpush1.msra.mxu0 0.0
    %3258 = vmatprep.subr.mxu0 0.0
    %3259 = vmatpush1.msra.mxu0 0.0
    %3260 = vmatprep.subr.mxu0 0.0
    %3261 = vmatpush1.msra.mxu0 0.0
    %3262 = vmatprep.subr.mxu0 0.0
    %3263 = vmatpush1.msra.mxu0 0.0
    %3264 = vmatprep.subr.mxu0 0.0
    %3265 = vmatpush1.msra.mxu0 0.0
    %3266 = vmatprep.subr.mxu0 0.0
    %3267 = vmatpush1.msra.mxu0 0.0
    %3268 = vmatprep.subr.mxu0 0.0
    %3269 = vmatpush1.msra.mxu0 0.0
    %3270 = vmatprep.subr.mxu0 0.0
    %3271 = vmatpush1.msra.mxu0 0.0
    %3272 = vmatprep.subr.mxu0 0.0
    %3273 = vmatpush1.msra.mxu0 0.0
    %3274 = vmatprep.subr.mxu0 0.0
    %3275 = vmatpush1.msra.mxu0 0.0
    %3276 = vmatprep.mubr.f32.mxu0 0.0
    %3277 = vmatmul.mubr.f32.gmra.mrb[0].mxu0 %v2922
    %v3278 = vpop.f32.mrb[0].mxu0
    %v3279 = vadd.f32 %v489, %v3278
    %v3280 = vpop.f32.mrb[0].mxu0
    %v3281 = vadd.f32 %v493, %v3280
    %3282 = vdwg.mxu0
    %3283 = vmatprep.subr.mxu0 0.0
    %3284 = vmatpush1.msra.mxu0 %v180
    %3285 = vmatprep.subr.mxu0 0.0
    %3286 = vmatpush1.msra.mxu0 %v183
    %3287 = vmatprep.subr.mxu0 0.0
    %3288 = vmatpush1.msra.mxu0 %v186
    %3289 = vmatprep.subr.mxu0 0.0
    %3290 = vmatpush1.msra.mxu0 %v189
    %3291 = vmatprep.subr.mxu0 0.0
    %3292 = vmatpush1.msra.mxu0 %v192
    %3293 = vmatprep.subr.mxu0 0.0
    %3294 = vmatpush1.msra.mxu0 %v195
    %3295 = vmatprep.subr.mxu0 0.0
    %3296 = vmatpush1.msra.mxu0 %v198
    %3297 = vmatprep.subr.mxu0 0.0
    %3298 = vmatpush1.msra.mxu0 %v201
    %3299 = vmatprep.subr.mxu0 0.0
    %3300 = vmatpush1.msra.mxu0 %v204
    %3301 = vmatprep.subr.mxu0 0.0
    %3302 = vmatpush1.msra.mxu0 %v207
    %3303 = vmatprep.subr.mxu0 0.0
    %3304 = vmatpush1.msra.mxu0 %v210
    %3305 = vmatprep.subr.mxu0 0.0
    %3306 = vmatpush1.msra.mxu0 %v213
    %3307 = vmatprep.subr.mxu0 0.0
    %3308 = vmatpush1.msra.mxu0 %v216
    %3309 = vmatprep.subr.mxu0 0.0
    %3310 = vmatpush1.msra.mxu0 %v219
    %3311 = vmatprep.subr.mxu0 0.0
    %3312 = vmatpush1.msra.mxu0 %v222
    %3313 = vmatprep.subr.mxu0 0.0
    %3314 = vmatpush1.msra.mxu0 %v225
    %3315 = vmatprep.subr.mxu0 0.0
    %3316 = vmatpush1.msra.mxu0 0.0
    %3317 = vmatprep.subr.mxu0 0.0
    %3318 = vmatpush1.msra.mxu0 0.0
    %3319 = vmatprep.subr.mxu0 0.0
    %3320 = vmatpush1.msra.mxu0 0.0
    %3321 = vmatprep.subr.mxu0 0.0
    %3322 = vmatpush1.msra.mxu0 0.0
    %3323 = vmatprep.subr.mxu0 0.0
    %3324 = vmatpush1.msra.mxu0 0.0
    %3325 = vmatprep.subr.mxu0 0.0
    %3326 = vmatpush1.msra.mxu0 0.0
    %3327 = vmatprep.subr.mxu0 0.0
    %3328 = vmatpush1.msra.mxu0 0.0
    %3329 = vmatprep.subr.mxu0 0.0
    %3330 = vmatpush1.msra.mxu0 0.0
    %3331 = vmatprep.subr.mxu0 0.0
    %3332 = vmatpush1.msra.mxu0 0.0
    %3333 = vmatprep.subr.mxu0 0.0
    %3334 = vmatpush1.msra.mxu0 0.0
    %3335 = vmatprep.subr.mxu0 0.0
    %3336 = vmatpush1.msra.mxu0 0.0
    %3337 = vmatprep.subr.mxu0 0.0
    %3338 = vmatpush1.msra.mxu0 0.0
    %3339 = vmatprep.subr.mxu0 0.0
    %3340 = vmatpush1.msra.mxu0 0.0
    %3341 = vmatprep.subr.mxu0 0.0
    %3342 = vmatpush1.msra.mxu0 0.0
    %3343 = vmatprep.subr.mxu0 0.0
    %3344 = vmatpush1.msra.mxu0 0.0
    %3345 = vmatprep.subr.mxu0 0.0
    %3346 = vmatpush1.msra.mxu0 0.0
    %3347 = vmatprep.mubr.f32.mxu0 0.0
    %3348 = vmatmul.mubr.f32.gmra.mrb[0].mxu0 %v2922
    %v3349 = vpop.f32.mrb[0].mxu0
    %v3350 = vadd.f32 %v497, %v3349
    %v3351 = vpop.f32.mrb[0].mxu0
    %3352 = vdwg.mxu0
    %v3353 = vadd.f32 %v3138, %v3279
    %v3354 = vxor.u32 %v3353, 2147483648
    %v3355 = vmul.f32 %v3354, 1.442695
    %v3356 = vpow.pop %v3355
    %v3357 = vadd.f32 %v3356, 1.0
    %v3358 = vrcp.pop %v3357
    %v3359 = vmul.f32 1.0, %v3358
    %v3360 = vadd.f32 %v3140, %v3281
    %v3361 = vxor.u32 %v3360, 2147483648
    %v3362 = vmul.f32 %v3361, 1.442695
    %v3363 = vpow.pop %v3362
    %v3364 = vadd.f32 %v3363, 1.0
    %v3365 = vrcp.pop %v3364
    %v3366 = vmul.f32 1.0, %v3365
    %v3367 = vmul.f32 %v3359, %v3350
    %v3368 = vadd.f32 %v3209, %v3367
    %v3369 = vtanh.pop %v3368
    %v3370 = vsub.f32 1.0, %v3366
    %v3371 = vmul.f32 %v3370, %v3369
    %v3372 = vmul.f32 %v3366, %v2922
    %v3373 = vadd.f32 %v3371, %v3372
    %3374 = vmatprep.subr.mxu0 0.0
    %3375 = vmatpush1.msra.mxu0 %v228
    %3376 = vmatprep.subr.mxu0 0.0
    %3377 = vmatpush1.msra.mxu0 %v229
    %3378 = vmatprep.subr.mxu0 0.0
    %3379 = vmatpush1.msra.mxu0 %v230
    %3380 = vmatprep.subr.mxu0 0.0
    %3381 = vmatpush1.msra.mxu0 %v231
    %3382 = vmatprep.subr.mxu0 0.0
    %3383 = vmatpush1.msra.mxu0 %v232
    %3384 = vmatprep.subr.mxu0 0.0
    %3385 = vmatpush1.msra.mxu0 %v233
    %3386 = vmatprep.subr.mxu0 0.0
    %3387 = vmatpush1.msra.mxu0 %v234
    %3388 = vmatprep.subr.mxu0 0.0
    %3389 = vmatpush1.msra.mxu0 %v235
    %3390 = vmatprep.subr.mxu0 0.0
    %3391 = vmatpush1.msra.mxu0 %v236
    %3392 = vmatprep.subr.mxu0 0.0
    %3393 = vmatpush1.msra.mxu0 %v237
    %3394 = vmatprep.subr.mxu0 0.0
    %3395 = vmatpush1.msra.mxu0 %v238
    %3396 = vmatprep.subr.mxu0 0.0
    %3397 = vmatpush1.msra.mxu0 %v239
    %3398 = vmatprep.subr.mxu0 0.0
    %3399 = vmatpush1.msra.mxu0 %v240
    %3400 = vmatprep.subr.mxu0 0.0
    %3401 = vmatpush1.msra.mxu0 %v241
    %3402 = vmatprep.subr.mxu0 0.0
    %3403 = vmatpush1.msra.mxu0 %v242
    %3404 = vmatprep.subr.mxu0 0.0
    %3405 = vmatpush1.msra.mxu0 %v243
    %3406 = vmatprep.subr.mxu0 0.0
    %3407 = vmatpush1.msra.mxu0 0.0
    %3408 = vmatprep.subr.mxu0 0.0
    %3409 = vmatpush1.msra.mxu0 0.0
    %3410 = vmatprep.subr.mxu0 0.0
    %3411 = vmatpush1.msra.mxu0 0.0
    %3412 = vmatprep.subr.mxu0 0.0
    %3413 = vmatpush1.msra.mxu0 0.0
    %3414 = vmatprep.subr.mxu0 0.0
    %3415 = vmatpush1.msra.mxu0 0.0
    %3416 = vmatprep.subr.mxu0 0.0
    %3417 = vmatpush1.msra.mxu0 0.0
    %3418 = vmatprep.subr.mxu0 0.0
    %3419 = vmatpush1.msra.mxu0 0.0
    %3420 = vmatprep.subr.mxu0 0.0
    %3421 = vmatpush1.msra.mxu0 0.0
    %3422 = vmatprep.subr.mxu0 0.0
    %3423 = vmatpush1.msra.mxu0 0.0
    %3424 = vmatprep.subr.mxu0 0.0
    %3425 = vmatpush1.msra.mxu0 0.0
    %3426 = vmatprep.subr.mxu0 0.0
    %3427 = vmatpush1.msra.mxu0 0.0
    %3428 = vmatprep.subr.mxu0 0.0
    %3429 = vmatpush1.msra.mxu0 0.0
    %3430 = vmatprep.subr.mxu0 0.0
    %3431 = vmatpush1.msra.mxu0 0.0
    %3432 = vmatprep.subr.mxu0 0.0
    %3433 = vmatpush1.msra.mxu0 0.0
    %3434 = vmatprep.subr.mxu0 0.0
    %3435 = vmatpush1.msra.mxu0 0.0
    %3436 = vmatprep.subr.mxu0 0.0
    %3437 = vmatpush1.msra.mxu0 0.0
    %3438 = vmatprep.mubr.f32.mxu0 0.0
    %3439 = vmatmul.mubr.f32.gmra.mrb[0].mxu0 %v3373
    %v3440 = vpop.f32.mrb[0].mxu0
    %v3441 = vadd.f32 %v667, %v3440
    %v3442 = vpop.f32.mrb[0].mxu0
    %3443 = vdwg.mxu0
    %s3444 = scalar_lea.vmem [#allocation13], 48
    %3445 = vst [vmem:[%s3444] sm:$0xff] %v3441
    %s3446 = scalar_lea.vmem [#allocation2], 56
    %v3447 = vld [vmem:[%s3446] sm:$0xff]
    %v3449 = vsel %vm253, %v3447, 0
    %3451 = vmatprep.subr.mxu0 0.0
    %3452 = vmatpush1.msra.mxu0 %v125
    %3453 = vmatprep.subr.mxu0 0.0
    %3454 = vmatpush1.msra.mxu0 %v126
    %3455 = vmatprep.subr.mxu0 0.0
    %3456 = vmatpush1.msra.mxu0 %v127
    %3457 = vmatprep.subr.mxu0 0.0
    %3458 = vmatpush1.msra.mxu0 %v128
    %3459 = vmatprep.subr.mxu0 0.0
    %3460 = vmatpush1.msra.mxu0 0.0
    %3461 = vmatprep.subr.mxu0 0.0
    %3462 = vmatpush1.msra.mxu0 0.0
    %3463 = vmatprep.subr.mxu0 0.0
    %3464 = vmatpush1.msra.mxu0 0.0
    %3465 = vmatprep.subr.mxu0 0.0
    %3466 = vmatpush1.msra.mxu0 0.0
    %3467 = vmatprep.subr.mxu0 0.0
    %3468 = vmatpush1.msra.mxu0 0.0
    %3469 = vmatprep.subr.mxu0 0.0
    %3470 = vmatpush1.msra.mxu0 0.0
    %3471 = vmatprep.subr.mxu0 0.0
    %3472 = vmatpush1.msra.mxu0 0.0
    %3473 = vmatprep.subr.mxu0 0.0
    %3474 = vmatpush1.msra.mxu0 0.0
    %3475 = vmatprep.subr.mxu0 0.0
    %3476 = vmatpush1.msra.mxu0 0.0
    %3477 = vmatprep.subr.mxu0 0.0
    %3478 = vmatpush1.msra.mxu0 0.0
    %3479 = vmatprep.subr.mxu0 0.0
    %3480 = vmatpush1.msra.mxu0 0.0
    %3481 = vmatprep.subr.mxu0 0.0
    %3482 = vmatpush1.msra.mxu0 0.0
    %3483 = vmatprep.subr.mxu0 0.0
    %3484 = vmatpush1.msra.mxu0 0.0
    %3485 = vmatprep.subr.mxu0 0.0
    %3486 = vmatpush1.msra.mxu0 0.0
    %3487 = vmatprep.subr.mxu0 0.0
    %3488 = vmatpush1.msra.mxu0 0.0
    %3489 = vmatprep.subr.mxu0 0.0
    %3490 = vmatpush1.msra.mxu0 0.0
    %3491 = vmatprep.subr.mxu0 0.0
    %3492 = vmatpush1.msra.mxu0 0.0
    %3493 = vmatprep.subr.mxu0 0.0
    %3494 = vmatpush1.msra.mxu0 0.0
    %3495 = vmatprep.subr.mxu0 0.0
    %3496 = vmatpush1.msra.mxu0 0.0
    %3497 = vmatprep.subr.mxu0 0.0
    %3498 = vmatpush1.msra.mxu0 0.0
    %3499 = vmatprep.subr.mxu0 0.0
    %3500 = vmatpush1.msra.mxu0 0.0
    %3501 = vmatprep.subr.mxu0 0.0
    %3502 = vmatpush1.msra.mxu0 0.0
    %3503 = vmatprep.subr.mxu0 0.0
    %3504 = vmatpush1.msra.mxu0 0.0
    %3505 = vmatprep.subr.mxu0 0.0
    %3506 = vmatpush1.msra.mxu0 0.0
    %3507 = vmatprep.subr.mxu0 0.0
    %3508 = vmatpush1.msra.mxu0 0.0
    %3509 = vmatprep.subr.mxu0 0.0
    %3510 = vmatpush1.msra.mxu0 0.0
    %3511 = vmatprep.subr.mxu0 0.0
    %3512 = vmatpush1.msra.mxu0 0.0
    %3513 = vmatprep.subr.mxu0 0.0
    %3514 = vmatpush1.msra.mxu0 0.0
    %3515 = vmatprep.mubr.f32.mxu0 0.0
    %3516 = vmatmul.mubr.f32.gmra.mrb[0].mxu0 %v3449
    %v3517 = vpop.f32.mrb[0].mxu0
    %v3518 = vadd.f32 %v251, %v3517
    %v3519 = vpop.f32.mrb[0].mxu0
    %3520 = vdwg.mxu0
    %v3521 = vmax.f32 %v3518, 0.0
    %3522 = vmatprep.subr.mxu0 %v131
    %3523 = vmatpush1.msra.mxu0 %v130
    %3524 = vmatprep.subr.mxu0 %v134
    %3525 = vmatpush1.msra.mxu0 %v133
    %3526 = vmatprep.subr.mxu0 %v137
    %3527 = vmatpush1.msra.mxu0 %v136
    %3528 = vmatprep.subr.mxu0 %v140
    %3529 = vmatpush1.msra.mxu0 %v139
    %3530 = vmatprep.subr.mxu0 %v143
    %3531 = vmatpush1.msra.mxu0 %v142
    %3532 = vmatprep.subr.mxu0 %v146
    %3533 = vmatpush1.msra.mxu0 %v145
    %3534 = vmatprep.subr.mxu0 %v149
    %3535 = vmatpush1.msra.mxu0 %v148
    %3536 = vmatprep.subr.mxu0 %v152
    %3537 = vmatpush1.msra.mxu0 %v151
    %3538 = vmatprep.subr.mxu0 %v155
    %3539 = vmatpush1.msra.mxu0 %v154
    %3540 = vmatprep.subr.mxu0 %v158
    %3541 = vmatpush1.msra.mxu0 %v157
    %3542 = vmatprep.subr.mxu0 %v161
    %3543 = vmatpush1.msra.mxu0 %v160
    %3544 = vmatprep.subr.mxu0 %v164
    %3545 = vmatpush1.msra.mxu0 %v163
    %3546 = vmatprep.subr.mxu0 %v167
    %3547 = vmatpush1.msra.mxu0 %v166
    %3548 = vmatprep.subr.mxu0 %v170
    %3549 = vmatpush1.msra.mxu0 %v169
    %3550 = vmatprep.subr.mxu0 %v173
    %3551 = vmatpush1.msra.mxu0 %v172
    %3552 = vmatprep.subr.mxu0 %v176
    %3553 = vmatpush1.msra.mxu0 %v175
    %3554 = vmatprep.subr.mxu0 0.0
    %3555 = vmatpush1.msra.mxu0 0.0
    %3556 = vmatprep.subr.mxu0 0.0
    %3557 = vmatpush1.msra.mxu0 0.0
    %3558 = vmatprep.subr.mxu0 0.0
    %3559 = vmatpush1.msra.mxu0 0.0
    %3560 = vmatprep.subr.mxu0 0.0
    %3561 = vmatpush1.msra.mxu0 0.0
    %3562 = vmatprep.subr.mxu0 0.0
    %3563 = vmatpush1.msra.mxu0 0.0
    %3564 = vmatprep.subr.mxu0 0.0
    %3565 = vmatpush1.msra.mxu0 0.0
    %3566 = vmatprep.subr.mxu0 0.0
    %3567 = vmatpush1.msra.mxu0 0.0
    %3568 = vmatprep.subr.mxu0 0.0
    %3569 = vmatpush1.msra.mxu0 0.0
    %3570 = vmatprep.subr.mxu0 0.0
    %3571 = vmatpush1.msra.mxu0 0.0
    %3572 = vmatprep.subr.mxu0 0.0
    %3573 = vmatpush1.msra.mxu0 0.0
    %3574 = vmatprep.subr.mxu0 0.0
    %3575 = vmatpush1.msra.mxu0 0.0
    %3576 = vmatprep.subr.mxu0 0.0
    %3577 = vmatpush1.msra.mxu0 0.0
    %3578 = vmatprep.subr.mxu0 0.0
    %3579 = vmatpush1.msra.mxu0 0.0
    %3580 = vmatprep.subr.mxu0 0.0
    %3581 = vmatpush1.msra.mxu0 0.0
    %3582 = vmatprep.subr.mxu0 0.0
    %3583 = vmatpush1.msra.mxu0 0.0
    %3584 = vmatprep.subr.mxu0 0.0
    %3585 = vmatpush1.msra.mxu0 0.0
    %3586 = vmatprep.mubr.f32.mxu0 0.0
    %3587 = vmatmul.mubr.f32.gmra.mrb[0].mxu0 %v3521
    %v3588 = vpop.f32.mrb[0].mxu0
    %v3589 = vadd.f32 %v332, %v3588
    %v3590 = vpop.f32.mrb[0].mxu0
    %v3591 = vadd.f32 %v336, %v3590
    %3592 = vdwg.mxu0
    %3593 = vmatprep.subr.mxu0 0.0
    %3594 = vmatpush1.msra.mxu0 %v132
    %3595 = vmatprep.subr.mxu0 0.0
    %3596 = vmatpush1.msra.mxu0 %v135
    %3597 = vmatprep.subr.mxu0 0.0
    %3598 = vmatpush1.msra.mxu0 %v138
    %3599 = vmatprep.subr.mxu0 0.0
    %3600 = vmatpush1.msra.mxu0 %v141
    %3601 = vmatprep.subr.mxu0 0.0
    %3602 = vmatpush1.msra.mxu0 %v144
    %3603 = vmatprep.subr.mxu0 0.0
    %3604 = vmatpush1.msra.mxu0 %v147
    %3605 = vmatprep.subr.mxu0 0.0
    %3606 = vmatpush1.msra.mxu0 %v150
    %3607 = vmatprep.subr.mxu0 0.0
    %3608 = vmatpush1.msra.mxu0 %v153
    %3609 = vmatprep.subr.mxu0 0.0
    %3610 = vmatpush1.msra.mxu0 %v156
    %3611 = vmatprep.subr.mxu0 0.0
    %3612 = vmatpush1.msra.mxu0 %v159
    %3613 = vmatprep.subr.mxu0 0.0
    %3614 = vmatpush1.msra.mxu0 %v162
    %3615 = vmatprep.subr.mxu0 0.0
    %3616 = vmatpush1.msra.mxu0 %v165
    %3617 = vmatprep.subr.mxu0 0.0
    %3618 = vmatpush1.msra.mxu0 %v168
    %3619 = vmatprep.subr.mxu0 0.0
    %3620 = vmatpush1.msra.mxu0 %v171
    %3621 = vmatprep.subr.mxu0 0.0
    %3622 = vmatpush1.msra.mxu0 %v174
    %3623 = vmatprep.subr.mxu0 0.0
    %3624 = vmatpush1.msra.mxu0 %v177
    %3625 = vmatprep.subr.mxu0 0.0
    %3626 = vmatpush1.msra.mxu0 0.0
    %3627 = vmatprep.subr.mxu0 0.0
    %3628 = vmatpush1.msra.mxu0 0.0
    %3629 = vmatprep.subr.mxu0 0.0
    %3630 = vmatpush1.msra.mxu0 0.0
    %3631 = vmatprep.subr.mxu0 0.0
    %3632 = vmatpush1.msra.mxu0 0.0
    %3633 = vmatprep.subr.mxu0 0.0
    %3634 = vmatpush1.msra.mxu0 0.0
    %3635 = vmatprep.subr.mxu0 0.0
    %3636 = vmatpush1.msra.mxu0 0.0
    %3637 = vmatprep.subr.mxu0 0.0
    %3638 = vmatpush1.msra.mxu0 0.0
    %3639 = vmatprep.subr.mxu0 0.0
    %3640 = vmatpush1.msra.mxu0 0.0
    %3641 = vmatprep.subr.mxu0 0.0
    %3642 = vmatpush1.msra.mxu0 0.0
    %3643 = vmatprep.subr.mxu0 0.0
    %3644 = vmatpush1.msra.mxu0 0.0
    %3645 = vmatprep.subr.mxu0 0.0
    %3646 = vmatpush1.msra.mxu0 0.0
    %3647 = vmatprep.subr.mxu0 0.0
    %3648 = vmatpush1.msra.mxu0 0.0
    %3649 = vmatprep.subr.mxu0 0.0
    %3650 = vmatpush1.msra.mxu0 0.0
    %3651 = vmatprep.subr.mxu0 0.0
    %3652 = vmatpush1.msra.mxu0 0.0
    %3653 = vmatprep.subr.mxu0 0.0
    %3654 = vmatpush1.msra.mxu0 0.0
    %3655 = vmatprep.subr.mxu0 0.0
    %3656 = vmatpush1.msra.mxu0 0.0
    %3657 = vmatprep.mubr.f32.mxu0 0.0
    %3658 = vmatmul.mubr.f32.gmra.mrb[0].mxu0 %v3521
    %v3659 = vpop.f32.mrb[0].mxu0
    %v3660 = vadd.f32 %v340, %v3659
    %v3661 = vpop.f32.mrb[0].mxu0
    %3662 = vdwg.mxu0
    %3663 = vmatprep.subr.mxu0 %v179
    %3664 = vmatpush1.msra.mxu0 %v178
    %3665 = vmatprep.subr.mxu0 %v182
    %3666 = vmatpush1.msra.mxu0 %v181
    %3667 = vmatprep.subr.mxu0 %v185
    %3668 = vmatpush1.msra.mxu0 %v184
    %3669 = vmatprep.subr.mxu0 %v188
    %3670 = vmatpush1.msra.mxu0 %v187
    %3671 = vmatprep.subr.mxu0 %v191
    %3672 = vmatpush1.msra.mxu0 %v190
    %3673 = vmatprep.subr.mxu0 %v194
    %3674 = vmatpush1.msra.mxu0 %v193
    %3675 = vmatprep.subr.mxu0 %v197
    %3676 = vmatpush1.msra.mxu0 %v196
    %3677 = vmatprep.subr.mxu0 %v200
    %3678 = vmatpush1.msra.mxu0 %v199
    %3679 = vmatprep.subr.mxu0 %v203
    %3680 = vmatpush1.msra.mxu0 %v202
    %3681 = vmatprep.subr.mxu0 %v206
    %3682 = vmatpush1.msra.mxu0 %v205
    %3683 = vmatprep.subr.mxu0 %v209
    %3684 = vmatpush1.msra.mxu0 %v208
    %3685 = vmatprep.subr.mxu0 %v212
    %3686 = vmatpush1.msra.mxu0 %v211
    %3687 = vmatprep.subr.mxu0 %v215
    %3688 = vmatpush1.msra.mxu0 %v214
    %3689 = vmatprep.subr.mxu0 %v218
    %3690 = vmatpush1.msra.mxu0 %v217
    %3691 = vmatprep.subr.mxu0 %v221
    %3692 = vmatpush1.msra.mxu0 %v220
    %3693 = vmatprep.subr.mxu0 %v224
    %3694 = vmatpush1.msra.mxu0 %v223
    %3695 = vmatprep.subr.mxu0 0.0
    %3696 = vmatpush1.msra.mxu0 0.0
    %3697 = vmatprep.subr.mxu0 0.0
    %3698 = vmatpush1.msra.mxu0 0.0
    %3699 = vmatprep.subr.mxu0 0.0
    %3700 = vmatpush1.msra.mxu0 0.0
    %3701 = vmatprep.subr.mxu0 0.0
    %3702 = vmatpush1.msra.mxu0 0.0
    %3703 = vmatprep.subr.mxu0 0.0
    %3704 = vmatpush1.msra.mxu0 0.0
    %3705 = vmatprep.subr.mxu0 0.0
    %3706 = vmatpush1.msra.mxu0 0.0
    %3707 = vmatprep.subr.mxu0 0.0
    %3708 = vmatpush1.msra.mxu0 0.0
    %3709 = vmatprep.subr.mxu0 0.0
    %3710 = vmatpush1.msra.mxu0 0.0
    %3711 = vmatprep.subr.mxu0 0.0
    %3712 = vmatpush1.msra.mxu0 0.0
    %3713 = vmatprep.subr.mxu0 0.0
    %3714 = vmatpush1.msra.mxu0 0.0
    %3715 = vmatprep.subr.mxu0 0.0
    %3716 = vmatpush1.msra.mxu0 0.0
    %3717 = vmatprep.subr.mxu0 0.0
    %3718 = vmatpush1.msra.mxu0 0.0
    %3719 = vmatprep.subr.mxu0 0.0
    %3720 = vmatpush1.msra.mxu0 0.0
    %3721 = vmatprep.subr.mxu0 0.0
    %3722 = vmatpush1.msra.mxu0 0.0
    %3723 = vmatprep.subr.mxu0 0.0
    %3724 = vmatpush1.msra.mxu0 0.0
    %3725 = vmatprep.subr.mxu0 0.0
    %3726 = vmatpush1.msra.mxu0 0.0
    %3727 = vmatprep.mubr.f32.mxu0 0.0
    %3728 = vmatmul.mubr.f32.gmra.mrb[0].mxu0 %v3373
    %v3729 = vpop.f32.mrb[0].mxu0
    %v3730 = vadd.f32 %v489, %v3729
    %v3731 = vpop.f32.mrb[0].mxu0
    %v3732 = vadd.f32 %v493, %v3731
    %3733 = vdwg.mxu0
    %3734 = vmatprep.subr.mxu0 0.0
    %3735 = vmatpush1.msra.mxu0 %v180
    %3736 = vmatprep.subr.mxu0 0.0
    %3737 = vmatpush1.msra.mxu0 %v183
    %3738 = vmatprep.subr.mxu0 0.0
    %3739 = vmatpush1.msra.mxu0 %v186
    %3740 = vmatprep.subr.mxu0 0.0
    %3741 = vmatpush1.msra.mxu0 %v189
    %3742 = vmatprep.subr.mxu0 0.0
    %3743 = vmatpush1.msra.mxu0 %v192
    %3744 = vmatprep.subr.mxu0 0.0
    %3745 = vmatpush1.msra.mxu0 %v195
    %3746 = vmatprep.subr.mxu0 0.0
    %3747 = vmatpush1.msra.mxu0 %v198
    %3748 = vmatprep.subr.mxu0 0.0
    %3749 = vmatpush1.msra.mxu0 %v201
    %3750 = vmatprep.subr.mxu0 0.0
    %3751 = vmatpush1.msra.mxu0 %v204
    %3752 = vmatprep.subr.mxu0 0.0
    %3753 = vmatpush1.msra.mxu0 %v207
    %3754 = vmatprep.subr.mxu0 0.0
    %3755 = vmatpush1.msra.mxu0 %v210
    %3756 = vmatprep.subr.mxu0 0.0
    %3757 = vmatpush1.msra.mxu0 %v213
    %3758 = vmatprep.subr.mxu0 0.0
    %3759 = vmatpush1.msra.mxu0 %v216
    %3760 = vmatprep.subr.mxu0 0.0
    %3761 = vmatpush1.msra.mxu0 %v219
    %3762 = vmatprep.subr.mxu0 0.0
    %3763 = vmatpush1.msra.mxu0 %v222
    %3764 = vmatprep.subr.mxu0 0.0
    %3765 = vmatpush1.msra.mxu0 %v225
    %3766 = vmatprep.subr.mxu0 0.0
    %3767 = vmatpush1.msra.mxu0 0.0
    %3768 = vmatprep.subr.mxu0 0.0
    %3769 = vmatpush1.msra.mxu0 0.0
    %3770 = vmatprep.subr.mxu0 0.0
    %3771 = vmatpush1.msra.mxu0 0.0
    %3772 = vmatprep.subr.mxu0 0.0
    %3773 = vmatpush1.msra.mxu0 0.0
    %3774 = vmatprep.subr.mxu0 0.0
    %3775 = vmatpush1.msra.mxu0 0.0
    %3776 = vmatprep.subr.mxu0 0.0
    %3777 = vmatpush1.msra.mxu0 0.0
    %3778 = vmatprep.subr.mxu0 0.0
    %3779 = vmatpush1.msra.mxu0 0.0
    %3780 = vmatprep.subr.mxu0 0.0
    %3781 = vmatpush1.msra.mxu0 0.0
    %3782 = vmatprep.subr.mxu0 0.0
    %3783 = vmatpush1.msra.mxu0 0.0
    %3784 = vmatprep.subr.mxu0 0.0
    %3785 = vmatpush1.msra.mxu0 0.0
    %3786 = vmatprep.subr.mxu0 0.0
    %3787 = vmatpush1.msra.mxu0 0.0
    %3788 = vmatprep.subr.mxu0 0.0
    %3789 = vmatpush1.msra.mxu0 0.0
    %3790 = vmatprep.subr.mxu0 0.0
    %3791 = vmatpush1.msra.mxu0 0.0
    %3792 = vmatprep.subr.mxu0 0.0
    %3793 = vmatpush1.msra.mxu0 0.0
    %3794 = vmatprep.subr.mxu0 0.0
    %3795 = vmatpush1.msra.mxu0 0.0
    %3796 = vmatprep.subr.mxu0 0.0
    %3797 = vmatpush1.msra.mxu0 0.0
    %3798 = vmatprep.mubr.f32.mxu0 0.0
    %3799 = vmatmul.mubr.f32.gmra.mrb[0].mxu0 %v3373
    %v3800 = vpop.f32.mrb[0].mxu0
    %v3801 = vadd.f32 %v497, %v3800
    %v3802 = vpop.f32.mrb[0].mxu0
    %3803 = vdwg.mxu0
    %v3804 = vadd.f32 %v3589, %v3730
    %v3805 = vxor.u32 %v3804, 2147483648
    %v3806 = vmul.f32 %v3805, 1.442695
    %v3807 = vpow.pop %v3806
    %v3808 = vadd.f32 %v3807, 1.0
    %v3809 = vrcp.pop %v3808
    %v3810 = vmul.f32 1.0, %v3809
    %v3811 = vadd.f32 %v3591, %v3732
    %v3812 = vxor.u32 %v3811, 2147483648
    %v3813 = vmul.f32 %v3812, 1.442695
    %v3814 = vpow.pop %v3813
    %v3815 = vadd.f32 %v3814, 1.0
    %v3816 = vrcp.pop %v3815
    %v3817 = vmul.f32 1.0, %v3816
    %v3818 = vmul.f32 %v3810, %v3801
    %v3819 = vadd.f32 %v3660, %v3818
    %v3820 = vtanh.pop %v3819
    %v3821 = vsub.f32 1.0, %v3817
    %v3822 = vmul.f32 %v3821, %v3820
    %v3823 = vmul.f32 %v3817, %v3373
    %v3824 = vadd.f32 %v3822, %v3823
    %3825 = vmatprep.subr.mxu0 0.0
    %3826 = vmatpush1.msra.mxu0 %v228
    %3827 = vmatprep.subr.mxu0 0.0
    %3828 = vmatpush1.msra.mxu0 %v229
    %3829 = vmatprep.subr.mxu0 0.0
    %3830 = vmatpush1.msra.mxu0 %v230
    %3831 = vmatprep.subr.mxu0 0.0
    %3832 = vmatpush1.msra.mxu0 %v231
    %3833 = vmatprep.subr.mxu0 0.0
    %3834 = vmatpush1.msra.mxu0 %v232
    %3835 = vmatprep.subr.mxu0 0.0
    %3836 = vmatpush1.msra.mxu0 %v233
    %3837 = vmatprep.subr.mxu0 0.0
    %3838 = vmatpush1.msra.mxu0 %v234
    %3839 = vmatprep.subr.mxu0 0.0
    %3840 = vmatpush1.msra.mxu0 %v235
    %3841 = vmatprep.subr.mxu0 0.0
    %3842 = vmatpush1.msra.mxu0 %v236
    %3843 = vmatprep.subr.mxu0 0.0
    %3844 = vmatpush1.msra.mxu0 %v237
    %3845 = vmatprep.subr.mxu0 0.0
    %3846 = vmatpush1.msra.mxu0 %v238
    %3847 = vmatprep.subr.mxu0 0.0
    %3848 = vmatpush1.msra.mxu0 %v239
    %3849 = vmatprep.subr.mxu0 0.0
    %3850 = vmatpush1.msra.mxu0 %v240
    %3851 = vmatprep.subr.mxu0 0.0
    %3852 = vmatpush1.msra.mxu0 %v241
    %3853 = vmatprep.subr.mxu0 0.0
    %3854 = vmatpush1.msra.mxu0 %v242
    %3855 = vmatprep.subr.mxu0 0.0
    %3856 = vmatpush1.msra.mxu0 %v243
    %3857 = vmatprep.subr.mxu0 0.0
    %3858 = vmatpush1.msra.mxu0 0.0
    %3859 = vmatprep.subr.mxu0 0.0
    %3860 = vmatpush1.msra.mxu0 0.0
    %3861 = vmatprep.subr.mxu0 0.0
    %3862 = vmatpush1.msra.mxu0 0.0
    %3863 = vmatprep.subr.mxu0 0.0
    %3864 = vmatpush1.msra.mxu0 0.0
    %3865 = vmatprep.subr.mxu0 0.0
    %3866 = vmatpush1.msra.mxu0 0.0
    %3867 = vmatprep.subr.mxu0 0.0
    %3868 = vmatpush1.msra.mxu0 0.0
    %3869 = vmatprep.subr.mxu0 0.0
    %3870 = vmatpush1.msra.mxu0 0.0
    %3871 = vmatprep.subr.mxu0 0.0
    %3872 = vmatpush1.msra.mxu0 0.0
    %3873 = vmatprep.subr.mxu0 0.0
    %3874 = vmatpush1.msra.mxu0 0.0
    %3875 = vmatprep.subr.mxu0 0.0
    %3876 = vmatpush1.msra.mxu0 0.0
    %3877 = vmatprep.subr.mxu0 0.0
    %3878 = vmatpush1.msra.mxu0 0.0
    %3879 = vmatprep.subr.mxu0 0.0
    %3880 = vmatpush1.msra.mxu0 0.0
    %3881 = vmatprep.subr.mxu0 0.0
    %3882 = vmatpush1.msra.mxu0 0.0
    %3883 = vmatprep.subr.mxu0 0.0
    %3884 = vmatpush1.msra.mxu0 0.0
    %3885 = vmatprep.subr.mxu0 0.0
    %3886 = vmatpush1.msra.mxu0 0.0
    %3887 = vmatprep.subr.mxu0 0.0
    %3888 = vmatpush1.msra.mxu0 0.0
    %3889 = vmatprep.mubr.f32.mxu0 0.0
    %3890 = vmatmul.mubr.f32.gmra.mrb[0].mxu0 %v3824
    %v3891 = vpop.f32.mrb[0].mxu0
    %v3892 = vadd.f32 %v667, %v3891
    %v3893 = vpop.f32.mrb[0].mxu0
    %3894 = vdwg.mxu0
    %s3895 = scalar_lea.vmem [#allocation13], 56
    %3896 = vst [vmem:[%s3895] sm:$0xff] %v3892
    %3897 = vst [vmem:[#allocation14] sm:$0xff] %v3824
    // Predicated region
    $region70: #{tpu_custom_call.1} parent=1 // pred_check
      _
    $region71: #{tpu_custom_call.1} parent=1 // pred_check_branch
      %3899 = sbr.rel (0) target = $region73
    $region72: #{tpu_custom_call.1} parent=1 // pred_region
      %s3901 = ssub.s32 1024, 1024
      %3902 = vsyncadd [#allocation4], %s3901
      %s3903 = sshll.u32 [#allocation13], 4
      %s3904 = int_to_ptr.vmem [resolvable:$true] %s3903
      %3909 = dma.vmem_to_hbm [thread:$0]  %s3904, 1024, %s10, [#allocation4], 128, 128, 8
    $region73: #{tpu_custom_call.1} parent=1 // pred_fallthru
      _
    // Predicated region
    $region74: #{tpu_custom_call.1} parent=1 // pred_check
      _
    $region75: #{tpu_custom_call.1} parent=1 // pred_check_branch
      %3911 = sbr.rel (0) target = $region77
    $region76: #{tpu_custom_call.1} parent=1 // pred_region
      %s3913 = ssub.s32 128, 128
      %3914 = vsyncadd [#allocation15], %s3913
      %s3916 = sshll.u32 [#allocation14], 4
      %s3917 = int_to_ptr.vmem [resolvable:$true] %s3916
      %3919 = dma.vmem_to_hbm [thread:$0]  %s3917, 128, %s11, [#allocation15]
    $region77: #{tpu_custom_call.1} parent=1 // pred_fallthru
      _
    // Predicated region
    $region78: #{tpu_custom_call.1} parent=1 // pred_check
      _
    $region79: #{tpu_custom_call.1} parent=1 // pred_check_branch
      %3921 = sbr.rel (0) target = $region81
    $region80: #{tpu_custom_call.1} parent=1 // pred_region
      %3922 = dma.done [#allocation4], 1024
    $region81: #{tpu_custom_call.1} parent=1 // pred_fallthru
      _
    // Predicated region
    $region82: #{tpu_custom_call.1} parent=1 // pred_check
      _
    $region83: #{tpu_custom_call.1} parent=1 // pred_check_branch
      %3924 = sbr.rel (0) target = $region85
    $region84: #{tpu_custom_call.1} parent=1 // pred_region
      %3925 = dma.done [#allocation15], 128
    $region85: #{tpu_custom_call.1} parent=1 // pred_fallthru
      _
    %3926 = vsyncpa [#allocation3], 1
    %3927 = vsyncpa [#allocation6], 1
    %3928 = vsyncpa [#allocation9], 1
    %3929 = vsyncpa [#allocation12], 1
    %3930 = vsyncpa [#allocation4], 1
    %3931 = vsyncpa [#allocation15], 1

</llo_original>
